<compile_context>
chip_gen: v7x
topology: tpu7x:2x2x1
jax: 0.10.0
libtpu: 0.0.40
codegen_flags: <defaults>
</compile_context>

<pallas_src>
import jax
import jax.numpy as jnp
from jax.experimental import pallas as pl
from jax.experimental.pallas import tpu as pltpu


def _round_up(x, m):
    return (x + m - 1) // m * m


# ----------------------------------------------------------------------------
# Fused VQ kernel: nearest-codebook search + gather + partial commitment SSE
# ----------------------------------------------------------------------------

def _vq_kernel(x_ref, e_ref, e2h_ref, q_ref, sse_ref):
    # x_ref: (D, ts) channel-major slab straight out of the NCHW tensor.
    x_t = x_ref[...].astype(jnp.float32)                       # (D, ts)
    x = x_t.T                                                   # (ts, D)  small XLU transpose
    e = e_ref[...]                                              # (Nep, D) codebook, VMEM-resident

    # argmin_c ||x - e_c||^2  ==  argmax_c ( x . e_c - 0.5*||e_c||^2 )
    xe = jax.lax.dot_general(x, e, (((1,), (1,)), ((), ())),
                             preferred_element_type=jnp.float32)   # (ts, Nep)  MXU
    scores = xe - e2h_ref[...]                                      # 1 VPU op / element

    # First-index tie-break (matches torch.argmin) via max + iota trick.
    max_s = jnp.max(scores, axis=1, keepdims=True)
    ids = jax.lax.broadcasted_iota(jnp.int32, scores.shape, 1)
    cand = jnp.where(scores >= max_s, ids, scores.shape[1])
    idx = jnp.min(cand, axis=1, keepdims=True)                      # (ts, 1)

    # Exact gather = one-hot @ codebook on the MXU (kept in f32 so rows are bit-exact).
    onehot = (ids == idx).astype(jnp.float32)                       # (ts, Nep)
    q = jnp.dot(onehot, e, preferred_element_type=jnp.float32)      # (ts, D)
    q_ref[...] = q.T                                                # back to NCHW slab layout

    # Fused commitment SSE partial: one scalar per grid step, splatted over a lane-dense
    # (8, 128) block (unmasked store); wrapper divides the total by 8*128.
    d2 = (q - x) * (q - x)
    part = jnp.sum(d2, axis=0, keepdims=True)                       # (1, D)
    part = jnp.sum(part, axis=1, keepdims=True)                     # (1, 1)
    sse_ref[...] = jnp.broadcast_to(part, (8, 128))


def pallas_vq_quantize_nchw(x_nchw, emb, *, ts_cap=1024):
    """x_nchw (N, D, H, W), emb (Ne, D) -> (quantized_nchw f32, sum((q - x)**2) scalar)."""
    N, D, H, W = x_nchw.shape
    Ne, De = emb.shape
    assert D == De, "channel dim must equal embedding_dim"
    HW = H * W

    # Spatial tile: largest multiple of 128 dividing H*W (block-shape constraint), capped at
    # ts_cap so score/one-hot temps stay well inside v5e's scoped VMEM; full-dim fallback for
    # unusual latent sizes.  Keep >=2 grid steps when possible so v7x megacore has work.
    if HW % 128 == 0:
        ts, t = 128, 128
        while t <= min(HW, ts_cap):
            if HW % t == 0:
                ts = t
            t += 128
        if N * (HW // ts) < 2 and ts % 256 == 0:
            ts //= 2
    else:
        ts = HW
    n_s = HW // ts

    Nep = _round_up(Ne, 128)
    ep = emb.astype(jnp.float32)
    e2h = 0.5 * jnp.sum(ep * ep, axis=1)                 # 0.5*||e||^2, precomputed once
    if Nep != Ne:                                        # padded rows must never win the argmax
        ep = jnp.zeros((Nep, D), jnp.float32).at[:Ne].set(ep)
        e2h = jnp.full((Nep,), 1e30, jnp.float32).at[:Ne].set(e2h)
    e2h = e2h.reshape(1, Nep)

    x3 = x_nchw.reshape(N, D, HW)                        # free: collapses contiguous trailing dims

    flops = 4 * N * HW * Nep * D                         # scores matmul + one-hot gather matmul
    bytes_accessed = (x3.dtype.itemsize * N * D * HW + 4 * N * D * HW
                      + 4 * Nep * D + 4 * Nep + 4 * N * n_s * 8 * 128)

    q3, parts = pl.pallas_call(
        _vq_kernel,
        out_shape=(jax.ShapeDtypeStruct((N, D, HW), jnp.float32),
                   jax.ShapeDtypeStruct((N, n_s, 8, 128), jnp.float32)),
        grid=(N, n_s),
        in_specs=[pl.BlockSpec((None, D, ts), lambda n, s: (n, 0, s)),    # latents: NCHW slabs
                  pl.BlockSpec((Nep, D), lambda n, s: (0, 0)),            # codebook: resident
                  pl.BlockSpec((1, Nep), lambda n, s: (0, 0))],           # 0.5*||e||^2: resident
        out_specs=(pl.BlockSpec((None, D, ts), lambda n, s: (n, 0, s)),
                   pl.BlockSpec((None, None, 8, 128), lambda n, s: (n, s, 0, 0))),
        compiler_params=pltpu.CompilerParams(
            dimension_semantics=("parallel", "parallel"),                 # megacore on v7x
            vmem_limit_bytes=32 * 1024 * 1024),
        cost_estimate=pl.CostEstimate(flops=flops, transcendentals=0,
                                      bytes_accessed=bytes_accessed),
    )(x3, ep, e2h)

    sse = jnp.sum(parts) * (1.0 / 1024.0)        # each step splats its partial over 8*128 entries
    return q3.reshape(N, D, H, W), sse


# ----------------------------------------------------------------------------
# VQ module forward (matches PyTorch VQ.forward, forward values)
# ----------------------------------------------------------------------------

def init_vq_params(key, num_embeddings=512, embedding_dim=64):
    emb = jax.random.uniform(key, (num_embeddings, embedding_dim), jnp.float32,
                             -1.0 / num_embeddings, 1.0 / num_embeddings)
    return {'emb': emb}


def vq_forward(params, inputs_nchw, commitment_cost=0.25):
    emb = params['emb']
    N, C, H, W = inputs_nchw.shape
    assert C == emb.shape[1]
    quantized_nchw, sse = pallas_vq_quantize_nchw(inputs_nchw, emb)
    mse = sse / (N * C * H * W)
    # forward value: e_latent_loss == q_latent_loss == mse (detach only changes gradients)
    c_loss = (1.0 + commitment_cost) * mse
    # forward value of the straight-through output equals the gathered rows
    return c_loss, quantized_nchw


if __name__ == "__main__":
    key = jax.random.PRNGKey(0)
    k_emb, k_idx, k_noise = jax.random.split(key, 3)

    num_embeddings, embedding_dim = 512, 64
    params = init_vq_params(k_emb, num_embeddings, embedding_dim)
    emb = params['emb']

    # Deterministic small input: latents near codebook entries (unambiguous nearest-neighbour).
    N, H, W = 2, 16, 16
    M = N * H * W
    idx_true = jax.random.randint(k_idx, (M,), 0, num_embeddings)
    noise = 2.5e-4 * jax.random.normal(k_noise, (M, embedding_dim), jnp.float32)
    flat_in = emb[idx_true] + noise
    x = jnp.transpose(flat_in.reshape(N, H, W, embedding_dim), (0, 3, 1, 2))   # NCHW

    fwd = jax.jit(vq_forward)
    c_loss, quantized = fwd(params, x)
    jax.block_until_ready((c_loss, quantized))

    # Plain-JAX reference of the PyTorch forward.
    xn = jnp.transpose(x, (0, 2, 3, 1)).reshape(-1, embedding_dim)
    dist2 = jnp.sum((xn[:, None, :] - emb[None, :, :]) ** 2, axis=-1)
    idx_ref = jnp.argmin(dist2, axis=1)
    q_ref = emb[idx_ref]
    mse_ref = jnp.mean((q_ref - xn) ** 2)
    c_ref = 1.25 * mse_ref
    q_ref_nchw = jnp.transpose(q_ref.reshape(N, H, W, embedding_dim), (0, 3, 1, 2))

    assert quantized.shape == x.shape
    assert c_loss.shape == ()
    assert bool(jnp.isfinite(c_loss))
    assert float(jnp.max(jnp.abs(quantized - q_ref_nchw))) < 3e-5
    assert abs(float(c_loss) - float(c_ref)) <= 0.25 * float(c_ref) + 1e-10
    print("KERNEL_OK")
</pallas_src>

<mosaic_0001>
module attributes {stable_mosaic.version = 11 : i64} {
  func.func @_vq_kernel(%arg0: i32, %arg1: i32, %arg2: memref<1x64x256xf32, #tpu.memory_space<vmem>>, %arg3: memref<512x64xf32, #tpu.memory_space<vmem>>, %arg4: memref<1x512xf32, #tpu.memory_space<vmem>>, %arg5: memref<1x64x256xf32, #tpu.memory_space<vmem>>, %arg6: memref<1x1x8x128xf32, #tpu.memory_space<vmem>>) attributes {dimension_semantics = [#tpu.dimension_semantics<parallel>, #tpu.dimension_semantics<parallel>], iteration_bounds = array<i64: 2, 1>, scalar_prefetch = 0 : i64, scratch_operands = 0 : i64, tpu.core_type = #tpu.core_type<tc>, window_params = [{transform_indices = @transform_0, window_bounds = array<i64: 1, 64, 256>}, {pipeline_mode = #tpu.pipeline_mode<synchronous>, transform_indices = @transform_1, window_bounds = array<i64: 512, 64>}, {pipeline_mode = #tpu.pipeline_mode<synchronous>, transform_indices = @transform_2, window_bounds = array<i64: 1, 512>}, {transform_indices = @transform_3, window_bounds = array<i64: 1, 64, 256>}, {transform_indices = @transform_4, window_bounds = array<i64: 1, 1, 8, 128>}]} {
    %c0 = arith.constant 0 : index
    %c0_0 = arith.constant 0 : index
    %c0_1 = arith.constant 0 : index
    %0 = vector.load %arg2[%c0, %c0_0, %c0_1] : memref<1x64x256xf32, #tpu.memory_space<vmem>>, vector<1x64x256xf32>
    %1 = vector.shape_cast %0 : vector<1x64x256xf32> to vector<64x256xf32>
    %2 = tpu.transpose %1, [1, 0] : vector<64x256xf32> -> vector<256x64xf32>
    %c0_2 = arith.constant 0 : index
    %c0_3 = arith.constant 0 : index
    %3 = vector.load %arg3[%c0_2, %c0_3] : memref<512x64xf32, #tpu.memory_space<vmem>>, vector<512x64xf32>
    %cst = arith.constant dense<0.000000e+00> : vector<256x512xf32>
    %4 = tpu.matmul %2, %3, %cst {dimension_numbers = #tpu.dot_dimension_numbers<[1], [1], [0], [0], [0, 0, 1, 0], [], []>} : vector<256x64xf32>, vector<512x64xf32>, vector<256x512xf32> -> vector<256x512xf32>
    %c0_4 = arith.constant 0 : index
    %c0_5 = arith.constant 0 : index
    %5 = vector.load %arg4[%c0_4, %c0_5] : memref<1x512xf32, #tpu.memory_space<vmem>>, vector<1x512xf32>
    %6 = vector.broadcast %5 : vector<1x512xf32> to vector<256x512xf32>
    %7 = arith.subf %4, %6 : vector<256x512xf32>
    %cst_6 = arith.constant dense<0xFF800000> : vector<256xf32>
    %8 = vector.multi_reduction <maximumf>, %7, %cst_6 [1] : vector<256x512xf32> to vector<256xf32>
    %9 = vector.shape_cast %8 : vector<256xf32> to vector<256x1xf32>
    %10 = tpu.iota {dimensions = array<i32: 1>} : vector<256x512xi32>
    %11 = vector.broadcast %9 : vector<256x1xf32> to vector<256x512xf32>
    %12 = arith.cmpf oge, %7, %11 : vector<256x512xf32>
    %c512_i32 = arith.constant 512 : i32
    %13 = vector.broadcast %c512_i32 : i32 to vector<256x512xi32>
    %14 = arith.select %12, %10, %13 : vector<256x512xi1>, vector<256x512xi32>
    %cst_7 = arith.constant dense<2147483647> : vector<256xi32>
    %15 = vector.multi_reduction <minsi>, %14, %cst_7 [1] : vector<256x512xi32> to vector<256xi32>
    %16 = vector.shape_cast %15 : vector<256xi32> to vector<256x1xi32>
    %17 = vector.broadcast %16 : vector<256x1xi32> to vector<256x512xi32>
    %18 = arith.cmpi eq, %10, %17 : vector<256x512xi32>
    %19 = arith.extui %18 : vector<256x512xi1> to vector<256x512xi32>
    %20 = arith.sitofp %19 : vector<256x512xi32> to vector<256x512xf32>
    %cst_8 = arith.constant dense<0.000000e+00> : vector<256x64xf32>
    %21 = tpu.matmul %20, %3, %cst_8 {dimension_numbers = #tpu.dot_dimension_numbers<[1], [0], [0], [1], [0, 0, 1, 1], [], []>} : vector<256x512xf32>, vector<512x64xf32>, vector<256x64xf32> -> vector<256x64xf32>
    %22 = tpu.transpose %21, [1, 0] : vector<256x64xf32> -> vector<64x256xf32>
    %c0_9 = arith.constant 0 : index
    %c0_10 = arith.constant 0 : index
    %c0_11 = arith.constant 0 : index
    %23 = vector.load %arg5[%c0_9, %c0_10, %c0_11] : memref<1x64x256xf32, #tpu.memory_space<vmem>>, vector<1x64x256xf32>
    %24 = vector.shape_cast %23 : vector<1x64x256xf32> to vector<64x256xf32>
    %25 = vector.shape_cast %22 : vector<64x256xf32> to vector<1x64x256xf32>
    tpu.vector_store %arg5[%c0_9, %c0_10, %c0_11], %25 {strides = array<i32>} : memref<1x64x256xf32, #tpu.memory_space<vmem>>, vector<1x64x256xf32>,
    %26 = arith.subf %21, %2 : vector<256x64xf32>
    %27 = arith.subf %21, %2 : vector<256x64xf32>
    %28 = arith.mulf %26, %27 : vector<256x64xf32>
    %cst_12 = arith.constant dense<0.000000e+00> : vector<64xf32>
    %29 = vector.multi_reduction <add>, %28, %cst_12 [0] : vector<256x64xf32> to vector<64xf32>
    %30 = vector.shape_cast %29 : vector<64xf32> to vector<1x64xf32>
    %cst_13 = arith.constant dense<0.000000e+00> : vector<1xf32>
    %31 = vector.multi_reduction <add>, %30, %cst_13 [1] : vector<1x64xf32> to vector<1xf32>
    %32 = vector.shape_cast %31 : vector<1xf32> to vector<1x1xf32>
    %33 = vector.shape_cast %32 : vector<1x1xf32> to vector<1x1xf32>
    %34 = vector.broadcast %33 : vector<1x1xf32> to vector<8x128xf32>
    %c0_14 = arith.constant 0 : index
    %c0_15 = arith.constant 0 : index
    %c0_16 = arith.constant 0 : index
    %c0_17 = arith.constant 0 : index
    %35 = vector.load %arg6[%c0_14, %c0_15, %c0_16, %c0_17] : memref<1x1x8x128xf32, #tpu.memory_space<vmem>>, vector<1x1x8x128xf32>
    %36 = vector.shape_cast %35 : vector<1x1x8x128xf32> to vector<8x128xf32>
    %37 = vector.shape_cast %34 : vector<8x128xf32> to vector<1x1x8x128xf32>
    tpu.vector_store %arg6[%c0_14, %c0_15, %c0_16, %c0_17], %37 {strides = array<i32>} : memref<1x1x8x128xf32, #tpu.memory_space<vmem>>, vector<1x1x8x128xf32>,
    return
  }
  func.func @transform_0(%arg0: i32, %arg1: i32) -> (i32, i32, i32) {
    %c0_i32 = arith.constant 0 : i32
    %c0_i32_0 = arith.constant 0 : i32
    return %arg0, %c0_i32, %arg1 : i32, i32, i32
  }
  func.func @transform_1(%arg0: i32, %arg1: i32) -> (i32, i32) {
    %c0_i32 = arith.constant 0 : i32
    %c0_i32_0 = arith.constant 0 : i32
    %c0_i32_1 = arith.constant 0 : i32
    return %c0_i32, %c0_i32_0 : i32, i32
  }
  func.func @transform_2(%arg0: i32, %arg1: i32) -> (i32, i32) {
    %c0_i32 = arith.constant 0 : i32
    %c0_i32_0 = arith.constant 0 : i32
    %c0_i32_1 = arith.constant 0 : i32
    return %c0_i32, %c0_i32_0 : i32, i32
  }
  func.func @transform_3(%arg0: i32, %arg1: i32) -> (i32, i32, i32) {
    %c0_i32 = arith.constant 0 : i32
    %c0_i32_0 = arith.constant 0 : i32
    return %arg0, %c0_i32, %arg1 : i32, i32, i32
  }
  func.func @transform_4(%arg0: i32, %arg1: i32) -> (i32, i32, i32, i32) {
    %c0_i32 = arith.constant 0 : i32
    %c0_i32_0 = arith.constant 0 : i32
    %c0_i32_1 = arith.constant 0 : i32
    return %arg0, %arg1, %c0_i32, %c0_i32_0 : i32, i32, i32, i32
  }
}

</mosaic_0001>

<llo_original>
// kernel: vq_forward.1
$region0: #{vq_forward.1}
  #allocation0 [shape = 'u32[]', space=smem, size = 0x4, offset = 0x4, fixed_abs, tag = 'smem constant byte address 0x4 - core index']
  #allocation1 [shape = 'u32[144,128]{1,0:T(1,128)}', space=vmem, size = 0x12000, scoped, tag = 'internal scratch']
  %s0 = inlined_call_operand.vmem [shape: f32[2,64,256], index: 0, kind: input, shape index: {}]
  %s1 = inlined_call_operand.vmem [shape: f32[512,64], index: 1, kind: input, shape index: {}]
  %s2 = inlined_call_operand.vmem [shape: f32[1,512], index: 2, kind: input, shape index: {}]
  %s3 = inlined_call_operand.vmem [shape: f32[2,64,256], index: 3, kind: output, shape index: {0}]
  %s4 = inlined_call_operand.vmem [shape: f32[2,1,8,128], index: 4, kind: output, shape index: {1}]
  %5 = xla_tuple %s3, %s4
  %s6 = sld [smem:[#allocation0]]
  $region53: #{vq_forward.1} parent=0
    _
  %s8 = ssub.s32 1, %s6
  %s9 = scalar_select 0, %s8, %s6
  loop: start=0, step=1, limit=4
  $region2: #{vq_forward.1} parent=0 // loop_pre_header
    _
  $region3: #{vq_forward.1} parent=0 // loop_header
    %s11 = sphi 0, %s15
    %p12 = scmp.ge.s32.totalorder %s11, 4
    %s18 = sphi 0, %s30
    %s19 = sphi 0, %s26
    %s20 = sphi 0, %s18
    %s21 = sphi 0, %s19
    %s22 = sphi 0, %s20
    %s23 = sphi 0, %s21
    %s35 = sphi 0, %s37
    %s38 = sphi 0, %s35
    %s39 = sphi 0, %s38
    %s55 = sphi 0, %s39
    %s59 = sphi 0, %s59
    %s61 = sphi 0, %s59
    %s62 = sphi 0, %s61
    %s76 = sphi 0, %s62
    %s80 = sphi 0, %s80
    %s82 = sphi 0, %s80
    %s83 = sphi 0, %s82
    %s97 = sphi 0, %s83
    %s105 = sphi 0, %s107
    %s108 = sphi 0, %s105
    %s109 = sphi 0, %s108
    %s125 = sphi 0, %s109
    %s133 = sphi 0, %s135
    %s136 = sphi 0, %s133
    %s137 = sphi 0, %s136
    %s153 = sphi 0, %s137
  $region4: #{vq_forward.1} parent=0 // loop_header_branch
    %14 = sbr.rel (%p12) target = $region8
  $region5: #{vq_forward.1} parent=0 // loop_body
    %s16 = ssub.s32 %s11, 1
    %s17 = ssub.s32 %s11, 2
    %s24 = sadd.s32 1, %s19
    %p25 = scmp.ge.s32.totalorder %s24, 1
    %s26 = scalar_select %p25, 0, %s24
    %s27 = sadd.s32 1, %s18
    %s28 = scalar_select %p25, %s27, %s18
    %p29 = scmp.ge.s32.totalorder %s28, 2
    %s30 = scalar_select %p29, 0, %s28
    %s31 = ssub.s32 %s18, %s30
    %s32 = ssub.s32 %s19, %s26
    %s33 = sor.u32 %s31, %s32
    %p34 = scmp.eq.s32.totalorder %s33, 0
    %s36 = sadd.s32 %s35, 1
    %s37 = scalar_select %p34, %s35, %s36
    %p40 = pneg %p34
    %p41 = scmp.eq.s32.totalorder %s11, 1
    %p42 = por %p40, %p41
    %p43 = scmp.ne.s32.totalorder %s35, %s38
    %p44 = scmp.eq.s32.totalorder %s11, 0
    %p45 = por %p43, %p44
    %p46 = scmp.ne.s32.totalorder %s35, %s38
    %p47 = scmp.eq.s32.totalorder %s16, 1
    %p48 = por %p46, %p47
    %p49 = scmp.ne.s32.totalorder %s38, %s39
    %p50 = scmp.eq.s32.totalorder %s16, 0
    %p51 = por %p49, %p50
    %p52 = scmp.ne.s32.totalorder %s38, %s39
    %p53 = scmp.eq.s32.totalorder %s17, 1
    %p54 = por %p52, %p53
    %p56 = scmp.ne.s32.totalorder %s39, %s55
    %p57 = scmp.eq.s32.totalorder %s17, 0
    %p58 = por %p56, %p57
    %s60 = sadd.s32 %s59, 1
    %p63 = scmp.eq.s32.totalorder %s11, 1
    %p64 = scmp.ne.s32.totalorder %s59, %s61
    %p65 = scmp.eq.s32.totalorder %s11, 0
    %p66 = por %p64, %p65
    %p67 = scmp.ne.s32.totalorder %s59, %s61
    %p68 = scmp.eq.s32.totalorder %s16, 1
    %p69 = por %p67, %p68
    %p70 = scmp.ne.s32.totalorder %s61, %s62
    %p71 = scmp.eq.s32.totalorder %s16, 0
    %p72 = por %p70, %p71
    %p73 = scmp.ne.s32.totalorder %s61, %s62
    %p74 = scmp.eq.s32.totalorder %s17, 1
    %p75 = por %p73, %p74
    %p77 = scmp.ne.s32.totalorder %s62, %s76
    %p78 = scmp.eq.s32.totalorder %s17, 0
    %p79 = por %p77, %p78
    %s81 = sadd.s32 %s80, 1
    %p84 = scmp.eq.s32.totalorder %s11, 1
    %p85 = scmp.ne.s32.totalorder %s80, %s82
    %p86 = scmp.eq.s32.totalorder %s11, 0
    %p87 = por %p85, %p86
    %p88 = scmp.ne.s32.totalorder %s80, %s82
    %p89 = scmp.eq.s32.totalorder %s16, 1
    %p90 = por %p88, %p89
    %p91 = scmp.ne.s32.totalorder %s82, %s83
    %p92 = scmp.eq.s32.totalorder %s16, 0
    %p93 = por %p91, %p92
    %p94 = scmp.ne.s32.totalorder %s82, %s83
    %p95 = scmp.eq.s32.totalorder %s17, 1
    %p96 = por %p94, %p95
    %p98 = scmp.ne.s32.totalorder %s83, %s97
    %p99 = scmp.eq.s32.totalorder %s17, 0
    %p100 = por %p98, %p99
    %s101 = ssub.s32 %s18, %s30
    %s102 = ssub.s32 %s19, %s26
    %s103 = sor.u32 %s101, %s102
    %p104 = scmp.eq.s32.totalorder %s103, 0
    %s106 = sadd.s32 %s105, 1
    %s107 = scalar_select %p104, %s105, %s106
    %p110 = pneg %p104
    %p111 = scmp.eq.s32.totalorder %s11, 1
    %p112 = por %p110, %p111
    %p113 = scmp.ne.s32.totalorder %s105, %s108
    %p114 = scmp.eq.s32.totalorder %s11, 0
    %p115 = por %p113, %p114
    %p116 = scmp.ne.s32.totalorder %s105, %s108
    %p117 = scmp.eq.s32.totalorder %s16, 1
    %p118 = por %p116, %p117
    %p119 = scmp.ne.s32.totalorder %s108, %s109
    %p120 = scmp.eq.s32.totalorder %s16, 0
    %p121 = por %p119, %p120
    %p122 = scmp.ne.s32.totalorder %s108, %s109
    %p123 = scmp.eq.s32.totalorder %s17, 1
    %p124 = por %p122, %p123
    %p126 = scmp.ne.s32.totalorder %s109, %s125
    %p127 = scmp.eq.s32.totalorder %s17, 0
    %p128 = por %p126, %p127
    %s129 = ssub.s32 %s18, %s30
    %s130 = ssub.s32 %s19, %s26
    %s131 = sor.u32 %s129, %s130
    %p132 = scmp.eq.s32.totalorder %s131, 0
    %s134 = sadd.s32 %s133, 1
    %s135 = scalar_select %p132, %s133, %s134
    %p138 = pneg %p132
    %p139 = scmp.eq.s32.totalorder %s11, 1
    %p140 = por %p138, %p139
    %p141 = scmp.ne.s32.totalorder %s133, %s136
    %p142 = scmp.eq.s32.totalorder %s11, 0
    %p143 = por %p141, %p142
    %p144 = scmp.ne.s32.totalorder %s133, %s136
    %p145 = scmp.eq.s32.totalorder %s16, 1
    %p146 = por %p144, %p145
    %p147 = scmp.ne.s32.totalorder %s136, %s137
    %p148 = scmp.eq.s32.totalorder %s16, 0
    %p149 = por %p147, %p148
    %p150 = scmp.ne.s32.totalorder %s136, %s137
    %p151 = scmp.eq.s32.totalorder %s17, 1
    %p152 = por %p150, %p151
    %p154 = scmp.ne.s32.totalorder %s137, %s153
    %p155 = scmp.eq.s32.totalorder %s17, 0
    %p156 = por %p154, %p155
    %p157 = scmp.le.s32.totalorder 1, %s11
    %p158 = scmp.lt.s32.totalorder %s11, 3
    %p159 = pnand %p157, %p158
    %p160 = pneg %p159
    // Predicated region
    $region9: #{vq_forward.1} parent=5 // pred_check
      _
    $region10: #{vq_forward.1} parent=5 // pred_check_branch
      %162 = sbr.rel (%p159) target = $region12
    $region11: #{vq_forward.1} parent=5 // pred_region
      %s163 = ssub.s32 %s11, 1
      // Predicated region
      $region13: #{vq_forward.1} parent=11 // pred_check
        %p164 = pneg %p72
      $region14: #{vq_forward.1} parent=11 // pred_check_branch
        %166 = sbr.rel (%p164) target = $region16
      $region15: #{vq_forward.1} parent=11 // pred_region
        _
      $region16: #{vq_forward.1} parent=11 // pred_fallthru
        _
      // Predicated region
      $region17: #{vq_forward.1} parent=11 // pred_check
        %p167 = pneg %p93
      $region18: #{vq_forward.1} parent=11 // pred_check_branch
        %169 = sbr.rel (%p167) target = $region20
      $region19: #{vq_forward.1} parent=11 // pred_region
        _
      $region20: #{vq_forward.1} parent=11 // pred_fallthru
        _
    $region12: #{vq_forward.1} parent=5 // pred_fallthru
      _
    %p170 = scmp.lt.s32.totalorder %s11, 2
    // Predicated region
    $region21: #{vq_forward.1} parent=5 // pred_check
      %p171 = pneg %p170
    $region22: #{vq_forward.1} parent=5 // pred_check_branch
      %173 = sbr.rel (%p171) target = $region24
    $region23: #{vq_forward.1} parent=5 // pred_region
      // Predicated region
      $region25: #{vq_forward.1} parent=23 // pred_check
        %p174 = pneg %p45
      $region26: #{vq_forward.1} parent=23 // pred_check_branch
        %176 = sbr.rel (%p174) target = $region28
      $region27: #{vq_forward.1} parent=23 // pred_region
        %s177 = smul.u32 2, %s19
        %p178 = scmp.lt.s32.totalorder %s18, 1
        %s179 = scalar_select %p178, %s18, 1
        %p180 = scmp.lt.s32.totalorder %s177, 1
        %s181 = scalar_select %p180, %s177, 1
        %s182 = smul.addr %s179, 16
        %s183 = sadd.s32 %s181, %s182
        %s184 = smul.addr %s183, 8
        %s185 = scalar_lea.vmem %s0, %s184
        %s186 = smul.u32 2, %s19
      $region28: #{vq_forward.1} parent=23 // pred_fallthru
        _
    $region24: #{vq_forward.1} parent=5 // pred_fallthru
      _
    %p187 = scmp.le.s32.totalorder 1, %s11
    %p188 = scmp.lt.s32.totalorder %s11, 3
    %p189 = pnand %p187, %p188
    %p190 = pneg %p189
    // Predicated region
    $region29: #{vq_forward.1} parent=5 // pred_check
      _
    $region30: #{vq_forward.1} parent=5 // pred_check_branch
      %192 = sbr.rel (%p189) target = $region32
    $region31: #{vq_forward.1} parent=5 // pred_region
      %s193 = ssub.s32 %s11, 1
      %s194 = smul.u32 2, %s21
      %p195 = scmp.lt.s32.totalorder %s20, 1
      %s196 = scalar_select %p195, %s20, 1
      %p197 = scmp.lt.s32.totalorder %s194, 1
      %s198 = scalar_select %p197, %s194, 1
      %s199 = smul.addr %s196, 16
      %s200 = sadd.s32 %s198, %s199
      %s201 = smul.addr %s200, 8
      %s202 = scalar_lea.vmem %s0, %s201
      %p203 = pneg %p51
      %p204 = pneg %p48
      %p205 = pneg %p72
      %p206 = pneg %p69
      %p207 = pneg %p93
      %p208 = pneg %p90
      %p209 = pneg %p121
      %p210 = pneg %p118
      %s211 = smul.u32 2, %s21
      %p212 = scmp.lt.s32.totalorder %s20, 1
      %s213 = scalar_select %p212, %s20, 1
      %p214 = scmp.lt.s32.totalorder %s211, 1
      %s215 = scalar_select %p214, %s211, 1
      %s216 = smul.addr %s213, 16
      %s217 = sadd.s32 %s215, %s216
      %s218 = smul.addr %s217, 8
      %s219 = scalar_lea.vmem %s3, %s218
      %p220 = pneg %p149
      %p221 = pneg %p146
      %p222 = scmp.lt.s32.totalorder %s20, 1
      %s223 = scalar_select %p222, %s20, 1
      %p224 = scmp.lt.s32.totalorder %s21, 0
      %s225 = scalar_select %p224, %s21, 0
      %s226 = sadd.s32 %s225, %s223
      %s227 = smul.addr %s226, 8
      %s228 = scalar_lea.vmem %s4, %s227
      %s229 = smul.u32 2, %s21
      %p230 = scmp.lt.s32.totalorder %s20, 1
      %s231 = scalar_select %p230, %s20, 1
      %p232 = scmp.lt.s32.totalorder %s229, 1
      %s233 = scalar_select %p232, %s229, 1
      %s234 = smul.addr %s231, 16
      %s235 = sadd.s32 %s233, %s234
      %s236 = smul.addr %s235, 8
      %s237 = scalar_lea.vmem %s0, %s236
      %s238 = smul.u32 2, %s21
      %s239 = smul.u32 2, %s21
      %p240 = scmp.lt.s32.totalorder %s20, 1
      %s241 = scalar_select %p240, %s20, 1
      %p242 = scmp.lt.s32.totalorder %s239, 1
      %s243 = scalar_select %p242, %s239, 1
      %s244 = smul.addr %s241, 16
      %s245 = sadd.s32 %s243, %s244
      %s246 = smul.addr %s245, 8
      %s247 = scalar_lea.vmem %s3, %s246
      %s248 = smul.u32 2, %s21
      %p249 = scmp.lt.s32.totalorder %s20, 1
      %s250 = scalar_select %p249, %s20, 1
      %p251 = scmp.lt.s32.totalorder %s21, 0
      %s252 = scalar_select %p251, %s21, 0
      %s253 = sadd.s32 %s252, %s250
      %s254 = smul.addr %s253, 8
      %s255 = scalar_lea.vmem %s4, %s254
      %v256 = vld [vmem:[%s237] sm:$0xff]
      %v257 = vld [vmem:[%s237 + $0x8] sm:$0xff]
      %v258 = vld [vmem:[%s237 + $0x10] sm:$0xff]
      %v259 = vld [vmem:[%s237 + $0x18] sm:$0xff]
      %v260 = vld [vmem:[%s237 + $0x20] sm:$0xff]
      %v261 = vld [vmem:[%s237 + $0x28] sm:$0xff]
      %v262 = vld [vmem:[%s237 + $0x30] sm:$0xff]
      %v263 = vld [vmem:[%s237 + $0x38] sm:$0xff]
      %v264 = vld [vmem:[%s237 + $0x40] sm:$0xff]
      %v265 = vld [vmem:[%s237 + $0x48] sm:$0xff]
      %v266 = vld [vmem:[%s237 + $0x50] sm:$0xff]
      %v267 = vld [vmem:[%s237 + $0x58] sm:$0xff]
      %v268 = vld [vmem:[%s237 + $0x60] sm:$0xff]
      %v269 = vld [vmem:[%s237 + $0x68] sm:$0xff]
      %v270 = vld [vmem:[%s237 + $0x70] sm:$0xff]
      %v271 = vld [vmem:[%s237 + $0x78] sm:$0xff]
      %272 = vxpose.xlu0.b32.start [1/16] %v256, 128
      %273 = vxpose.xlu0.b32.cont [2/16] %v258, 128
      %274 = vxpose.xlu0.b32.cont [3/16] %v260, 128
      %275 = vxpose.xlu0.b32.cont [4/16] %v262, 128
      %276 = vxpose.xlu0.b32.cont [5/16] %v264, 128
      %277 = vxpose.xlu0.b32.cont [6/16] %v266, 128
      %278 = vxpose.xlu0.b32.cont [7/16] %v268, 128
      %279 = vxpose.xlu0.b32.cont [8/16] %v270, 128
      %280 = vxpose.xlu0.b32.cont [9/16] 0.0, 128
      %281 = vxpose.xlu0.b32.cont [10/16] 0.0, 128
      %282 = vxpose.xlu0.b32.cont [11/16] 0.0, 128
      %283 = vxpose.xlu0.b32.cont [12/16] 0.0, 128
      %284 = vxpose.xlu0.b32.cont [13/16] 0.0, 128
      %285 = vxpose.xlu0.b32.cont [14/16] 0.0, 128
      %286 = vxpose.xlu0.b32.cont [15/16] 0.0, 128
      %287 = vxpose.xlu0.b32.end [16/16] 0.0, 128
      %v288 = vpop.trf.xlu0
      %v289 = vpop.trf.xlu0
      %v290 = vpop.trf.xlu0
      %v291 = vpop.trf.xlu0
      %v292 = vpop.trf.xlu0
      %v293 = vpop.trf.xlu0
      %v294 = vpop.trf.xlu0
      %v295 = vpop.trf.xlu0
      %v296 = vpop.trf.xlu0
      %v297 = vpop.trf.xlu0
      %v298 = vpop.trf.xlu0
      %v299 = vpop.trf.xlu0
      %v300 = vpop.trf.xlu0
      %v301 = vpop.trf.xlu0
      %v302 = vpop.trf.xlu0
      %v303 = vpop.trf.xlu0
      %304 = vxpose.xlu0.b32.start [1/16] %v257, 128
      %305 = vxpose.xlu0.b32.cont [2/16] %v259, 128
      %306 = vxpose.xlu0.b32.cont [3/16] %v261, 128
      %307 = vxpose.xlu0.b32.cont [4/16] %v263, 128
      %308 = vxpose.xlu0.b32.cont [5/16] %v265, 128
      %309 = vxpose.xlu0.b32.cont [6/16] %v267, 128
      %310 = vxpose.xlu0.b32.cont [7/16] %v269, 128
      %311 = vxpose.xlu0.b32.cont [8/16] %v271, 128
      %312 = vxpose.xlu0.b32.cont [9/16] 0.0, 128
      %313 = vxpose.xlu0.b32.cont [10/16] 0.0, 128
      %314 = vxpose.xlu0.b32.cont [11/16] 0.0, 128
      %315 = vxpose.xlu0.b32.cont [12/16] 0.0, 128
      %316 = vxpose.xlu0.b32.cont [13/16] 0.0, 128
      %317 = vxpose.xlu0.b32.cont [14/16] 0.0, 128
      %318 = vxpose.xlu0.b32.cont [15/16] 0.0, 128
      %319 = vxpose.xlu0.b32.end [16/16] 0.0, 128
      %v320 = vpop.trf.xlu0
      %v321 = vpop.trf.xlu0
      %v322 = vpop.trf.xlu0
      %v323 = vpop.trf.xlu0
      %v324 = vpop.trf.xlu0
      %v325 = vpop.trf.xlu0
      %v326 = vpop.trf.xlu0
      %v327 = vpop.trf.xlu0
      %v328 = vpop.trf.xlu0
      %v329 = vpop.trf.xlu0
      %v330 = vpop.trf.xlu0
      %v331 = vpop.trf.xlu0
      %v332 = vpop.trf.xlu0
      %v333 = vpop.trf.xlu0
      %v334 = vpop.trf.xlu0
      %v335 = vpop.trf.xlu0
      %v336 = vld [vmem:[%s1] sm:$0xff]
      %v337 = vld [vmem:[%s1 + $0x8] sm:$0xff]
      %v338 = vld [vmem:[%s1 + $0x10] sm:$0xff]
      %v339 = vld [vmem:[%s1 + $0x18] sm:$0xff]
      %v340 = vld [vmem:[%s1 + $0x20] sm:$0xff]
      %v341 = vld [vmem:[%s1 + $0x28] sm:$0xff]
      %v342 = vld [vmem:[%s1 + $0x30] sm:$0xff]
      %v343 = vld [vmem:[%s1 + $0x38] sm:$0xff]
      %v344 = vld [vmem:[%s1 + $0x40] sm:$0xff]
      %v345 = vld [vmem:[%s1 + $0x48] sm:$0xff]
      %v346 = vld [vmem:[%s1 + $0x50] sm:$0xff]
      %v347 = vld [vmem:[%s1 + $0x58] sm:$0xff]
      %v348 = vld [vmem:[%s1 + $0x60] sm:$0xff]
      %v349 = vld [vmem:[%s1 + $0x68] sm:$0xff]
      %v350 = vld [vmem:[%s1 + $0x70] sm:$0xff]
      %v351 = vld [vmem:[%s1 + $0x78] sm:$0xff]
      %v352 = vld [vmem:[%s1 + $0x80] sm:$0xff]
      %v353 = vld [vmem:[%s1 + $0x88] sm:$0xff]
      %v354 = vld [vmem:[%s1 + $0x90] sm:$0xff]
      %v355 = vld [vmem:[%s1 + $0x98] sm:$0xff]
      %v356 = vld [vmem:[%s1 + $0xa0] sm:$0xff]
      %v357 = vld [vmem:[%s1 + $0xa8] sm:$0xff]
      %v358 = vld [vmem:[%s1 + $0xb0] sm:$0xff]
      %v359 = vld [vmem:[%s1 + $0xb8] sm:$0xff]
      %v360 = vld [vmem:[%s1 + $0xc0] sm:$0xff]
      %v361 = vld [vmem:[%s1 + $0xc8] sm:$0xff]
      %v362 = vld [vmem:[%s1 + $0xd0] sm:$0xff]
      %v363 = vld [vmem:[%s1 + $0xd8] sm:$0xff]
      %v364 = vld [vmem:[%s1 + $0xe0] sm:$0xff]
      %v365 = vld [vmem:[%s1 + $0xe8] sm:$0xff]
      %v366 = vld [vmem:[%s1 + $0xf0] sm:$0xff]
      %v367 = vld [vmem:[%s1 + $0xf8] sm:$0xff]
      %v368 = vld [vmem:[%s1 + $0x100] sm:$0xff]
      %v369 = vld [vmem:[%s1 + $0x108] sm:$0xff]
      %v370 = vld [vmem:[%s1 + $0x110] sm:$0xff]
      %v371 = vld [vmem:[%s1 + $0x118] sm:$0xff]
      %v372 = vld [vmem:[%s1 + $0x120] sm:$0xff]
      %v373 = vld [vmem:[%s1 + $0x128] sm:$0xff]
      %v374 = vld [vmem:[%s1 + $0x130] sm:$0xff]
      %v375 = vld [vmem:[%s1 + $0x138] sm:$0xff]
      %v376 = vld [vmem:[%s1 + $0x140] sm:$0xff]
      %v377 = vld [vmem:[%s1 + $0x148] sm:$0xff]
      %v378 = vld [vmem:[%s1 + $0x150] sm:$0xff]
      %v379 = vld [vmem:[%s1 + $0x158] sm:$0xff]
      %v380 = vld [vmem:[%s1 + $0x160] sm:$0xff]
      %v381 = vld [vmem:[%s1 + $0x168] sm:$0xff]
      %v382 = vld [vmem:[%s1 + $0x170] sm:$0xff]
      %v383 = vld [vmem:[%s1 + $0x178] sm:$0xff]
      %v384 = vld [vmem:[%s1 + $0x180] sm:$0xff]
      %v385 = vld [vmem:[%s1 + $0x188] sm:$0xff]
      %v386 = vld [vmem:[%s1 + $0x190] sm:$0xff]
      %v387 = vld [vmem:[%s1 + $0x198] sm:$0xff]
      %v388 = vld [vmem:[%s1 + $0x1a0] sm:$0xff]
      %v389 = vld [vmem:[%s1 + $0x1a8] sm:$0xff]
      %v390 = vld [vmem:[%s1 + $0x1b0] sm:$0xff]
      %v391 = vld [vmem:[%s1 + $0x1b8] sm:$0xff]
      %v392 = vld [vmem:[%s1 + $0x1c0] sm:$0xff]
      %v393 = vld [vmem:[%s1 + $0x1c8] sm:$0xff]
      %v394 = vld [vmem:[%s1 + $0x1d0] sm:$0xff]
      %v395 = vld [vmem:[%s1 + $0x1d8] sm:$0xff]
      %v396 = vld [vmem:[%s1 + $0x1e0] sm:$0xff]
      %v397 = vld [vmem:[%s1 + $0x1e8] sm:$0xff]
      %v398 = vld [vmem:[%s1 + $0x1f0] sm:$0xff]
      %v399 = vld [vmem:[%s1 + $0x1f8] sm:$0xff]
      %vm400 = vcmask 523264
      %v402 = vsel %vm400, %v288, 0
      %v405 = vsel %vm400, %v289, 0
      %v408 = vsel %vm400, %v290, 0
      %v411 = vsel %vm400, %v291, 0
      %v414 = vsel %vm400, %v292, 0
      %v417 = vsel %vm400, %v293, 0
      %v420 = vsel %vm400, %v294, 0
      %v423 = vsel %vm400, %v295, 0
      %v426 = vsel %vm400, %v296, 0
      %v429 = vsel %vm400, %v297, 0
      %v432 = vsel %vm400, %v298, 0
      %v435 = vsel %vm400, %v299, 0
      %v438 = vsel %vm400, %v300, 0
      %v441 = vsel %vm400, %v301, 0
      %v444 = vsel %vm400, %v302, 0
      %v447 = vsel %vm400, %v303, 0
      %v450 = vsel %vm400, %v320, 0
      %v453 = vsel %vm400, %v321, 0
      %v456 = vsel %vm400, %v322, 0
      %v459 = vsel %vm400, %v323, 0
      %v462 = vsel %vm400, %v324, 0
      %v465 = vsel %vm400, %v325, 0
      %v468 = vsel %vm400, %v326, 0
      %v471 = vsel %vm400, %v327, 0
      %v474 = vsel %vm400, %v328, 0
      %v477 = vsel %vm400, %v329, 0
      %v480 = vsel %vm400, %v330, 0
      %v483 = vsel %vm400, %v331, 0
      %v486 = vsel %vm400, %v332, 0
      %v489 = vsel %vm400, %v333, 0
      %v492 = vsel %vm400, %v334, 0
      %v495 = vsel %vm400, %v335, 0
      %v498 = vsel %vm400, %v336, 0
      %v501 = vsel %vm400, %v337, 0
      %v504 = vsel %vm400, %v338, 0
      %v507 = vsel %vm400, %v339, 0
      %v510 = vsel %vm400, %v340, 0
      %v513 = vsel %vm400, %v341, 0
      %v516 = vsel %vm400, %v342, 0
      %v519 = vsel %vm400, %v343, 0
      %v522 = vsel %vm400, %v344, 0
      %v525 = vsel %vm400, %v345, 0
      %v528 = vsel %vm400, %v346, 0
      %v531 = vsel %vm400, %v347, 0
      %v534 = vsel %vm400, %v348, 0
      %v537 = vsel %vm400, %v349, 0
      %v540 = vsel %vm400, %v350, 0
      %v543 = vsel %vm400, %v351, 0
      %v546 = vsel %vm400, %v352, 0
      %v549 = vsel %vm400, %v353, 0
      %v552 = vsel %vm400, %v354, 0
      %v555 = vsel %vm400, %v355, 0
      %v558 = vsel %vm400, %v356, 0
      %v561 = vsel %vm400, %v357, 0
      %v564 = vsel %vm400, %v358, 0
      %v567 = vsel %vm400, %v359, 0
      %v570 = vsel %vm400, %v360, 0
      %v573 = vsel %vm400, %v361, 0
      %v576 = vsel %vm400, %v362, 0
      %v579 = vsel %vm400, %v363, 0
      %v582 = vsel %vm400, %v364, 0
      %v585 = vsel %vm400, %v365, 0
      %v588 = vsel %vm400, %v366, 0
      %v591 = vsel %vm400, %v367, 0
      %v594 = vsel %vm400, %v368, 0
      %v597 = vsel %vm400, %v369, 0
      %v600 = vsel %vm400, %v370, 0
      %v603 = vsel %vm400, %v371, 0
      %v606 = vsel %vm400, %v372, 0
      %v609 = vsel %vm400, %v373, 0
      %v612 = vsel %vm400, %v374, 0
      %v615 = vsel %vm400, %v375, 0
      %v618 = vsel %vm400, %v376, 0
      %v621 = vsel %vm400, %v377, 0
      %v624 = vsel %vm400, %v378, 0
      %v627 = vsel %vm400, %v379, 0
      %v630 = vsel %vm400, %v380, 0
      %v633 = vsel %vm400, %v381, 0
      %v636 = vsel %vm400, %v382, 0
      %v639 = vsel %vm400, %v383, 0
      %v642 = vsel %vm400, %v384, 0
      %v645 = vsel %vm400, %v385, 0
      %v648 = vsel %vm400, %v386, 0
      %v651 = vsel %vm400, %v387, 0
      %v654 = vsel %vm400, %v388, 0
      %v657 = vsel %vm400, %v389, 0
      %v660 = vsel %vm400, %v390, 0
      %v663 = vsel %vm400, %v391, 0
      %v666 = vsel %vm400, %v392, 0
      %v669 = vsel %vm400, %v393, 0
      %v672 = vsel %vm400, %v394, 0
      %v675 = vsel %vm400, %v395, 0
      %v678 = vsel %vm400, %v396, 0
      %v681 = vsel %vm400, %v397, 0
      %v684 = vsel %vm400, %v398, 0
      %v687 = vsel %vm400, %v399, 0
      %689 = vmatprep.subr.mxu0 0.0
      %690 = vmatpush1.xpose.msra.mxu0 %v498
      %691 = vmatprep.subr.mxu0 0.0
      %692 = vmatpush1.xpose.msra.mxu0 %v501
      %693 = vmatprep.subr.mxu0 0.0
      %694 = vmatpush1.xpose.msra.mxu0 %v504
      %695 = vmatprep.subr.mxu0 0.0
      %696 = vmatpush1.xpose.msra.mxu0 %v507
      %697 = vmatprep.subr.mxu0 0.0
      %698 = vmatpush1.xpose.msra.mxu0 %v510
      %699 = vmatprep.subr.mxu0 0.0
      %700 = vmatpush1.xpose.msra.mxu0 %v513
      %701 = vmatprep.subr.mxu0 0.0
      %702 = vmatpush1.xpose.msra.mxu0 %v516
      %703 = vmatprep.subr.mxu0 0.0
      %704 = vmatpush1.xpose.msra.mxu0 %v519
      %705 = vmatprep.subr.mxu0 0.0
      %706 = vmatpush1.xpose.msra.mxu0 %v522
      %707 = vmatprep.subr.mxu0 0.0
      %708 = vmatpush1.xpose.msra.mxu0 %v525
      %709 = vmatprep.subr.mxu0 0.0
      %710 = vmatpush1.xpose.msra.mxu0 %v528
      %711 = vmatprep.subr.mxu0 0.0
      %712 = vmatpush1.xpose.msra.mxu0 %v531
      %713 = vmatprep.subr.mxu0 0.0
      %714 = vmatpush1.xpose.msra.mxu0 %v534
      %715 = vmatprep.subr.mxu0 0.0
      %716 = vmatpush1.xpose.msra.mxu0 %v537
      %717 = vmatprep.subr.mxu0 0.0
      %718 = vmatpush1.xpose.msra.mxu0 %v540
      %719 = vmatprep.subr.mxu0 0.0
      %720 = vmatpush1.xpose.msra.mxu0 %v543
      %721 = vmatprep.subr.mxu0 0.0
      %722 = vmatpush1.xpose.msra.mxu0 %v546
      %723 = vmatprep.subr.mxu0 0.0
      %724 = vmatpush1.xpose.msra.mxu0 %v549
      %725 = vmatprep.subr.mxu0 0.0
      %726 = vmatpush1.xpose.msra.mxu0 %v552
      %727 = vmatprep.subr.mxu0 0.0
      %728 = vmatpush1.xpose.msra.mxu0 %v555
      %729 = vmatprep.subr.mxu0 0.0
      %730 = vmatpush1.xpose.msra.mxu0 %v558
      %731 = vmatprep.subr.mxu0 0.0
      %732 = vmatpush1.xpose.msra.mxu0 %v561
      %733 = vmatprep.subr.mxu0 0.0
      %734 = vmatpush1.xpose.msra.mxu0 %v564
      %735 = vmatprep.subr.mxu0 0.0
      %736 = vmatpush1.xpose.msra.mxu0 %v567
      %737 = vmatprep.subr.mxu0 0.0
      %738 = vmatpush1.xpose.msra.mxu0 %v570
      %739 = vmatprep.subr.mxu0 0.0
      %740 = vmatpush1.xpose.msra.mxu0 %v573
      %741 = vmatprep.subr.mxu0 0.0
      %742 = vmatpush1.xpose.msra.mxu0 %v576
      %743 = vmatprep.subr.mxu0 0.0
      %744 = vmatpush1.xpose.msra.mxu0 %v579
      %745 = vmatprep.subr.mxu0 0.0
      %746 = vmatpush1.xpose.msra.mxu0 %v582
      %747 = vmatprep.subr.mxu0 0.0
      %748 = vmatpush1.xpose.msra.mxu0 %v585
      %749 = vmatprep.subr.mxu0 0.0
      %750 = vmatpush1.xpose.msra.mxu0 %v588
      %751 = vmatprep.subr.mxu0 0.0
      %752 = vmatpush1.xpose.msra.mxu0 %v591
      %753 = vmatprep.mubr.f32.mxu0 0.0
      %754 = vmatmul.mubr.f32.gmra.mrb[0].mxu0 %v402
      %v755 = vpop.f32.mrb[0].mxu0
      %v756 = vadd.f32 0.0, %v755
      %v757 = vpop.f32.mrb[0].mxu0
      %v758 = vadd.f32 0.0, %v757
      %759 = vmatprep.mubr.f32.mxu0 0.0
      %760 = vmatmul.mubr.f32.gmra.mrb[0].mxu0 %v405
      %v761 = vpop.f32.mrb[0].mxu0
      %v762 = vadd.f32 0.0, %v761
      %v763 = vpop.f32.mrb[0].mxu0
      %v764 = vadd.f32 0.0, %v763
      %765 = vmatprep.mubr.f32.mxu0 0.0
      %766 = vmatmul.mubr.f32.gmra.mrb[0].mxu0 %v408
      %v767 = vpop.f32.mrb[0].mxu0
      %v768 = vadd.f32 0.0, %v767
      %v769 = vpop.f32.mrb[0].mxu0
      %v770 = vadd.f32 0.0, %v769
      %771 = vmatprep.mubr.f32.mxu0 0.0
      %772 = vmatmul.mubr.f32.gmra.mrb[0].mxu0 %v411
      %v773 = vpop.f32.mrb[0].mxu0
      %v774 = vadd.f32 0.0, %v773
      %v775 = vpop.f32.mrb[0].mxu0
      %v776 = vadd.f32 0.0, %v775
      %777 = vmatprep.mubr.f32.mxu0 0.0
      %778 = vmatmul.mubr.f32.gmra.mrb[0].mxu0 %v414
      %v779 = vpop.f32.mrb[0].mxu0
      %v780 = vadd.f32 0.0, %v779
      %v781 = vpop.f32.mrb[0].mxu0
      %v782 = vadd.f32 0.0, %v781
      %783 = vmatprep.mubr.f32.mxu0 0.0
      %784 = vmatmul.mubr.f32.gmra.mrb[0].mxu0 %v417
      %v785 = vpop.f32.mrb[0].mxu0
      %v786 = vadd.f32 0.0, %v785
      %v787 = vpop.f32.mrb[0].mxu0
      %v788 = vadd.f32 0.0, %v787
      %789 = vmatprep.mubr.f32.mxu0 0.0
      %790 = vmatmul.mubr.f32.gmra.mrb[0].mxu0 %v420
      %v791 = vpop.f32.mrb[0].mxu0
      %v792 = vadd.f32 0.0, %v791
      %v793 = vpop.f32.mrb[0].mxu0
      %v794 = vadd.f32 0.0, %v793
      %795 = vmatprep.mubr.f32.mxu0 0.0
      %796 = vmatmul.mubr.f32.gmra.mrb[0].mxu0 %v423
      %v797 = vpop.f32.mrb[0].mxu0
      %v798 = vadd.f32 0.0, %v797
      %v799 = vpop.f32.mrb[0].mxu0
      %v800 = vadd.f32 0.0, %v799
      %801 = vmatprep.mubr.f32.mxu0 0.0
      %802 = vmatmul.mubr.f32.gmra.mrb[0].mxu0 %v426
      %v803 = vpop.f32.mrb[0].mxu0
      %v804 = vadd.f32 0.0, %v803
      %v805 = vpop.f32.mrb[0].mxu0
      %v806 = vadd.f32 0.0, %v805
      %807 = vmatprep.mubr.f32.mxu0 0.0
      %808 = vmatmul.mubr.f32.gmra.mrb[0].mxu0 %v429
      %v809 = vpop.f32.mrb[0].mxu0
      %v810 = vadd.f32 0.0, %v809
      %v811 = vpop.f32.mrb[0].mxu0
      %v812 = vadd.f32 0.0, %v811
      %813 = vmatprep.mubr.f32.mxu0 0.0
      %814 = vmatmul.mubr.f32.gmra.mrb[0].mxu0 %v432
      %v815 = vpop.f32.mrb[0].mxu0
      %v816 = vadd.f32 0.0, %v815
      %v817 = vpop.f32.mrb[0].mxu0
      %v818 = vadd.f32 0.0, %v817
      %819 = vmatprep.mubr.f32.mxu0 0.0
      %820 = vmatmul.mubr.f32.gmra.mrb[0].mxu0 %v435
      %v821 = vpop.f32.mrb[0].mxu0
      %v822 = vadd.f32 0.0, %v821
      %v823 = vpop.f32.mrb[0].mxu0
      %v824 = vadd.f32 0.0, %v823
      %825 = vmatprep.mubr.f32.mxu0 0.0
      %826 = vmatmul.mubr.f32.gmra.mrb[0].mxu0 %v438
      %v827 = vpop.f32.mrb[0].mxu0
      %v828 = vadd.f32 0.0, %v827
      %v829 = vpop.f32.mrb[0].mxu0
      %v830 = vadd.f32 0.0, %v829
      %831 = vmatprep.mubr.f32.mxu0 0.0
      %832 = vmatmul.mubr.f32.gmra.mrb[0].mxu0 %v441
      %v833 = vpop.f32.mrb[0].mxu0
      %v834 = vadd.f32 0.0, %v833
      %v835 = vpop.f32.mrb[0].mxu0
      %v836 = vadd.f32 0.0, %v835
      %837 = vmatprep.mubr.f32.mxu0 0.0
      %838 = vmatmul.mubr.f32.gmra.mrb[0].mxu0 %v444
      %v839 = vpop.f32.mrb[0].mxu0
      %v840 = vadd.f32 0.0, %v839
      %v841 = vpop.f32.mrb[0].mxu0
      %v842 = vadd.f32 0.0, %v841
      %843 = vmatprep.mubr.f32.mxu0 0.0
      %844 = vmatmul.mubr.f32.gmra.mrb[0].mxu0 %v447
      %v845 = vpop.f32.mrb[0].mxu0
      %v846 = vadd.f32 0.0, %v845
      %v847 = vpop.f32.mrb[0].mxu0
      %v848 = vadd.f32 0.0, %v847
      %849 = vmatprep.mubr.f32.mxu0 0.0
      %850 = vmatmul.mubr.f32.gmra.mrb[0].mxu0 %v450
      %v851 = vpop.f32.mrb[0].mxu0
      %v852 = vadd.f32 0.0, %v851
      %v853 = vpop.f32.mrb[0].mxu0
      %v854 = vadd.f32 0.0, %v853
      %855 = vmatprep.mubr.f32.mxu0 0.0
      %856 = vmatmul.mubr.f32.gmra.mrb[0].mxu0 %v453
      %v857 = vpop.f32.mrb[0].mxu0
      %v858 = vadd.f32 0.0, %v857
      %v859 = vpop.f32.mrb[0].mxu0
      %v860 = vadd.f32 0.0, %v859
      %861 = vmatprep.mubr.f32.mxu0 0.0
      %862 = vmatmul.mubr.f32.gmra.mrb[0].mxu0 %v456
      %v863 = vpop.f32.mrb[0].mxu0
      %v864 = vadd.f32 0.0, %v863
      %v865 = vpop.f32.mrb[0].mxu0
      %v866 = vadd.f32 0.0, %v865
      %867 = vmatprep.mubr.f32.mxu0 0.0
      %868 = vmatmul.mubr.f32.gmra.mrb[0].mxu0 %v459
      %v869 = vpop.f32.mrb[0].mxu0
      %v870 = vadd.f32 0.0, %v869
      %v871 = vpop.f32.mrb[0].mxu0
      %v872 = vadd.f32 0.0, %v871
      %873 = vmatprep.mubr.f32.mxu0 0.0
      %874 = vmatmul.mubr.f32.gmra.mrb[0].mxu0 %v462
      %v875 = vpop.f32.mrb[0].mxu0
      %v876 = vadd.f32 0.0, %v875
      %v877 = vpop.f32.mrb[0].mxu0
      %v878 = vadd.f32 0.0, %v877
      %879 = vmatprep.mubr.f32.mxu0 0.0
      %880 = vmatmul.mubr.f32.gmra.mrb[0].mxu0 %v465
      %v881 = vpop.f32.mrb[0].mxu0
      %v882 = vadd.f32 0.0, %v881
      %v883 = vpop.f32.mrb[0].mxu0
      %v884 = vadd.f32 0.0, %v883
      %885 = vmatprep.mubr.f32.mxu0 0.0
      %886 = vmatmul.mubr.f32.gmra.mrb[0].mxu0 %v468
      %v887 = vpop.f32.mrb[0].mxu0
      %v888 = vadd.f32 0.0, %v887
      %v889 = vpop.f32.mrb[0].mxu0
      %v890 = vadd.f32 0.0, %v889
      %891 = vmatprep.mubr.f32.mxu0 0.0
      %892 = vmatmul.mubr.f32.gmra.mrb[0].mxu0 %v471
      %v893 = vpop.f32.mrb[0].mxu0
      %v894 = vadd.f32 0.0, %v893
      %v895 = vpop.f32.mrb[0].mxu0
      %v896 = vadd.f32 0.0, %v895
      %897 = vmatprep.mubr.f32.mxu0 0.0
      %898 = vmatmul.mubr.f32.gmra.mrb[0].mxu0 %v474
      %v899 = vpop.f32.mrb[0].mxu0
      %v900 = vadd.f32 0.0, %v899
      %v901 = vpop.f32.mrb[0].mxu0
      %v902 = vadd.f32 0.0, %v901
      %903 = vmatprep.mubr.f32.mxu0 0.0
      %904 = vmatmul.mubr.f32.gmra.mrb[0].mxu0 %v477
      %v905 = vpop.f32.mrb[0].mxu0
      %v906 = vadd.f32 0.0, %v905
      %v907 = vpop.f32.mrb[0].mxu0
      %v908 = vadd.f32 0.0, %v907
      %909 = vmatprep.mubr.f32.mxu0 0.0
      %910 = vmatmul.mubr.f32.gmra.mrb[0].mxu0 %v480
      %v911 = vpop.f32.mrb[0].mxu0
      %v912 = vadd.f32 0.0, %v911
      %v913 = vpop.f32.mrb[0].mxu0
      %v914 = vadd.f32 0.0, %v913
      %915 = vmatprep.mubr.f32.mxu0 0.0
      %916 = vmatmul.mubr.f32.gmra.mrb[0].mxu0 %v483
      %v917 = vpop.f32.mrb[0].mxu0
      %v918 = vadd.f32 0.0, %v917
      %v919 = vpop.f32.mrb[0].mxu0
      %v920 = vadd.f32 0.0, %v919
      %921 = vmatprep.mubr.f32.mxu0 0.0
      %922 = vmatmul.mubr.f32.gmra.mrb[0].mxu0 %v486
      %v923 = vpop.f32.mrb[0].mxu0
      %v924 = vadd.f32 0.0, %v923
      %v925 = vpop.f32.mrb[0].mxu0
      %v926 = vadd.f32 0.0, %v925
      %927 = vmatprep.mubr.f32.mxu0 0.0
      %928 = vmatmul.mubr.f32.gmra.mrb[0].mxu0 %v489
      %v929 = vpop.f32.mrb[0].mxu0
      %v930 = vadd.f32 0.0, %v929
      %v931 = vpop.f32.mrb[0].mxu0
      %v932 = vadd.f32 0.0, %v931
      %933 = vmatprep.mubr.f32.mxu0 0.0
      %934 = vmatmul.mubr.f32.gmra.mrb[0].mxu0 %v492
      %v935 = vpop.f32.mrb[0].mxu0
      %v936 = vadd.f32 0.0, %v935
      %v937 = vpop.f32.mrb[0].mxu0
      %v938 = vadd.f32 0.0, %v937
      %939 = vmatprep.mubr.f32.mxu0 0.0
      %940 = vmatmul.mubr.f32.gmra.mrb[0].mxu0 %v495
      %v941 = vpop.f32.mrb[0].mxu0
      %v942 = vadd.f32 0.0, %v941
      %v943 = vpop.f32.mrb[0].mxu0
      %v944 = vadd.f32 0.0, %v943
      %945 = vdwg.mxu0
      %946 = vmatprep.subr.mxu0 0.0
      %947 = vmatpush1.xpose.msra.mxu0 %v594
      %948 = vmatprep.subr.mxu0 0.0
      %949 = vmatpush1.xpose.msra.mxu0 %v597
      %950 = vmatprep.subr.mxu0 0.0
      %951 = vmatpush1.xpose.msra.mxu0 %v600
      %952 = vmatprep.subr.mxu0 0.0
      %953 = vmatpush1.xpose.msra.mxu0 %v603
      %954 = vmatprep.subr.mxu0 0.0
      %955 = vmatpush1.xpose.msra.mxu0 %v606
      %956 = vmatprep.subr.mxu0 0.0
      %957 = vmatpush1.xpose.msra.mxu0 %v609
      %958 = vmatprep.subr.mxu0 0.0
      %959 = vmatpush1.xpose.msra.mxu0 %v612
      %960 = vmatprep.subr.mxu0 0.0
      %961 = vmatpush1.xpose.msra.mxu0 %v615
      %962 = vmatprep.subr.mxu0 0.0
      %963 = vmatpush1.xpose.msra.mxu0 %v618
      %964 = vmatprep.subr.mxu0 0.0
      %965 = vmatpush1.xpose.msra.mxu0 %v621
      %966 = vmatprep.subr.mxu0 0.0
      %967 = vmatpush1.xpose.msra.mxu0 %v624
      %968 = vmatprep.subr.mxu0 0.0
      %969 = vmatpush1.xpose.msra.mxu0 %v627
      %970 = vmatprep.subr.mxu0 0.0
      %971 = vmatpush1.xpose.msra.mxu0 %v630
      %972 = vmatprep.subr.mxu0 0.0
      %973 = vmatpush1.xpose.msra.mxu0 %v633
      %974 = vmatprep.subr.mxu0 0.0
      %975 = vmatpush1.xpose.msra.mxu0 %v636
      %976 = vmatprep.subr.mxu0 0.0
      %977 = vmatpush1.xpose.msra.mxu0 %v639
      %978 = vmatprep.subr.mxu0 0.0
      %979 = vmatpush1.xpose.msra.mxu0 %v642
      %980 = vmatprep.subr.mxu0 0.0
      %981 = vmatpush1.xpose.msra.mxu0 %v645
      %982 = vmatprep.subr.mxu0 0.0
      %983 = vmatpush1.xpose.msra.mxu0 %v648
      %984 = vmatprep.subr.mxu0 0.0
      %985 = vmatpush1.xpose.msra.mxu0 %v651
      %986 = vmatprep.subr.mxu0 0.0
      %987 = vmatpush1.xpose.msra.mxu0 %v654
      %988 = vmatprep.subr.mxu0 0.0
      %989 = vmatpush1.xpose.msra.mxu0 %v657
      %990 = vmatprep.subr.mxu0 0.0
      %991 = vmatpush1.xpose.msra.mxu0 %v660
      %992 = vmatprep.subr.mxu0 0.0
      %993 = vmatpush1.xpose.msra.mxu0 %v663
      %994 = vmatprep.subr.mxu0 0.0
      %995 = vmatpush1.xpose.msra.mxu0 %v666
      %996 = vmatprep.subr.mxu0 0.0
      %997 = vmatpush1.xpose.msra.mxu0 %v669
      %998 = vmatprep.subr.mxu0 0.0
      %999 = vmatpush1.xpose.msra.mxu0 %v672
      %1000 = vmatprep.subr.mxu0 0.0
      %1001 = vmatpush1.xpose.msra.mxu0 %v675
      %1002 = vmatprep.subr.mxu0 0.0
      %1003 = vmatpush1.xpose.msra.mxu0 %v678
      %1004 = vmatprep.subr.mxu0 0.0
      %1005 = vmatpush1.xpose.msra.mxu0 %v681
      %1006 = vmatprep.subr.mxu0 0.0
      %1007 = vmatpush1.xpose.msra.mxu0 %v684
      %1008 = vmatprep.subr.mxu0 0.0
      %1009 = vmatpush1.xpose.msra.mxu0 %v687
      %1010 = vmatprep.mubr.f32.mxu0 0.0
      %1011 = vmatmul.mubr.f32.gmra.mrb[0].mxu0 %v402
      %v1012 = vpop.f32.mrb[0].mxu0
      %v1013 = vadd.f32 0.0, %v1012
      %v1014 = vpop.f32.mrb[0].mxu0
      %v1015 = vadd.f32 0.0, %v1014
      %1016 = vmatprep.mubr.f32.mxu0 0.0
      %1017 = vmatmul.mubr.f32.gmra.mrb[0].mxu0 %v405
      %v1018 = vpop.f32.mrb[0].mxu0
      %v1019 = vadd.f32 0.0, %v1018
      %v1020 = vpop.f32.mrb[0].mxu0
      %v1021 = vadd.f32 0.0, %v1020
      %1022 = vmatprep.mubr.f32.mxu0 0.0
      %1023 = vmatmul.mubr.f32.gmra.mrb[0].mxu0 %v408
      %v1024 = vpop.f32.mrb[0].mxu0
      %v1025 = vadd.f32 0.0, %v1024
      %v1026 = vpop.f32.mrb[0].mxu0
      %v1027 = vadd.f32 0.0, %v1026
      %1028 = vmatprep.mubr.f32.mxu0 0.0
      %1029 = vmatmul.mubr.f32.gmra.mrb[0].mxu0 %v411
      %v1030 = vpop.f32.mrb[0].mxu0
      %v1031 = vadd.f32 0.0, %v1030
      %v1032 = vpop.f32.mrb[0].mxu0
      %v1033 = vadd.f32 0.0, %v1032
      %1034 = vmatprep.mubr.f32.mxu0 0.0
      %1035 = vmatmul.mubr.f32.gmra.mrb[0].mxu0 %v414
      %v1036 = vpop.f32.mrb[0].mxu0
      %v1037 = vadd.f32 0.0, %v1036
      %v1038 = vpop.f32.mrb[0].mxu0
      %v1039 = vadd.f32 0.0, %v1038
      %1040 = vmatprep.mubr.f32.mxu0 0.0
      %1041 = vmatmul.mubr.f32.gmra.mrb[0].mxu0 %v417
      %v1042 = vpop.f32.mrb[0].mxu0
      %v1043 = vadd.f32 0.0, %v1042
      %v1044 = vpop.f32.mrb[0].mxu0
      %v1045 = vadd.f32 0.0, %v1044
      %1046 = vmatprep.mubr.f32.mxu0 0.0
      %1047 = vmatmul.mubr.f32.gmra.mrb[0].mxu0 %v420
      %v1048 = vpop.f32.mrb[0].mxu0
      %v1049 = vadd.f32 0.0, %v1048
      %v1050 = vpop.f32.mrb[0].mxu0
      %v1051 = vadd.f32 0.0, %v1050
      %1052 = vmatprep.mubr.f32.mxu0 0.0
      %1053 = vmatmul.mubr.f32.gmra.mrb[0].mxu0 %v423
      %v1054 = vpop.f32.mrb[0].mxu0
      %v1055 = vadd.f32 0.0, %v1054
      %v1056 = vpop.f32.mrb[0].mxu0
      %v1057 = vadd.f32 0.0, %v1056
      %1058 = vmatprep.mubr.f32.mxu0 0.0
      %1059 = vmatmul.mubr.f32.gmra.mrb[0].mxu0 %v426
      %v1060 = vpop.f32.mrb[0].mxu0
      %v1061 = vadd.f32 0.0, %v1060
      %v1062 = vpop.f32.mrb[0].mxu0
      %v1063 = vadd.f32 0.0, %v1062
      %1064 = vmatprep.mubr.f32.mxu0 0.0
      %1065 = vmatmul.mubr.f32.gmra.mrb[0].mxu0 %v429
      %v1066 = vpop.f32.mrb[0].mxu0
      %v1067 = vadd.f32 0.0, %v1066
      %v1068 = vpop.f32.mrb[0].mxu0
      %v1069 = vadd.f32 0.0, %v1068
      %1070 = vmatprep.mubr.f32.mxu0 0.0
      %1071 = vmatmul.mubr.f32.gmra.mrb[0].mxu0 %v432
      %v1072 = vpop.f32.mrb[0].mxu0
      %v1073 = vadd.f32 0.0, %v1072
      %v1074 = vpop.f32.mrb[0].mxu0
      %v1075 = vadd.f32 0.0, %v1074
      %1076 = vmatprep.mubr.f32.mxu0 0.0
      %1077 = vmatmul.mubr.f32.gmra.mrb[0].mxu0 %v435
      %v1078 = vpop.f32.mrb[0].mxu0
      %v1079 = vadd.f32 0.0, %v1078
      %v1080 = vpop.f32.mrb[0].mxu0
      %v1081 = vadd.f32 0.0, %v1080
      %1082 = vmatprep.mubr.f32.mxu0 0.0
      %1083 = vmatmul.mubr.f32.gmra.mrb[0].mxu0 %v438
      %v1084 = vpop.f32.mrb[0].mxu0
      %v1085 = vadd.f32 0.0, %v1084
      %v1086 = vpop.f32.mrb[0].mxu0
      %v1087 = vadd.f32 0.0, %v1086
      %1088 = vmatprep.mubr.f32.mxu0 0.0
      %1089 = vmatmul.mubr.f32.gmra.mrb[0].mxu0 %v441
      %v1090 = vpop.f32.mrb[0].mxu0
      %v1091 = vadd.f32 0.0, %v1090
      %v1092 = vpop.f32.mrb[0].mxu0
      %v1093 = vadd.f32 0.0, %v1092
      %1094 = vmatprep.mubr.f32.mxu0 0.0
      %1095 = vmatmul.mubr.f32.gmra.mrb[0].mxu0 %v444
      %v1096 = vpop.f32.mrb[0].mxu0
      %v1097 = vadd.f32 0.0, %v1096
      %v1098 = vpop.f32.mrb[0].mxu0
      %v1099 = vadd.f32 0.0, %v1098
      %1100 = vmatprep.mubr.f32.mxu0 0.0
      %1101 = vmatmul.mubr.f32.gmra.mrb[0].mxu0 %v447
      %v1102 = vpop.f32.mrb[0].mxu0
      %v1103 = vadd.f32 0.0, %v1102
      %v1104 = vpop.f32.mrb[0].mxu0
      %v1105 = vadd.f32 0.0, %v1104
      %1106 = vmatprep.mubr.f32.mxu0 0.0
      %1107 = vmatmul.mubr.f32.gmra.mrb[0].mxu0 %v450
      %v1108 = vpop.f32.mrb[0].mxu0
      %v1109 = vadd.f32 0.0, %v1108
      %v1110 = vpop.f32.mrb[0].mxu0
      %v1111 = vadd.f32 0.0, %v1110
      %1112 = vmatprep.mubr.f32.mxu0 0.0
      %1113 = vmatmul.mubr.f32.gmra.mrb[0].mxu0 %v453
      %v1114 = vpop.f32.mrb[0].mxu0
      %v1115 = vadd.f32 0.0, %v1114
      %v1116 = vpop.f32.mrb[0].mxu0
      %v1117 = vadd.f32 0.0, %v1116
      %1118 = vmatprep.mubr.f32.mxu0 0.0
      %1119 = vmatmul.mubr.f32.gmra.mrb[0].mxu0 %v456
      %v1120 = vpop.f32.mrb[0].mxu0
      %v1121 = vadd.f32 0.0, %v1120
      %v1122 = vpop.f32.mrb[0].mxu0
      %v1123 = vadd.f32 0.0, %v1122
      %1124 = vmatprep.mubr.f32.mxu0 0.0
      %1125 = vmatmul.mubr.f32.gmra.mrb[0].mxu0 %v459
      %v1126 = vpop.f32.mrb[0].mxu0
      %v1127 = vadd.f32 0.0, %v1126
      %v1128 = vpop.f32.mrb[0].mxu0
      %v1129 = vadd.f32 0.0, %v1128
      %1130 = vmatprep.mubr.f32.mxu0 0.0
      %1131 = vmatmul.mubr.f32.gmra.mrb[0].mxu0 %v462
      %v1132 = vpop.f32.mrb[0].mxu0
      %v1133 = vadd.f32 0.0, %v1132
      %v1134 = vpop.f32.mrb[0].mxu0
      %v1135 = vadd.f32 0.0, %v1134
      %1136 = vmatprep.mubr.f32.mxu0 0.0
      %1137 = vmatmul.mubr.f32.gmra.mrb[0].mxu0 %v465
      %v1138 = vpop.f32.mrb[0].mxu0
      %v1139 = vadd.f32 0.0, %v1138
      %v1140 = vpop.f32.mrb[0].mxu0
      %v1141 = vadd.f32 0.0, %v1140
      %1142 = vmatprep.mubr.f32.mxu0 0.0
      %1143 = vmatmul.mubr.f32.gmra.mrb[0].mxu0 %v468
      %v1144 = vpop.f32.mrb[0].mxu0
      %v1145 = vadd.f32 0.0, %v1144
      %v1146 = vpop.f32.mrb[0].mxu0
      %v1147 = vadd.f32 0.0, %v1146
      %1148 = vmatprep.mubr.f32.mxu0 0.0
      %1149 = vmatmul.mubr.f32.gmra.mrb[0].mxu0 %v471
      %v1150 = vpop.f32.mrb[0].mxu0
      %v1151 = vadd.f32 0.0, %v1150
      %v1152 = vpop.f32.mrb[0].mxu0
      %v1153 = vadd.f32 0.0, %v1152
      %1154 = vmatprep.mubr.f32.mxu0 0.0
      %1155 = vmatmul.mubr.f32.gmra.mrb[0].mxu0 %v474
      %v1156 = vpop.f32.mrb[0].mxu0
      %v1157 = vadd.f32 0.0, %v1156
      %v1158 = vpop.f32.mrb[0].mxu0
      %v1159 = vadd.f32 0.0, %v1158
      %1160 = vmatprep.mubr.f32.mxu0 0.0
      %1161 = vmatmul.mubr.f32.gmra.mrb[0].mxu0 %v477
      %v1162 = vpop.f32.mrb[0].mxu0
      %v1163 = vadd.f32 0.0, %v1162
      %v1164 = vpop.f32.mrb[0].mxu0
      %v1165 = vadd.f32 0.0, %v1164
      %1166 = vmatprep.mubr.f32.mxu0 0.0
      %1167 = vmatmul.mubr.f32.gmra.mrb[0].mxu0 %v480
      %v1168 = vpop.f32.mrb[0].mxu0
      %v1169 = vadd.f32 0.0, %v1168
      %v1170 = vpop.f32.mrb[0].mxu0
      %v1171 = vadd.f32 0.0, %v1170
      %1172 = vmatprep.mubr.f32.mxu0 0.0
      %1173 = vmatmul.mubr.f32.gmra.mrb[0].mxu0 %v483
      %v1174 = vpop.f32.mrb[0].mxu0
      %v1175 = vadd.f32 0.0, %v1174
      %v1176 = vpop.f32.mrb[0].mxu0
      %v1177 = vadd.f32 0.0, %v1176
      %1178 = vmatprep.mubr.f32.mxu0 0.0
      %1179 = vmatmul.mubr.f32.gmra.mrb[0].mxu0 %v486
      %v1180 = vpop.f32.mrb[0].mxu0
      %v1181 = vadd.f32 0.0, %v1180
      %v1182 = vpop.f32.mrb[0].mxu0
      %v1183 = vadd.f32 0.0, %v1182
      %1184 = vmatprep.mubr.f32.mxu0 0.0
      %1185 = vmatmul.mubr.f32.gmra.mrb[0].mxu0 %v489
      %v1186 = vpop.f32.mrb[0].mxu0
      %v1187 = vadd.f32 0.0, %v1186
      %v1188 = vpop.f32.mrb[0].mxu0
      %v1189 = vadd.f32 0.0, %v1188
      %1190 = vmatprep.mubr.f32.mxu0 0.0
      %1191 = vmatmul.mubr.f32.gmra.mrb[0].mxu0 %v492
      %v1192 = vpop.f32.mrb[0].mxu0
      %v1193 = vadd.f32 0.0, %v1192
      %v1194 = vpop.f32.mrb[0].mxu0
      %v1195 = vadd.f32 0.0, %v1194
      %1196 = vmatprep.mubr.f32.mxu0 0.0
      %1197 = vmatmul.mubr.f32.gmra.mrb[0].mxu0 %v495
      %v1198 = vpop.f32.mrb[0].mxu0
      %v1199 = vadd.f32 0.0, %v1198
      %v1200 = vpop.f32.mrb[0].mxu0
      %v1201 = vadd.f32 0.0, %v1200
      %1202 = vdwg.mxu0
      %v1203 = vld [vmem:[%s2] sm:$0xf]
      %v1205 = vlaneseq
      %v1206 = vshrl.u32 %v1205, 7
      %v1207 = vsub.s32 0, %v1206
      %v1208 = vrot.slane %v1203, %v1207
      %v1209 = vlaneseq
      %v1210 = vshrl.u32 %v1209, 7
      %v1211 = vsub.s32 1, %v1210
      %v1212 = vrot.slane %v1203, %v1211
      %v1213 = vlaneseq
      %v1214 = vshrl.u32 %v1213, 7
      %v1215 = vsub.s32 2, %v1214
      %v1216 = vrot.slane %v1203, %v1215
      %v1217 = vlaneseq
      %v1218 = vshrl.u32 %v1217, 7
      %v1219 = vsub.s32 3, %v1218
      %v1220 = vrot.slane %v1203, %v1219
      %v1225 = vsub.f32 %v756, %v1208
      %v1226 = vsub.f32 %v758, %v1212
      %v1227 = vsub.f32 %v1013, %v1216
      %v1228 = vsub.f32 %v1015, %v1220
      %v1229 = vsub.f32 %v762, %v1208
      %v1230 = vsub.f32 %v764, %v1212
      %v1231 = vsub.f32 %v1019, %v1216
      %v1232 = vsub.f32 %v1021, %v1220
      %v1233 = vsub.f32 %v768, %v1208
      %v1234 = vsub.f32 %v770, %v1212
      %v1235 = vsub.f32 %v1025, %v1216
      %v1236 = vsub.f32 %v1027, %v1220
      %v1237 = vsub.f32 %v774, %v1208
      %v1238 = vsub.f32 %v776, %v1212
      %v1239 = vsub.f32 %v1031, %v1216
      %v1240 = vsub.f32 %v1033, %v1220
      %v1241 = vsub.f32 %v780, %v1208
      %v1242 = vsub.f32 %v782, %v1212
      %v1243 = vsub.f32 %v1037, %v1216
      %v1244 = vsub.f32 %v1039, %v1220
      %v1245 = vsub.f32 %v786, %v1208
      %v1246 = vsub.f32 %v788, %v1212
      %v1247 = vsub.f32 %v1043, %v1216
      %v1248 = vsub.f32 %v1045, %v1220
      %v1249 = vsub.f32 %v792, %v1208
      %v1250 = vsub.f32 %v794, %v1212
      %v1251 = vsub.f32 %v1049, %v1216
      %v1252 = vsub.f32 %v1051, %v1220
      %v1253 = vsub.f32 %v798, %v1208
      %v1254 = vsub.f32 %v800, %v1212
      %v1255 = vsub.f32 %v1055, %v1216
      %v1256 = vsub.f32 %v1057, %v1220
      %v1257 = vsub.f32 %v804, %v1208
      %v1258 = vsub.f32 %v806, %v1212
      %v1259 = vsub.f32 %v1061, %v1216
      %v1260 = vsub.f32 %v1063, %v1220
      %v1261 = vsub.f32 %v810, %v1208
      %v1262 = vsub.f32 %v812, %v1212
      %v1263 = vsub.f32 %v1067, %v1216
      %v1264 = vsub.f32 %v1069, %v1220
      %v1265 = vsub.f32 %v816, %v1208
      %v1266 = vsub.f32 %v818, %v1212
      %v1267 = vsub.f32 %v1073, %v1216
      %v1268 = vsub.f32 %v1075, %v1220
      %v1269 = vsub.f32 %v822, %v1208
      %v1270 = vsub.f32 %v824, %v1212
      %v1271 = vsub.f32 %v1079, %v1216
      %v1272 = vsub.f32 %v1081, %v1220
      %v1273 = vsub.f32 %v828, %v1208
      %v1274 = vsub.f32 %v830, %v1212
      %v1275 = vsub.f32 %v1085, %v1216
      %v1276 = vsub.f32 %v1087, %v1220
      %v1277 = vsub.f32 %v834, %v1208
      %v1278 = vsub.f32 %v836, %v1212
      %v1279 = vsub.f32 %v1091, %v1216
      %v1280 = vsub.f32 %v1093, %v1220
      %v1281 = vsub.f32 %v840, %v1208
      %v1282 = vsub.f32 %v842, %v1212
      %v1283 = vsub.f32 %v1097, %v1216
      %v1284 = vsub.f32 %v1099, %v1220
      %v1285 = vsub.f32 %v846, %v1208
      %v1286 = vsub.f32 %v848, %v1212
      %v1287 = vsub.f32 %v1103, %v1216
      %v1288 = vsub.f32 %v1105, %v1220
      %v1289 = vsub.f32 %v852, %v1208
      %v1290 = vsub.f32 %v854, %v1212
      %v1291 = vsub.f32 %v1109, %v1216
      %v1292 = vsub.f32 %v1111, %v1220
      %v1293 = vsub.f32 %v858, %v1208
      %v1294 = vsub.f32 %v860, %v1212
      %v1295 = vsub.f32 %v1115, %v1216
      %v1296 = vsub.f32 %v1117, %v1220
      %v1297 = vsub.f32 %v864, %v1208
      %v1298 = vsub.f32 %v866, %v1212
      %v1299 = vsub.f32 %v1121, %v1216
      %v1300 = vsub.f32 %v1123, %v1220
      %v1301 = vsub.f32 %v870, %v1208
      %v1302 = vsub.f32 %v872, %v1212
      %v1303 = vsub.f32 %v1127, %v1216
      %v1304 = vsub.f32 %v1129, %v1220
      %v1305 = vsub.f32 %v876, %v1208
      %v1306 = vsub.f32 %v878, %v1212
      %v1307 = vsub.f32 %v1133, %v1216
      %v1308 = vsub.f32 %v1135, %v1220
      %v1309 = vsub.f32 %v882, %v1208
      %v1310 = vsub.f32 %v884, %v1212
      %v1311 = vsub.f32 %v1139, %v1216
      %v1312 = vsub.f32 %v1141, %v1220
      %v1313 = vsub.f32 %v888, %v1208
      %v1314 = vsub.f32 %v890, %v1212
      %v1315 = vsub.f32 %v1145, %v1216
      %v1316 = vsub.f32 %v1147, %v1220
      %v1317 = vsub.f32 %v894, %v1208
      %v1318 = vsub.f32 %v896, %v1212
      %v1319 = vsub.f32 %v1151, %v1216
      %v1320 = vsub.f32 %v1153, %v1220
      %v1321 = vsub.f32 %v900, %v1208
      %v1322 = vsub.f32 %v902, %v1212
      %v1323 = vsub.f32 %v1157, %v1216
      %v1324 = vsub.f32 %v1159, %v1220
      %v1325 = vsub.f32 %v906, %v1208
      %v1326 = vsub.f32 %v908, %v1212
      %v1327 = vsub.f32 %v1163, %v1216
      %v1328 = vsub.f32 %v1165, %v1220
      %v1329 = vsub.f32 %v912, %v1208
      %v1330 = vsub.f32 %v914, %v1212
      %v1331 = vsub.f32 %v1169, %v1216
      %v1332 = vsub.f32 %v1171, %v1220
      %v1333 = vsub.f32 %v918, %v1208
      %v1334 = vsub.f32 %v920, %v1212
      %v1335 = vsub.f32 %v1175, %v1216
      %v1336 = vsub.f32 %v1177, %v1220
      %v1337 = vsub.f32 %v924, %v1208
      %v1338 = vsub.f32 %v926, %v1212
      %v1339 = vsub.f32 %v1181, %v1216
      %v1340 = vsub.f32 %v1183, %v1220
      %v1341 = vsub.f32 %v930, %v1208
      %v1342 = vsub.f32 %v932, %v1212
      %v1343 = vsub.f32 %v1187, %v1216
      %v1344 = vsub.f32 %v1189, %v1220
      %v1345 = vsub.f32 %v936, %v1208
      %v1346 = vsub.f32 %v938, %v1212
      %v1347 = vsub.f32 %v1193, %v1216
      %v1348 = vsub.f32 %v1195, %v1220
      %v1349 = vsub.f32 %v942, %v1208
      %v1350 = vsub.f32 %v944, %v1212
      %v1351 = vsub.f32 %v1199, %v1216
      %v1352 = vsub.f32 %v1201, %v1220
      %v1353 = vmax.f32 %v1225, %v1226
      %v1354 = vmax.f32 %v1353, %v1227
      %v1355 = vmax.f32 %v1354, %v1228
      %1356 = vmax.xlane.f32.xlu0 %v1355
      %v1357 = vpop.xlane.xlu0 %1356
      %v1358 = vmax.f32 %v1229, %v1230
      %v1359 = vmax.f32 %v1358, %v1231
      %v1360 = vmax.f32 %v1359, %v1232
      %1361 = vmax.xlane.f32.xlu0 %v1360
      %v1362 = vpop.xlane.xlu0 %1361
      %v1363 = vmax.f32 %v1233, %v1234
      %v1364 = vmax.f32 %v1363, %v1235
      %v1365 = vmax.f32 %v1364, %v1236
      %1366 = vmax.xlane.f32.xlu0 %v1365
      %v1367 = vpop.xlane.xlu0 %1366
      %v1368 = vmax.f32 %v1237, %v1238
      %v1369 = vmax.f32 %v1368, %v1239
      %v1370 = vmax.f32 %v1369, %v1240
      %1371 = vmax.xlane.f32.xlu0 %v1370
      %v1372 = vpop.xlane.xlu0 %1371
      %v1373 = vmax.f32 %v1241, %v1242
      %v1374 = vmax.f32 %v1373, %v1243
      %v1375 = vmax.f32 %v1374, %v1244
      %1376 = vmax.xlane.f32.xlu0 %v1375
      %v1377 = vpop.xlane.xlu0 %1376
      %v1378 = vmax.f32 %v1245, %v1246
      %v1379 = vmax.f32 %v1378, %v1247
      %v1380 = vmax.f32 %v1379, %v1248
      %1381 = vmax.xlane.f32.xlu0 %v1380
      %v1382 = vpop.xlane.xlu0 %1381
      %v1383 = vmax.f32 %v1249, %v1250
      %v1384 = vmax.f32 %v1383, %v1251
      %v1385 = vmax.f32 %v1384, %v1252
      %1386 = vmax.xlane.f32.xlu0 %v1385
      %v1387 = vpop.xlane.xlu0 %1386
      %v1388 = vmax.f32 %v1253, %v1254
      %v1389 = vmax.f32 %v1388, %v1255
      %v1390 = vmax.f32 %v1389, %v1256
      %1391 = vmax.xlane.f32.xlu0 %v1390
      %v1392 = vpop.xlane.xlu0 %1391
      %v1393 = vmax.f32 %v1257, %v1258
      %v1394 = vmax.f32 %v1393, %v1259
      %v1395 = vmax.f32 %v1394, %v1260
      %1396 = vmax.xlane.f32.xlu0 %v1395
      %v1397 = vpop.xlane.xlu0 %1396
      %v1398 = vmax.f32 %v1261, %v1262
      %v1399 = vmax.f32 %v1398, %v1263
      %v1400 = vmax.f32 %v1399, %v1264
      %1401 = vmax.xlane.f32.xlu0 %v1400
      %v1402 = vpop.xlane.xlu0 %1401
      %v1403 = vmax.f32 %v1265, %v1266
      %v1404 = vmax.f32 %v1403, %v1267
      %v1405 = vmax.f32 %v1404, %v1268
      %1406 = vmax.xlane.f32.xlu0 %v1405
      %v1407 = vpop.xlane.xlu0 %1406
      %v1408 = vmax.f32 %v1269, %v1270
      %v1409 = vmax.f32 %v1408, %v1271
      %v1410 = vmax.f32 %v1409, %v1272
      %1411 = vmax.xlane.f32.xlu0 %v1410
      %v1412 = vpop.xlane.xlu0 %1411
      %v1413 = vmax.f32 %v1273, %v1274
      %v1414 = vmax.f32 %v1413, %v1275
      %v1415 = vmax.f32 %v1414, %v1276
      %1416 = vmax.xlane.f32.xlu0 %v1415
      %v1417 = vpop.xlane.xlu0 %1416
      %v1418 = vmax.f32 %v1277, %v1278
      %v1419 = vmax.f32 %v1418, %v1279
      %v1420 = vmax.f32 %v1419, %v1280
      %1421 = vmax.xlane.f32.xlu0 %v1420
      %v1422 = vpop.xlane.xlu0 %1421
      %v1423 = vmax.f32 %v1281, %v1282
      %v1424 = vmax.f32 %v1423, %v1283
      %v1425 = vmax.f32 %v1424, %v1284
      %1426 = vmax.xlane.f32.xlu0 %v1425
      %v1427 = vpop.xlane.xlu0 %1426
      %v1428 = vmax.f32 %v1285, %v1286
      %v1429 = vmax.f32 %v1428, %v1287
      %v1430 = vmax.f32 %v1429, %v1288
      %1431 = vmax.xlane.f32.xlu0 %v1430
      %v1432 = vpop.xlane.xlu0 %1431
      %v1433 = vmax.f32 %v1289, %v1290
      %v1434 = vmax.f32 %v1433, %v1291
      %v1435 = vmax.f32 %v1434, %v1292
      %1436 = vmax.xlane.f32.xlu0 %v1435
      %v1437 = vpop.xlane.xlu0 %1436
      %v1438 = vmax.f32 %v1293, %v1294
      %v1439 = vmax.f32 %v1438, %v1295
      %v1440 = vmax.f32 %v1439, %v1296
      %1441 = vmax.xlane.f32.xlu0 %v1440
      %v1442 = vpop.xlane.xlu0 %1441
      %v1443 = vmax.f32 %v1297, %v1298
      %v1444 = vmax.f32 %v1443, %v1299
      %v1445 = vmax.f32 %v1444, %v1300
      %1446 = vmax.xlane.f32.xlu0 %v1445
      %v1447 = vpop.xlane.xlu0 %1446
      %v1448 = vmax.f32 %v1301, %v1302
      %v1449 = vmax.f32 %v1448, %v1303
      %v1450 = vmax.f32 %v1449, %v1304
      %1451 = vmax.xlane.f32.xlu0 %v1450
      %v1452 = vpop.xlane.xlu0 %1451
      %v1453 = vmax.f32 %v1305, %v1306
      %v1454 = vmax.f32 %v1453, %v1307
      %v1455 = vmax.f32 %v1454, %v1308
      %1456 = vmax.xlane.f32.xlu0 %v1455
      %v1457 = vpop.xlane.xlu0 %1456
      %v1458 = vmax.f32 %v1309, %v1310
      %v1459 = vmax.f32 %v1458, %v1311
      %v1460 = vmax.f32 %v1459, %v1312
      %1461 = vmax.xlane.f32.xlu0 %v1460
      %v1462 = vpop.xlane.xlu0 %1461
      %v1463 = vmax.f32 %v1313, %v1314
      %v1464 = vmax.f32 %v1463, %v1315
      %v1465 = vmax.f32 %v1464, %v1316
      %1466 = vmax.xlane.f32.xlu0 %v1465
      %v1467 = vpop.xlane.xlu0 %1466
      %v1468 = vmax.f32 %v1317, %v1318
      %v1469 = vmax.f32 %v1468, %v1319
      %v1470 = vmax.f32 %v1469, %v1320
      %1471 = vmax.xlane.f32.xlu0 %v1470
      %v1472 = vpop.xlane.xlu0 %1471
      %v1473 = vmax.f32 %v1321, %v1322
      %v1474 = vmax.f32 %v1473, %v1323
      %v1475 = vmax.f32 %v1474, %v1324
      %1476 = vmax.xlane.f32.xlu0 %v1475
      %v1477 = vpop.xlane.xlu0 %1476
      %v1478 = vmax.f32 %v1325, %v1326
      %v1479 = vmax.f32 %v1478, %v1327
      %v1480 = vmax.f32 %v1479, %v1328
      %1481 = vmax.xlane.f32.xlu0 %v1480
      %v1482 = vpop.xlane.xlu0 %1481
      %v1483 = vmax.f32 %v1329, %v1330
      %v1484 = vmax.f32 %v1483, %v1331
      %v1485 = vmax.f32 %v1484, %v1332
      %1486 = vmax.xlane.f32.xlu0 %v1485
      %v1487 = vpop.xlane.xlu0 %1486
      %v1488 = vmax.f32 %v1333, %v1334
      %v1489 = vmax.f32 %v1488, %v1335
      %v1490 = vmax.f32 %v1489, %v1336
      %1491 = vmax.xlane.f32.xlu0 %v1490
      %v1492 = vpop.xlane.xlu0 %1491
      %v1493 = vmax.f32 %v1337, %v1338
      %v1494 = vmax.f32 %v1493, %v1339
      %v1495 = vmax.f32 %v1494, %v1340
      %1496 = vmax.xlane.f32.xlu0 %v1495
      %v1497 = vpop.xlane.xlu0 %1496
      %v1498 = vmax.f32 %v1341, %v1342
      %v1499 = vmax.f32 %v1498, %v1343
      %v1500 = vmax.f32 %v1499, %v1344
      %1501 = vmax.xlane.f32.xlu0 %v1500
      %v1502 = vpop.xlane.xlu0 %1501
      %v1503 = vmax.f32 %v1345, %v1346
      %v1504 = vmax.f32 %v1503, %v1347
      %v1505 = vmax.f32 %v1504, %v1348
      %1506 = vmax.xlane.f32.xlu0 %v1505
      %v1507 = vpop.xlane.xlu0 %1506
      %v1508 = vmax.f32 %v1349, %v1350
      %v1509 = vmax.f32 %v1508, %v1351
      %v1510 = vmax.f32 %v1509, %v1352
      %1511 = vmax.xlane.f32.xlu0 %v1510
      %v1512 = vpop.xlane.xlu0 %1511
      %v1513 = vlaneseq
      %v1514 = vand.u32 %v1513, 127
      %v1515 = vadd.s32 %v1514, 128
      %v1516 = vadd.s32 %v1514, 256
      %v1517 = vadd.s32 %v1514, 384
      %vm1518 = vcmp.ge.f32.partialorder %v1225, %v1357
      %vm1519 = vcmp.ge.f32.partialorder %v1226, %v1357
      %vm1520 = vcmp.ge.f32.partialorder %v1227, %v1357
      %vm1521 = vcmp.ge.f32.partialorder %v1228, %v1357
      %vm1522 = vcmp.ge.f32.partialorder %v1229, %v1362
      %vm1523 = vcmp.ge.f32.partialorder %v1230, %v1362
      %vm1524 = vcmp.ge.f32.partialorder %v1231, %v1362
      %vm1525 = vcmp.ge.f32.partialorder %v1232, %v1362
      %vm1526 = vcmp.ge.f32.partialorder %v1233, %v1367
      %vm1527 = vcmp.ge.f32.partialorder %v1234, %v1367
      %vm1528 = vcmp.ge.f32.partialorder %v1235, %v1367
      %vm1529 = vcmp.ge.f32.partialorder %v1236, %v1367
      %vm1530 = vcmp.ge.f32.partialorder %v1237, %v1372
      %vm1531 = vcmp.ge.f32.partialorder %v1238, %v1372
      %vm1532 = vcmp.ge.f32.partialorder %v1239, %v1372
      %vm1533 = vcmp.ge.f32.partialorder %v1240, %v1372
      %vm1534 = vcmp.ge.f32.partialorder %v1241, %v1377
      %vm1535 = vcmp.ge.f32.partialorder %v1242, %v1377
      %vm1536 = vcmp.ge.f32.partialorder %v1243, %v1377
      %vm1537 = vcmp.ge.f32.partialorder %v1244, %v1377
      %vm1538 = vcmp.ge.f32.partialorder %v1245, %v1382
      %vm1539 = vcmp.ge.f32.partialorder %v1246, %v1382
      %vm1540 = vcmp.ge.f32.partialorder %v1247, %v1382
      %vm1541 = vcmp.ge.f32.partialorder %v1248, %v1382
      %vm1542 = vcmp.ge.f32.partialorder %v1249, %v1387
      %vm1543 = vcmp.ge.f32.partialorder %v1250, %v1387
      %vm1544 = vcmp.ge.f32.partialorder %v1251, %v1387
      %vm1545 = vcmp.ge.f32.partialorder %v1252, %v1387
      %vm1546 = vcmp.ge.f32.partialorder %v1253, %v1392
      %vm1547 = vcmp.ge.f32.partialorder %v1254, %v1392
      %vm1548 = vcmp.ge.f32.partialorder %v1255, %v1392
      %vm1549 = vcmp.ge.f32.partialorder %v1256, %v1392
      %vm1550 = vcmp.ge.f32.partialorder %v1257, %v1397
      %vm1551 = vcmp.ge.f32.partialorder %v1258, %v1397
      %vm1552 = vcmp.ge.f32.partialorder %v1259, %v1397
      %vm1553 = vcmp.ge.f32.partialorder %v1260, %v1397
      %vm1554 = vcmp.ge.f32.partialorder %v1261, %v1402
      %vm1555 = vcmp.ge.f32.partialorder %v1262, %v1402
      %vm1556 = vcmp.ge.f32.partialorder %v1263, %v1402
      %vm1557 = vcmp.ge.f32.partialorder %v1264, %v1402
      %vm1558 = vcmp.ge.f32.partialorder %v1265, %v1407
      %vm1559 = vcmp.ge.f32.partialorder %v1266, %v1407
      %vm1560 = vcmp.ge.f32.partialorder %v1267, %v1407
      %vm1561 = vcmp.ge.f32.partialorder %v1268, %v1407
      %vm1562 = vcmp.ge.f32.partialorder %v1269, %v1412
      %vm1563 = vcmp.ge.f32.partialorder %v1270, %v1412
      %vm1564 = vcmp.ge.f32.partialorder %v1271, %v1412
      %vm1565 = vcmp.ge.f32.partialorder %v1272, %v1412
      %vm1566 = vcmp.ge.f32.partialorder %v1273, %v1417
      %vm1567 = vcmp.ge.f32.partialorder %v1274, %v1417
      %vm1568 = vcmp.ge.f32.partialorder %v1275, %v1417
      %vm1569 = vcmp.ge.f32.partialorder %v1276, %v1417
      %vm1570 = vcmp.ge.f32.partialorder %v1277, %v1422
      %vm1571 = vcmp.ge.f32.partialorder %v1278, %v1422
      %vm1572 = vcmp.ge.f32.partialorder %v1279, %v1422
      %vm1573 = vcmp.ge.f32.partialorder %v1280, %v1422
      %vm1574 = vcmp.ge.f32.partialorder %v1281, %v1427
      %vm1575 = vcmp.ge.f32.partialorder %v1282, %v1427
      %vm1576 = vcmp.ge.f32.partialorder %v1283, %v1427
      %vm1577 = vcmp.ge.f32.partialorder %v1284, %v1427
      %vm1578 = vcmp.ge.f32.partialorder %v1285, %v1432
      %vm1579 = vcmp.ge.f32.partialorder %v1286, %v1432
      %vm1580 = vcmp.ge.f32.partialorder %v1287, %v1432
      %vm1581 = vcmp.ge.f32.partialorder %v1288, %v1432
      %vm1582 = vcmp.ge.f32.partialorder %v1289, %v1437
      %vm1583 = vcmp.ge.f32.partialorder %v1290, %v1437
      %vm1584 = vcmp.ge.f32.partialorder %v1291, %v1437
      %vm1585 = vcmp.ge.f32.partialorder %v1292, %v1437
      %vm1586 = vcmp.ge.f32.partialorder %v1293, %v1442
      %vm1587 = vcmp.ge.f32.partialorder %v1294, %v1442
      %vm1588 = vcmp.ge.f32.partialorder %v1295, %v1442
      %vm1589 = vcmp.ge.f32.partialorder %v1296, %v1442
      %vm1590 = vcmp.ge.f32.partialorder %v1297, %v1447
      %vm1591 = vcmp.ge.f32.partialorder %v1298, %v1447
      %vm1592 = vcmp.ge.f32.partialorder %v1299, %v1447
      %vm1593 = vcmp.ge.f32.partialorder %v1300, %v1447
      %vm1594 = vcmp.ge.f32.partialorder %v1301, %v1452
      %vm1595 = vcmp.ge.f32.partialorder %v1302, %v1452
      %vm1596 = vcmp.ge.f32.partialorder %v1303, %v1452
      %vm1597 = vcmp.ge.f32.partialorder %v1304, %v1452
      %vm1598 = vcmp.ge.f32.partialorder %v1305, %v1457
      %vm1599 = vcmp.ge.f32.partialorder %v1306, %v1457
      %vm1600 = vcmp.ge.f32.partialorder %v1307, %v1457
      %vm1601 = vcmp.ge.f32.partialorder %v1308, %v1457
      %vm1602 = vcmp.ge.f32.partialorder %v1309, %v1462
      %vm1603 = vcmp.ge.f32.partialorder %v1310, %v1462
      %vm1604 = vcmp.ge.f32.partialorder %v1311, %v1462
      %vm1605 = vcmp.ge.f32.partialorder %v1312, %v1462
      %vm1606 = vcmp.ge.f32.partialorder %v1313, %v1467
      %vm1607 = vcmp.ge.f32.partialorder %v1314, %v1467
      %vm1608 = vcmp.ge.f32.partialorder %v1315, %v1467
      %vm1609 = vcmp.ge.f32.partialorder %v1316, %v1467
      %vm1610 = vcmp.ge.f32.partialorder %v1317, %v1472
      %vm1611 = vcmp.ge.f32.partialorder %v1318, %v1472
      %vm1612 = vcmp.ge.f32.partialorder %v1319, %v1472
      %vm1613 = vcmp.ge.f32.partialorder %v1320, %v1472
      %vm1614 = vcmp.ge.f32.partialorder %v1321, %v1477
      %vm1615 = vcmp.ge.f32.partialorder %v1322, %v1477
      %vm1616 = vcmp.ge.f32.partialorder %v1323, %v1477
      %vm1617 = vcmp.ge.f32.partialorder %v1324, %v1477
      %vm1618 = vcmp.ge.f32.partialorder %v1325, %v1482
      %vm1619 = vcmp.ge.f32.partialorder %v1326, %v1482
      %vm1620 = vcmp.ge.f32.partialorder %v1327, %v1482
      %vm1621 = vcmp.ge.f32.partialorder %v1328, %v1482
      %vm1622 = vcmp.ge.f32.partialorder %v1329, %v1487
      %vm1623 = vcmp.ge.f32.partialorder %v1330, %v1487
      %vm1624 = vcmp.ge.f32.partialorder %v1331, %v1487
      %vm1625 = vcmp.ge.f32.partialorder %v1332, %v1487
      %vm1626 = vcmp.ge.f32.partialorder %v1333, %v1492
      %vm1627 = vcmp.ge.f32.partialorder %v1334, %v1492
      %vm1628 = vcmp.ge.f32.partialorder %v1335, %v1492
      %vm1629 = vcmp.ge.f32.partialorder %v1336, %v1492
      %vm1630 = vcmp.ge.f32.partialorder %v1337, %v1497
      %vm1631 = vcmp.ge.f32.partialorder %v1338, %v1497
      %vm1632 = vcmp.ge.f32.partialorder %v1339, %v1497
      %vm1633 = vcmp.ge.f32.partialorder %v1340, %v1497
      %vm1634 = vcmp.ge.f32.partialorder %v1341, %v1502
      %vm1635 = vcmp.ge.f32.partialorder %v1342, %v1502
      %vm1636 = vcmp.ge.f32.partialorder %v1343, %v1502
      %vm1637 = vcmp.ge.f32.partialorder %v1344, %v1502
      %vm1638 = vcmp.ge.f32.partialorder %v1345, %v1507
      %vm1639 = vcmp.ge.f32.partialorder %v1346, %v1507
      %vm1640 = vcmp.ge.f32.partialorder %v1347, %v1507
      %vm1641 = vcmp.ge.f32.partialorder %v1348, %v1507
      %vm1642 = vcmp.ge.f32.partialorder %v1349, %v1512
      %vm1643 = vcmp.ge.f32.partialorder %v1350, %v1512
      %vm1644 = vcmp.ge.f32.partialorder %v1351, %v1512
      %vm1645 = vcmp.ge.f32.partialorder %v1352, %v1512
      %v1646 = vsel %vm1518, %v1514, 512
      %v1647 = vsel %vm1519, %v1515, 512
      %v1648 = vsel %vm1520, %v1516, 512
      %v1649 = vsel %vm1521, %v1517, 512
      %v1650 = vsel %vm1522, %v1514, 512
      %v1651 = vsel %vm1523, %v1515, 512
      %v1652 = vsel %vm1524, %v1516, 512
      %v1653 = vsel %vm1525, %v1517, 512
      %v1654 = vsel %vm1526, %v1514, 512
      %v1655 = vsel %vm1527, %v1515, 512
      %v1656 = vsel %vm1528, %v1516, 512
      %v1657 = vsel %vm1529, %v1517, 512
      %v1658 = vsel %vm1530, %v1514, 512
      %v1659 = vsel %vm1531, %v1515, 512
      %v1660 = vsel %vm1532, %v1516, 512
      %v1661 = vsel %vm1533, %v1517, 512
      %v1662 = vsel %vm1534, %v1514, 512
      %v1663 = vsel %vm1535, %v1515, 512
      %v1664 = vsel %vm1536, %v1516, 512
      %v1665 = vsel %vm1537, %v1517, 512
      %v1666 = vsel %vm1538, %v1514, 512
      %v1667 = vsel %vm1539, %v1515, 512
      %v1668 = vsel %vm1540, %v1516, 512
      %v1669 = vsel %vm1541, %v1517, 512
      %v1670 = vsel %vm1542, %v1514, 512
      %v1671 = vsel %vm1543, %v1515, 512
      %v1672 = vsel %vm1544, %v1516, 512
      %v1673 = vsel %vm1545, %v1517, 512
      %v1674 = vsel %vm1546, %v1514, 512
      %v1675 = vsel %vm1547, %v1515, 512
      %v1676 = vsel %vm1548, %v1516, 512
      %v1677 = vsel %vm1549, %v1517, 512
      %v1678 = vsel %vm1550, %v1514, 512
      %v1679 = vsel %vm1551, %v1515, 512
      %v1680 = vsel %vm1552, %v1516, 512
      %v1681 = vsel %vm1553, %v1517, 512
      %v1682 = vsel %vm1554, %v1514, 512
      %v1683 = vsel %vm1555, %v1515, 512
      %v1684 = vsel %vm1556, %v1516, 512
      %v1685 = vsel %vm1557, %v1517, 512
      %v1686 = vsel %vm1558, %v1514, 512
      %v1687 = vsel %vm1559, %v1515, 512
      %v1688 = vsel %vm1560, %v1516, 512
      %v1689 = vsel %vm1561, %v1517, 512
      %v1690 = vsel %vm1562, %v1514, 512
      %v1691 = vsel %vm1563, %v1515, 512
      %v1692 = vsel %vm1564, %v1516, 512
      %v1693 = vsel %vm1565, %v1517, 512
      %v1694 = vsel %vm1566, %v1514, 512
      %v1695 = vsel %vm1567, %v1515, 512
      %v1696 = vsel %vm1568, %v1516, 512
      %v1697 = vsel %vm1569, %v1517, 512
      %v1698 = vsel %vm1570, %v1514, 512
      %v1699 = vsel %vm1571, %v1515, 512
      %v1700 = vsel %vm1572, %v1516, 512
      %v1701 = vsel %vm1573, %v1517, 512
      %v1702 = vsel %vm1574, %v1514, 512
      %v1703 = vsel %vm1575, %v1515, 512
      %v1704 = vsel %vm1576, %v1516, 512
      %v1705 = vsel %vm1577, %v1517, 512
      %v1706 = vsel %vm1578, %v1514, 512
      %v1707 = vsel %vm1579, %v1515, 512
      %v1708 = vsel %vm1580, %v1516, 512
      %v1709 = vsel %vm1581, %v1517, 512
      %v1710 = vsel %vm1582, %v1514, 512
      %v1711 = vsel %vm1583, %v1515, 512
      %v1712 = vsel %vm1584, %v1516, 512
      %v1713 = vsel %vm1585, %v1517, 512
      %v1714 = vsel %vm1586, %v1514, 512
      %v1715 = vsel %vm1587, %v1515, 512
      %v1716 = vsel %vm1588, %v1516, 512
      %v1717 = vsel %vm1589, %v1517, 512
      %v1718 = vsel %vm1590, %v1514, 512
      %v1719 = vsel %vm1591, %v1515, 512
      %v1720 = vsel %vm1592, %v1516, 512
      %v1721 = vsel %vm1593, %v1517, 512
      %v1722 = vsel %vm1594, %v1514, 512
      %v1723 = vsel %vm1595, %v1515, 512
      %v1724 = vsel %vm1596, %v1516, 512
      %v1725 = vsel %vm1597, %v1517, 512
      %v1726 = vsel %vm1598, %v1514, 512
      %v1727 = vsel %vm1599, %v1515, 512
      %v1728 = vsel %vm1600, %v1516, 512
      %v1729 = vsel %vm1601, %v1517, 512
      %v1730 = vsel %vm1602, %v1514, 512
      %v1731 = vsel %vm1603, %v1515, 512
      %v1732 = vsel %vm1604, %v1516, 512
      %v1733 = vsel %vm1605, %v1517, 512
      %v1734 = vsel %vm1606, %v1514, 512
      %v1735 = vsel %vm1607, %v1515, 512
      %v1736 = vsel %vm1608, %v1516, 512
      %v1737 = vsel %vm1609, %v1517, 512
      %v1738 = vsel %vm1610, %v1514, 512
      %v1739 = vsel %vm1611, %v1515, 512
      %v1740 = vsel %vm1612, %v1516, 512
      %v1741 = vsel %vm1613, %v1517, 512
      %v1742 = vsel %vm1614, %v1514, 512
      %v1743 = vsel %vm1615, %v1515, 512
      %v1744 = vsel %vm1616, %v1516, 512
      %v1745 = vsel %vm1617, %v1517, 512
      %v1746 = vsel %vm1618, %v1514, 512
      %v1747 = vsel %vm1619, %v1515, 512
      %v1748 = vsel %vm1620, %v1516, 512
      %v1749 = vsel %vm1621, %v1517, 512
      %v1750 = vsel %vm1622, %v1514, 512
      %v1751 = vsel %vm1623, %v1515, 512
      %v1752 = vsel %vm1624, %v1516, 512
      %v1753 = vsel %vm1625, %v1517, 512
      %v1754 = vsel %vm1626, %v1514, 512
      %v1755 = vsel %vm1627, %v1515, 512
      %v1756 = vsel %vm1628, %v1516, 512
      %v1757 = vsel %vm1629, %v1517, 512
      %v1758 = vsel %vm1630, %v1514, 512
      %v1759 = vsel %vm1631, %v1515, 512
      %v1760 = vsel %vm1632, %v1516, 512
      %v1761 = vsel %vm1633, %v1517, 512
      %v1762 = vsel %vm1634, %v1514, 512
      %v1763 = vsel %vm1635, %v1515, 512
      %v1764 = vsel %vm1636, %v1516, 512
      %v1765 = vsel %vm1637, %v1517, 512
      %v1766 = vsel %vm1638, %v1514, 512
      %v1767 = vsel %vm1639, %v1515, 512
      %v1768 = vsel %vm1640, %v1516, 512
      %v1769 = vsel %vm1641, %v1517, 512
      %v1770 = vsel %vm1642, %v1514, 512
      %v1771 = vsel %vm1643, %v1515, 512
      %v1772 = vsel %vm1644, %v1516, 512
      %v1773 = vsel %vm1645, %v1517, 512
      %vm1774 = vcmp.lt.s32.totalorder %v1646, %v1647
      %v1775 = vsel %vm1774, %v1646, %v1647
      %vm1776 = vcmp.lt.s32.totalorder %v1775, %v1648
      %v1777 = vsel %vm1776, %v1775, %v1648
      %vm1778 = vcmp.lt.s32.totalorder %v1777, %v1649
      %v1779 = vsel %vm1778, %v1777, %v1649
      %v1780 = vand.u32 %v1779, 65535
      %v1781 = vshra.s32 %v1779, 16
      %v1782 = vcvt.s32.f32 %v1780
      %v1783 = vcvt.s32.f32 %v1781
      %1784 = vmin.xlane.f32.xlu0 %v1783
      %v1785 = vpop.xlane.xlu0 %1784
      %vm1786 = vcmp.eq.f32.partialorder %v1783, %v1785
      %v1787 = vsel %vm1786, %v1782, inf
      %1788 = vmin.xlane.f32.xlu0 %v1787
      %v1789 = vpop.xlane.xlu0 %1788
      %v1790 = vcvt.f32.s32 %v1789
      %v1791 = vcvt.f32.s32 %v1785
      %v1792 = vshll.u32 %v1791, 16
      %v1793 = vadd.s32 %v1792, %v1790
      %vm1794 = vcmp.lt.s32.totalorder %v1650, %v1651
      %v1795 = vsel %vm1794, %v1650, %v1651
      %vm1796 = vcmp.lt.s32.totalorder %v1795, %v1652
      %v1797 = vsel %vm1796, %v1795, %v1652
      %vm1798 = vcmp.lt.s32.totalorder %v1797, %v1653
      %v1799 = vsel %vm1798, %v1797, %v1653
      %v1800 = vand.u32 %v1799, 65535
      %v1801 = vshra.s32 %v1799, 16
      %v1802 = vcvt.s32.f32 %v1800
      %v1803 = vcvt.s32.f32 %v1801
      %1804 = vmin.xlane.f32.xlu0 %v1803
      %v1805 = vpop.xlane.xlu0 %1804
      %vm1806 = vcmp.eq.f32.partialorder %v1803, %v1805
      %v1807 = vsel %vm1806, %v1802, inf
      %1808 = vmin.xlane.f32.xlu0 %v1807
      %v1809 = vpop.xlane.xlu0 %1808
      %v1810 = vcvt.f32.s32 %v1809
      %v1811 = vcvt.f32.s32 %v1805
      %v1812 = vshll.u32 %v1811, 16
      %v1813 = vadd.s32 %v1812, %v1810
      %vm1814 = vcmp.lt.s32.totalorder %v1654, %v1655
      %v1815 = vsel %vm1814, %v1654, %v1655
      %vm1816 = vcmp.lt.s32.totalorder %v1815, %v1656
      %v1817 = vsel %vm1816, %v1815, %v1656
      %vm1818 = vcmp.lt.s32.totalorder %v1817, %v1657
      %v1819 = vsel %vm1818, %v1817, %v1657
      %v1820 = vand.u32 %v1819, 65535
      %v1821 = vshra.s32 %v1819, 16
      %v1822 = vcvt.s32.f32 %v1820
      %v1823 = vcvt.s32.f32 %v1821
      %1824 = vmin.xlane.f32.xlu0 %v1823
      %v1825 = vpop.xlane.xlu0 %1824
      %vm1826 = vcmp.eq.f32.partialorder %v1823, %v1825
      %v1827 = vsel %vm1826, %v1822, inf
      %1828 = vmin.xlane.f32.xlu0 %v1827
      %v1829 = vpop.xlane.xlu0 %1828
      %v1830 = vcvt.f32.s32 %v1829
      %v1831 = vcvt.f32.s32 %v1825
      %v1832 = vshll.u32 %v1831, 16
      %v1833 = vadd.s32 %v1832, %v1830
      %vm1834 = vcmp.lt.s32.totalorder %v1658, %v1659
      %v1835 = vsel %vm1834, %v1658, %v1659
      %vm1836 = vcmp.lt.s32.totalorder %v1835, %v1660
      %v1837 = vsel %vm1836, %v1835, %v1660
      %vm1838 = vcmp.lt.s32.totalorder %v1837, %v1661
      %v1839 = vsel %vm1838, %v1837, %v1661
      %v1840 = vand.u32 %v1839, 65535
      %v1841 = vshra.s32 %v1839, 16
      %v1842 = vcvt.s32.f32 %v1840
      %v1843 = vcvt.s32.f32 %v1841
      %1844 = vmin.xlane.f32.xlu0 %v1843
      %v1845 = vpop.xlane.xlu0 %1844
      %vm1846 = vcmp.eq.f32.partialorder %v1843, %v1845
      %v1847 = vsel %vm1846, %v1842, inf
      %1848 = vmin.xlane.f32.xlu0 %v1847
      %v1849 = vpop.xlane.xlu0 %1848
      %v1850 = vcvt.f32.s32 %v1849
      %v1851 = vcvt.f32.s32 %v1845
      %v1852 = vshll.u32 %v1851, 16
      %v1853 = vadd.s32 %v1852, %v1850
      %vm1854 = vcmp.lt.s32.totalorder %v1662, %v1663
      %v1855 = vsel %vm1854, %v1662, %v1663
      %vm1856 = vcmp.lt.s32.totalorder %v1855, %v1664
      %v1857 = vsel %vm1856, %v1855, %v1664
      %vm1858 = vcmp.lt.s32.totalorder %v1857, %v1665
      %v1859 = vsel %vm1858, %v1857, %v1665
      %v1860 = vand.u32 %v1859, 65535
      %v1861 = vshra.s32 %v1859, 16
      %v1862 = vcvt.s32.f32 %v1860
      %v1863 = vcvt.s32.f32 %v1861
      %1864 = vmin.xlane.f32.xlu0 %v1863
      %v1865 = vpop.xlane.xlu0 %1864
      %vm1866 = vcmp.eq.f32.partialorder %v1863, %v1865
      %v1867 = vsel %vm1866, %v1862, inf
      %1868 = vmin.xlane.f32.xlu0 %v1867
      %v1869 = vpop.xlane.xlu0 %1868
      %v1870 = vcvt.f32.s32 %v1869
      %v1871 = vcvt.f32.s32 %v1865
      %v1872 = vshll.u32 %v1871, 16
      %v1873 = vadd.s32 %v1872, %v1870
      %vm1874 = vcmp.lt.s32.totalorder %v1666, %v1667
      %v1875 = vsel %vm1874, %v1666, %v1667
      %vm1876 = vcmp.lt.s32.totalorder %v1875, %v1668
      %v1877 = vsel %vm1876, %v1875, %v1668
      %vm1878 = vcmp.lt.s32.totalorder %v1877, %v1669
      %v1879 = vsel %vm1878, %v1877, %v1669
      %v1880 = vand.u32 %v1879, 65535
      %v1881 = vshra.s32 %v1879, 16
      %v1882 = vcvt.s32.f32 %v1880
      %v1883 = vcvt.s32.f32 %v1881
      %1884 = vmin.xlane.f32.xlu0 %v1883
      %v1885 = vpop.xlane.xlu0 %1884
      %vm1886 = vcmp.eq.f32.partialorder %v1883, %v1885
      %v1887 = vsel %vm1886, %v1882, inf
      %1888 = vmin.xlane.f32.xlu0 %v1887
      %v1889 = vpop.xlane.xlu0 %1888
      %v1890 = vcvt.f32.s32 %v1889
      %v1891 = vcvt.f32.s32 %v1885
      %v1892 = vshll.u32 %v1891, 16
      %v1893 = vadd.s32 %v1892, %v1890
      %vm1894 = vcmp.lt.s32.totalorder %v1670, %v1671
      %v1895 = vsel %vm1894, %v1670, %v1671
      %vm1896 = vcmp.lt.s32.totalorder %v1895, %v1672
      %v1897 = vsel %vm1896, %v1895, %v1672
      %vm1898 = vcmp.lt.s32.totalorder %v1897, %v1673
      %v1899 = vsel %vm1898, %v1897, %v1673
      %v1900 = vand.u32 %v1899, 65535
      %v1901 = vshra.s32 %v1899, 16
      %v1902 = vcvt.s32.f32 %v1900
      %v1903 = vcvt.s32.f32 %v1901
      %1904 = vmin.xlane.f32.xlu0 %v1903
      %v1905 = vpop.xlane.xlu0 %1904
      %vm1906 = vcmp.eq.f32.partialorder %v1903, %v1905
      %v1907 = vsel %vm1906, %v1902, inf
      %1908 = vmin.xlane.f32.xlu0 %v1907
      %v1909 = vpop.xlane.xlu0 %1908
      %v1910 = vcvt.f32.s32 %v1909
      %v1911 = vcvt.f32.s32 %v1905
      %v1912 = vshll.u32 %v1911, 16
      %v1913 = vadd.s32 %v1912, %v1910
      %vm1914 = vcmp.lt.s32.totalorder %v1674, %v1675
      %v1915 = vsel %vm1914, %v1674, %v1675
      %vm1916 = vcmp.lt.s32.totalorder %v1915, %v1676
      %v1917 = vsel %vm1916, %v1915, %v1676
      %vm1918 = vcmp.lt.s32.totalorder %v1917, %v1677
      %v1919 = vsel %vm1918, %v1917, %v1677
      %v1920 = vand.u32 %v1919, 65535
      %v1921 = vshra.s32 %v1919, 16
      %v1922 = vcvt.s32.f32 %v1920
      %v1923 = vcvt.s32.f32 %v1921
      %1924 = vmin.xlane.f32.xlu0 %v1923
      %v1925 = vpop.xlane.xlu0 %1924
      %vm1926 = vcmp.eq.f32.partialorder %v1923, %v1925
      %v1927 = vsel %vm1926, %v1922, inf
      %1928 = vmin.xlane.f32.xlu0 %v1927
      %v1929 = vpop.xlane.xlu0 %1928
      %v1930 = vcvt.f32.s32 %v1929
      %v1931 = vcvt.f32.s32 %v1925
      %v1932 = vshll.u32 %v1931, 16
      %v1933 = vadd.s32 %v1932, %v1930
      %vm1934 = vcmp.lt.s32.totalorder %v1678, %v1679
      %v1935 = vsel %vm1934, %v1678, %v1679
      %vm1936 = vcmp.lt.s32.totalorder %v1935, %v1680
      %v1937 = vsel %vm1936, %v1935, %v1680
      %vm1938 = vcmp.lt.s32.totalorder %v1937, %v1681
      %v1939 = vsel %vm1938, %v1937, %v1681
      %v1940 = vand.u32 %v1939, 65535
      %v1941 = vshra.s32 %v1939, 16
      %v1942 = vcvt.s32.f32 %v1940
      %v1943 = vcvt.s32.f32 %v1941
      %1944 = vmin.xlane.f32.xlu0 %v1943
      %v1945 = vpop.xlane.xlu0 %1944
      %vm1946 = vcmp.eq.f32.partialorder %v1943, %v1945
      %v1947 = vsel %vm1946, %v1942, inf
      %1948 = vmin.xlane.f32.xlu0 %v1947
      %v1949 = vpop.xlane.xlu0 %1948
      %v1950 = vcvt.f32.s32 %v1949
      %v1951 = vcvt.f32.s32 %v1945
      %v1952 = vshll.u32 %v1951, 16
      %v1953 = vadd.s32 %v1952, %v1950
      %vm1954 = vcmp.lt.s32.totalorder %v1682, %v1683
      %v1955 = vsel %vm1954, %v1682, %v1683
      %vm1956 = vcmp.lt.s32.totalorder %v1955, %v1684
      %v1957 = vsel %vm1956, %v1955, %v1684
      %vm1958 = vcmp.lt.s32.totalorder %v1957, %v1685
      %v1959 = vsel %vm1958, %v1957, %v1685
      %v1960 = vand.u32 %v1959, 65535
      %v1961 = vshra.s32 %v1959, 16
      %v1962 = vcvt.s32.f32 %v1960
      %v1963 = vcvt.s32.f32 %v1961
      %1964 = vmin.xlane.f32.xlu0 %v1963
      %v1965 = vpop.xlane.xlu0 %1964
      %vm1966 = vcmp.eq.f32.partialorder %v1963, %v1965
      %v1967 = vsel %vm1966, %v1962, inf
      %1968 = vmin.xlane.f32.xlu0 %v1967
      %v1969 = vpop.xlane.xlu0 %1968
      %v1970 = vcvt.f32.s32 %v1969
      %v1971 = vcvt.f32.s32 %v1965
      %v1972 = vshll.u32 %v1971, 16
      %v1973 = vadd.s32 %v1972, %v1970
      %vm1974 = vcmp.lt.s32.totalorder %v1686, %v1687
      %v1975 = vsel %vm1974, %v1686, %v1687
      %vm1976 = vcmp.lt.s32.totalorder %v1975, %v1688
      %v1977 = vsel %vm1976, %v1975, %v1688
      %vm1978 = vcmp.lt.s32.totalorder %v1977, %v1689
      %v1979 = vsel %vm1978, %v1977, %v1689
      %v1980 = vand.u32 %v1979, 65535
      %v1981 = vshra.s32 %v1979, 16
      %v1982 = vcvt.s32.f32 %v1980
      %v1983 = vcvt.s32.f32 %v1981
      %1984 = vmin.xlane.f32.xlu0 %v1983
      %v1985 = vpop.xlane.xlu0 %1984
      %vm1986 = vcmp.eq.f32.partialorder %v1983, %v1985
      %v1987 = vsel %vm1986, %v1982, inf
      %1988 = vmin.xlane.f32.xlu0 %v1987
      %v1989 = vpop.xlane.xlu0 %1988
      %v1990 = vcvt.f32.s32 %v1989
      %v1991 = vcvt.f32.s32 %v1985
      %v1992 = vshll.u32 %v1991, 16
      %v1993 = vadd.s32 %v1992, %v1990
      %vm1994 = vcmp.lt.s32.totalorder %v1690, %v1691
      %v1995 = vsel %vm1994, %v1690, %v1691
      %vm1996 = vcmp.lt.s32.totalorder %v1995, %v1692
      %v1997 = vsel %vm1996, %v1995, %v1692
      %vm1998 = vcmp.lt.s32.totalorder %v1997, %v1693
      %v1999 = vsel %vm1998, %v1997, %v1693
      %v2000 = vand.u32 %v1999, 65535
      %v2001 = vshra.s32 %v1999, 16
      %v2002 = vcvt.s32.f32 %v2000
      %v2003 = vcvt.s32.f32 %v2001
      %2004 = vmin.xlane.f32.xlu0 %v2003
      %v2005 = vpop.xlane.xlu0 %2004
      %vm2006 = vcmp.eq.f32.partialorder %v2003, %v2005
      %v2007 = vsel %vm2006, %v2002, inf
      %2008 = vmin.xlane.f32.xlu0 %v2007
      %v2009 = vpop.xlane.xlu0 %2008
      %v2010 = vcvt.f32.s32 %v2009
      %v2011 = vcvt.f32.s32 %v2005
      %v2012 = vshll.u32 %v2011, 16
      %v2013 = vadd.s32 %v2012, %v2010
      %vm2014 = vcmp.lt.s32.totalorder %v1694, %v1695
      %v2015 = vsel %vm2014, %v1694, %v1695
      %vm2016 = vcmp.lt.s32.totalorder %v2015, %v1696
      %v2017 = vsel %vm2016, %v2015, %v1696
      %vm2018 = vcmp.lt.s32.totalorder %v2017, %v1697
      %v2019 = vsel %vm2018, %v2017, %v1697
      %v2020 = vand.u32 %v2019, 65535
      %v2021 = vshra.s32 %v2019, 16
      %v2022 = vcvt.s32.f32 %v2020
      %v2023 = vcvt.s32.f32 %v2021
      %2024 = vmin.xlane.f32.xlu0 %v2023
      %v2025 = vpop.xlane.xlu0 %2024
      %vm2026 = vcmp.eq.f32.partialorder %v2023, %v2025
      %v2027 = vsel %vm2026, %v2022, inf
      %2028 = vmin.xlane.f32.xlu0 %v2027
      %v2029 = vpop.xlane.xlu0 %2028
      %v2030 = vcvt.f32.s32 %v2029
      %v2031 = vcvt.f32.s32 %v2025
      %v2032 = vshll.u32 %v2031, 16
      %v2033 = vadd.s32 %v2032, %v2030
      %vm2034 = vcmp.lt.s32.totalorder %v1698, %v1699
      %v2035 = vsel %vm2034, %v1698, %v1699
      %vm2036 = vcmp.lt.s32.totalorder %v2035, %v1700
      %v2037 = vsel %vm2036, %v2035, %v1700
      %vm2038 = vcmp.lt.s32.totalorder %v2037, %v1701
      %v2039 = vsel %vm2038, %v2037, %v1701
      %v2040 = vand.u32 %v2039, 65535
      %v2041 = vshra.s32 %v2039, 16
      %v2042 = vcvt.s32.f32 %v2040
      %v2043 = vcvt.s32.f32 %v2041
      %2044 = vmin.xlane.f32.xlu0 %v2043
      %v2045 = vpop.xlane.xlu0 %2044
      %vm2046 = vcmp.eq.f32.partialorder %v2043, %v2045
      %v2047 = vsel %vm2046, %v2042, inf
      %2048 = vmin.xlane.f32.xlu0 %v2047
      %v2049 = vpop.xlane.xlu0 %2048
      %v2050 = vcvt.f32.s32 %v2049
      %v2051 = vcvt.f32.s32 %v2045
      %v2052 = vshll.u32 %v2051, 16
      %v2053 = vadd.s32 %v2052, %v2050
      %vm2054 = vcmp.lt.s32.totalorder %v1702, %v1703
      %v2055 = vsel %vm2054, %v1702, %v1703
      %vm2056 = vcmp.lt.s32.totalorder %v2055, %v1704
      %v2057 = vsel %vm2056, %v2055, %v1704
      %vm2058 = vcmp.lt.s32.totalorder %v2057, %v1705
      %v2059 = vsel %vm2058, %v2057, %v1705
      %v2060 = vand.u32 %v2059, 65535
      %v2061 = vshra.s32 %v2059, 16
      %v2062 = vcvt.s32.f32 %v2060
      %v2063 = vcvt.s32.f32 %v2061
      %2064 = vmin.xlane.f32.xlu0 %v2063
      %v2065 = vpop.xlane.xlu0 %2064
      %vm2066 = vcmp.eq.f32.partialorder %v2063, %v2065
      %v2067 = vsel %vm2066, %v2062, inf
      %2068 = vmin.xlane.f32.xlu0 %v2067
      %v2069 = vpop.xlane.xlu0 %2068
      %v2070 = vcvt.f32.s32 %v2069
      %v2071 = vcvt.f32.s32 %v2065
      %v2072 = vshll.u32 %v2071, 16
      %v2073 = vadd.s32 %v2072, %v2070
      %vm2074 = vcmp.lt.s32.totalorder %v1706, %v1707
      %v2075 = vsel %vm2074, %v1706, %v1707
      %vm2076 = vcmp.lt.s32.totalorder %v2075, %v1708
      %v2077 = vsel %vm2076, %v2075, %v1708
      %vm2078 = vcmp.lt.s32.totalorder %v2077, %v1709
      %v2079 = vsel %vm2078, %v2077, %v1709
      %v2080 = vand.u32 %v2079, 65535
      %v2081 = vshra.s32 %v2079, 16
      %v2082 = vcvt.s32.f32 %v2080
      %v2083 = vcvt.s32.f32 %v2081
      %2084 = vmin.xlane.f32.xlu0 %v2083
      %v2085 = vpop.xlane.xlu0 %2084
      %vm2086 = vcmp.eq.f32.partialorder %v2083, %v2085
      %v2087 = vsel %vm2086, %v2082, inf
      %2088 = vmin.xlane.f32.xlu0 %v2087
      %v2089 = vpop.xlane.xlu0 %2088
      %v2090 = vcvt.f32.s32 %v2089
      %v2091 = vcvt.f32.s32 %v2085
      %v2092 = vshll.u32 %v2091, 16
      %v2093 = vadd.s32 %v2092, %v2090
      %vm2094 = vcmp.lt.s32.totalorder %v1710, %v1711
      %v2095 = vsel %vm2094, %v1710, %v1711
      %vm2096 = vcmp.lt.s32.totalorder %v2095, %v1712
      %v2097 = vsel %vm2096, %v2095, %v1712
      %vm2098 = vcmp.lt.s32.totalorder %v2097, %v1713
      %v2099 = vsel %vm2098, %v2097, %v1713
      %v2100 = vand.u32 %v2099, 65535
      %v2101 = vshra.s32 %v2099, 16
      %v2102 = vcvt.s32.f32 %v2100
      %v2103 = vcvt.s32.f32 %v2101
      %2104 = vmin.xlane.f32.xlu0 %v2103
      %v2105 = vpop.xlane.xlu0 %2104
      %vm2106 = vcmp.eq.f32.partialorder %v2103, %v2105
      %v2107 = vsel %vm2106, %v2102, inf
      %2108 = vmin.xlane.f32.xlu0 %v2107
      %v2109 = vpop.xlane.xlu0 %2108
      %v2110 = vcvt.f32.s32 %v2109
      %v2111 = vcvt.f32.s32 %v2105
      %v2112 = vshll.u32 %v2111, 16
      %v2113 = vadd.s32 %v2112, %v2110
      %vm2114 = vcmp.lt.s32.totalorder %v1714, %v1715
      %v2115 = vsel %vm2114, %v1714, %v1715
      %vm2116 = vcmp.lt.s32.totalorder %v2115, %v1716
      %v2117 = vsel %vm2116, %v2115, %v1716
      %vm2118 = vcmp.lt.s32.totalorder %v2117, %v1717
      %v2119 = vsel %vm2118, %v2117, %v1717
      %v2120 = vand.u32 %v2119, 65535
      %v2121 = vshra.s32 %v2119, 16
      %v2122 = vcvt.s32.f32 %v2120
      %v2123 = vcvt.s32.f32 %v2121
      %2124 = vmin.xlane.f32.xlu0 %v2123
      %v2125 = vpop.xlane.xlu0 %2124
      %vm2126 = vcmp.eq.f32.partialorder %v2123, %v2125
      %v2127 = vsel %vm2126, %v2122, inf
      %2128 = vmin.xlane.f32.xlu0 %v2127
      %v2129 = vpop.xlane.xlu0 %2128
      %v2130 = vcvt.f32.s32 %v2129
      %v2131 = vcvt.f32.s32 %v2125
      %v2132 = vshll.u32 %v2131, 16
      %v2133 = vadd.s32 %v2132, %v2130
      %vm2134 = vcmp.lt.s32.totalorder %v1718, %v1719
      %v2135 = vsel %vm2134, %v1718, %v1719
      %vm2136 = vcmp.lt.s32.totalorder %v2135, %v1720
      %v2137 = vsel %vm2136, %v2135, %v1720
      %vm2138 = vcmp.lt.s32.totalorder %v2137, %v1721
      %v2139 = vsel %vm2138, %v2137, %v1721
      %v2140 = vand.u32 %v2139, 65535
      %v2141 = vshra.s32 %v2139, 16
      %v2142 = vcvt.s32.f32 %v2140
      %v2143 = vcvt.s32.f32 %v2141
      %2144 = vmin.xlane.f32.xlu0 %v2143
      %v2145 = vpop.xlane.xlu0 %2144
      %vm2146 = vcmp.eq.f32.partialorder %v2143, %v2145
      %v2147 = vsel %vm2146, %v2142, inf
      %2148 = vmin.xlane.f32.xlu0 %v2147
      %v2149 = vpop.xlane.xlu0 %2148
      %v2150 = vcvt.f32.s32 %v2149
      %v2151 = vcvt.f32.s32 %v2145
      %v2152 = vshll.u32 %v2151, 16
      %v2153 = vadd.s32 %v2152, %v2150
      %vm2154 = vcmp.lt.s32.totalorder %v1722, %v1723
      %v2155 = vsel %vm2154, %v1722, %v1723
      %vm2156 = vcmp.lt.s32.totalorder %v2155, %v1724
      %v2157 = vsel %vm2156, %v2155, %v1724
      %vm2158 = vcmp.lt.s32.totalorder %v2157, %v1725
      %v2159 = vsel %vm2158, %v2157, %v1725
      %v2160 = vand.u32 %v2159, 65535
      %v2161 = vshra.s32 %v2159, 16
      %v2162 = vcvt.s32.f32 %v2160
      %v2163 = vcvt.s32.f32 %v2161
      %2164 = vmin.xlane.f32.xlu0 %v2163
      %v2165 = vpop.xlane.xlu0 %2164
      %vm2166 = vcmp.eq.f32.partialorder %v2163, %v2165
      %v2167 = vsel %vm2166, %v2162, inf
      %2168 = vmin.xlane.f32.xlu0 %v2167
      %v2169 = vpop.xlane.xlu0 %2168
      %v2170 = vcvt.f32.s32 %v2169
      %v2171 = vcvt.f32.s32 %v2165
      %v2172 = vshll.u32 %v2171, 16
      %v2173 = vadd.s32 %v2172, %v2170
      %vm2174 = vcmp.lt.s32.totalorder %v1726, %v1727
      %v2175 = vsel %vm2174, %v1726, %v1727
      %vm2176 = vcmp.lt.s32.totalorder %v2175, %v1728
      %v2177 = vsel %vm2176, %v2175, %v1728
      %vm2178 = vcmp.lt.s32.totalorder %v2177, %v1729
      %v2179 = vsel %vm2178, %v2177, %v1729
      %v2180 = vand.u32 %v2179, 65535
      %v2181 = vshra.s32 %v2179, 16
      %v2182 = vcvt.s32.f32 %v2180
      %v2183 = vcvt.s32.f32 %v2181
      %2184 = vmin.xlane.f32.xlu0 %v2183
      %v2185 = vpop.xlane.xlu0 %2184
      %vm2186 = vcmp.eq.f32.partialorder %v2183, %v2185
      %v2187 = vsel %vm2186, %v2182, inf
      %2188 = vmin.xlane.f32.xlu0 %v2187
      %v2189 = vpop.xlane.xlu0 %2188
      %v2190 = vcvt.f32.s32 %v2189
      %v2191 = vcvt.f32.s32 %v2185
      %v2192 = vshll.u32 %v2191, 16
      %v2193 = vadd.s32 %v2192, %v2190
      %vm2194 = vcmp.lt.s32.totalorder %v1730, %v1731
      %v2195 = vsel %vm2194, %v1730, %v1731
      %vm2196 = vcmp.lt.s32.totalorder %v2195, %v1732
      %v2197 = vsel %vm2196, %v2195, %v1732
      %vm2198 = vcmp.lt.s32.totalorder %v2197, %v1733
      %v2199 = vsel %vm2198, %v2197, %v1733
      %v2200 = vand.u32 %v2199, 65535
      %v2201 = vshra.s32 %v2199, 16
      %v2202 = vcvt.s32.f32 %v2200
      %v2203 = vcvt.s32.f32 %v2201
      %2204 = vmin.xlane.f32.xlu0 %v2203
      %v2205 = vpop.xlane.xlu0 %2204
      %vm2206 = vcmp.eq.f32.partialorder %v2203, %v2205
      %v2207 = vsel %vm2206, %v2202, inf
      %2208 = vmin.xlane.f32.xlu0 %v2207
      %v2209 = vpop.xlane.xlu0 %2208
      %v2210 = vcvt.f32.s32 %v2209
      %v2211 = vcvt.f32.s32 %v2205
      %v2212 = vshll.u32 %v2211, 16
      %v2213 = vadd.s32 %v2212, %v2210
      %vm2214 = vcmp.lt.s32.totalorder %v1734, %v1735
      %v2215 = vsel %vm2214, %v1734, %v1735
      %vm2216 = vcmp.lt.s32.totalorder %v2215, %v1736
      %v2217 = vsel %vm2216, %v2215, %v1736
      %vm2218 = vcmp.lt.s32.totalorder %v2217, %v1737
      %v2219 = vsel %vm2218, %v2217, %v1737
      %v2220 = vand.u32 %v2219, 65535
      %v2221 = vshra.s32 %v2219, 16
      %v2222 = vcvt.s32.f32 %v2220
      %v2223 = vcvt.s32.f32 %v2221
      %2224 = vmin.xlane.f32.xlu0 %v2223
      %v2225 = vpop.xlane.xlu0 %2224
      %vm2226 = vcmp.eq.f32.partialorder %v2223, %v2225
      %v2227 = vsel %vm2226, %v2222, inf
      %2228 = vmin.xlane.f32.xlu0 %v2227
      %v2229 = vpop.xlane.xlu0 %2228
      %v2230 = vcvt.f32.s32 %v2229
      %v2231 = vcvt.f32.s32 %v2225
      %v2232 = vshll.u32 %v2231, 16
      %v2233 = vadd.s32 %v2232, %v2230
      %vm2234 = vcmp.lt.s32.totalorder %v1738, %v1739
      %v2235 = vsel %vm2234, %v1738, %v1739
      %vm2236 = vcmp.lt.s32.totalorder %v2235, %v1740
      %v2237 = vsel %vm2236, %v2235, %v1740
      %vm2238 = vcmp.lt.s32.totalorder %v2237, %v1741
      %v2239 = vsel %vm2238, %v2237, %v1741
      %v2240 = vand.u32 %v2239, 65535
      %v2241 = vshra.s32 %v2239, 16
      %v2242 = vcvt.s32.f32 %v2240
      %v2243 = vcvt.s32.f32 %v2241
      %2244 = vmin.xlane.f32.xlu0 %v2243
      %v2245 = vpop.xlane.xlu0 %2244
      %vm2246 = vcmp.eq.f32.partialorder %v2243, %v2245
      %v2247 = vsel %vm2246, %v2242, inf
      %2248 = vmin.xlane.f32.xlu0 %v2247
      %v2249 = vpop.xlane.xlu0 %2248
      %v2250 = vcvt.f32.s32 %v2249
      %v2251 = vcvt.f32.s32 %v2245
      %v2252 = vshll.u32 %v2251, 16
      %v2253 = vadd.s32 %v2252, %v2250
      %vm2254 = vcmp.lt.s32.totalorder %v1742, %v1743
      %v2255 = vsel %vm2254, %v1742, %v1743
      %vm2256 = vcmp.lt.s32.totalorder %v2255, %v1744
      %v2257 = vsel %vm2256, %v2255, %v1744
      %vm2258 = vcmp.lt.s32.totalorder %v2257, %v1745
      %v2259 = vsel %vm2258, %v2257, %v1745
      %v2260 = vand.u32 %v2259, 65535
      %v2261 = vshra.s32 %v2259, 16
      %v2262 = vcvt.s32.f32 %v2260
      %v2263 = vcvt.s32.f32 %v2261
      %2264 = vmin.xlane.f32.xlu0 %v2263
      %v2265 = vpop.xlane.xlu0 %2264
      %vm2266 = vcmp.eq.f32.partialorder %v2263, %v2265
      %v2267 = vsel %vm2266, %v2262, inf
      %2268 = vmin.xlane.f32.xlu0 %v2267
      %v2269 = vpop.xlane.xlu0 %2268
      %v2270 = vcvt.f32.s32 %v2269
      %v2271 = vcvt.f32.s32 %v2265
      %v2272 = vshll.u32 %v2271, 16
      %v2273 = vadd.s32 %v2272, %v2270
      %vm2274 = vcmp.lt.s32.totalorder %v1746, %v1747
      %v2275 = vsel %vm2274, %v1746, %v1747
      %vm2276 = vcmp.lt.s32.totalorder %v2275, %v1748
      %v2277 = vsel %vm2276, %v2275, %v1748
      %vm2278 = vcmp.lt.s32.totalorder %v2277, %v1749
      %v2279 = vsel %vm2278, %v2277, %v1749
      %v2280 = vand.u32 %v2279, 65535
      %v2281 = vshra.s32 %v2279, 16
      %v2282 = vcvt.s32.f32 %v2280
      %v2283 = vcvt.s32.f32 %v2281
      %2284 = vmin.xlane.f32.xlu0 %v2283
      %v2285 = vpop.xlane.xlu0 %2284
      %vm2286 = vcmp.eq.f32.partialorder %v2283, %v2285
      %v2287 = vsel %vm2286, %v2282, inf
      %2288 = vmin.xlane.f32.xlu0 %v2287
      %v2289 = vpop.xlane.xlu0 %2288
      %v2290 = vcvt.f32.s32 %v2289
      %v2291 = vcvt.f32.s32 %v2285
      %v2292 = vshll.u32 %v2291, 16
      %v2293 = vadd.s32 %v2292, %v2290
      %vm2294 = vcmp.lt.s32.totalorder %v1750, %v1751
      %v2295 = vsel %vm2294, %v1750, %v1751
      %vm2296 = vcmp.lt.s32.totalorder %v2295, %v1752
      %v2297 = vsel %vm2296, %v2295, %v1752
      %vm2298 = vcmp.lt.s32.totalorder %v2297, %v1753
      %v2299 = vsel %vm2298, %v2297, %v1753
      %v2300 = vand.u32 %v2299, 65535
      %v2301 = vshra.s32 %v2299, 16
      %v2302 = vcvt.s32.f32 %v2300
      %v2303 = vcvt.s32.f32 %v2301
      %2304 = vmin.xlane.f32.xlu0 %v2303
      %v2305 = vpop.xlane.xlu0 %2304
      %vm2306 = vcmp.eq.f32.partialorder %v2303, %v2305
      %v2307 = vsel %vm2306, %v2302, inf
      %2308 = vmin.xlane.f32.xlu0 %v2307
      %v2309 = vpop.xlane.xlu0 %2308
      %v2310 = vcvt.f32.s32 %v2309
      %v2311 = vcvt.f32.s32 %v2305
      %v2312 = vshll.u32 %v2311, 16
      %v2313 = vadd.s32 %v2312, %v2310
      %vm2314 = vcmp.lt.s32.totalorder %v1754, %v1755
      %v2315 = vsel %vm2314, %v1754, %v1755
      %vm2316 = vcmp.lt.s32.totalorder %v2315, %v1756
      %v2317 = vsel %vm2316, %v2315, %v1756
      %vm2318 = vcmp.lt.s32.totalorder %v2317, %v1757
      %v2319 = vsel %vm2318, %v2317, %v1757
      %v2320 = vand.u32 %v2319, 65535
      %v2321 = vshra.s32 %v2319, 16
      %v2322 = vcvt.s32.f32 %v2320
      %v2323 = vcvt.s32.f32 %v2321
      %2324 = vmin.xlane.f32.xlu0 %v2323
      %v2325 = vpop.xlane.xlu0 %2324
      %vm2326 = vcmp.eq.f32.partialorder %v2323, %v2325
      %v2327 = vsel %vm2326, %v2322, inf
      %2328 = vmin.xlane.f32.xlu0 %v2327
      %v2329 = vpop.xlane.xlu0 %2328
      %v2330 = vcvt.f32.s32 %v2329
      %v2331 = vcvt.f32.s32 %v2325
      %v2332 = vshll.u32 %v2331, 16
      %v2333 = vadd.s32 %v2332, %v2330
      %vm2334 = vcmp.lt.s32.totalorder %v1758, %v1759
      %v2335 = vsel %vm2334, %v1758, %v1759
      %vm2336 = vcmp.lt.s32.totalorder %v2335, %v1760
      %v2337 = vsel %vm2336, %v2335, %v1760
      %vm2338 = vcmp.lt.s32.totalorder %v2337, %v1761
      %v2339 = vsel %vm2338, %v2337, %v1761
      %v2340 = vand.u32 %v2339, 65535
      %v2341 = vshra.s32 %v2339, 16
      %v2342 = vcvt.s32.f32 %v2340
      %v2343 = vcvt.s32.f32 %v2341
      %2344 = vmin.xlane.f32.xlu0 %v2343
      %v2345 = vpop.xlane.xlu0 %2344
      %vm2346 = vcmp.eq.f32.partialorder %v2343, %v2345
      %v2347 = vsel %vm2346, %v2342, inf
      %2348 = vmin.xlane.f32.xlu0 %v2347
      %v2349 = vpop.xlane.xlu0 %2348
      %v2350 = vcvt.f32.s32 %v2349
      %v2351 = vcvt.f32.s32 %v2345
      %v2352 = vshll.u32 %v2351, 16
      %v2353 = vadd.s32 %v2352, %v2350
      %vm2354 = vcmp.lt.s32.totalorder %v1762, %v1763
      %v2355 = vsel %vm2354, %v1762, %v1763
      %vm2356 = vcmp.lt.s32.totalorder %v2355, %v1764
      %v2357 = vsel %vm2356, %v2355, %v1764
      %vm2358 = vcmp.lt.s32.totalorder %v2357, %v1765
      %v2359 = vsel %vm2358, %v2357, %v1765
      %v2360 = vand.u32 %v2359, 65535
      %v2361 = vshra.s32 %v2359, 16
      %v2362 = vcvt.s32.f32 %v2360
      %v2363 = vcvt.s32.f32 %v2361
      %2364 = vmin.xlane.f32.xlu0 %v2363
      %v2365 = vpop.xlane.xlu0 %2364
      %vm2366 = vcmp.eq.f32.partialorder %v2363, %v2365
      %v2367 = vsel %vm2366, %v2362, inf
      %2368 = vmin.xlane.f32.xlu0 %v2367
      %v2369 = vpop.xlane.xlu0 %2368
      %v2370 = vcvt.f32.s32 %v2369
      %v2371 = vcvt.f32.s32 %v2365
      %v2372 = vshll.u32 %v2371, 16
      %v2373 = vadd.s32 %v2372, %v2370
      %vm2374 = vcmp.lt.s32.totalorder %v1766, %v1767
      %v2375 = vsel %vm2374, %v1766, %v1767
      %vm2376 = vcmp.lt.s32.totalorder %v2375, %v1768
      %v2377 = vsel %vm2376, %v2375, %v1768
      %vm2378 = vcmp.lt.s32.totalorder %v2377, %v1769
      %v2379 = vsel %vm2378, %v2377, %v1769
      %v2380 = vand.u32 %v2379, 65535
      %v2381 = vshra.s32 %v2379, 16
      %v2382 = vcvt.s32.f32 %v2380
      %v2383 = vcvt.s32.f32 %v2381
      %2384 = vmin.xlane.f32.xlu0 %v2383
      %v2385 = vpop.xlane.xlu0 %2384
      %vm2386 = vcmp.eq.f32.partialorder %v2383, %v2385
      %v2387 = vsel %vm2386, %v2382, inf
      %2388 = vmin.xlane.f32.xlu0 %v2387
      %v2389 = vpop.xlane.xlu0 %2388
      %v2390 = vcvt.f32.s32 %v2389
      %v2391 = vcvt.f32.s32 %v2385
      %v2392 = vshll.u32 %v2391, 16
      %v2393 = vadd.s32 %v2392, %v2390
      %vm2394 = vcmp.lt.s32.totalorder %v1770, %v1771
      %v2395 = vsel %vm2394, %v1770, %v1771
      %vm2396 = vcmp.lt.s32.totalorder %v2395, %v1772
      %v2397 = vsel %vm2396, %v2395, %v1772
      %vm2398 = vcmp.lt.s32.totalorder %v2397, %v1773
      %v2399 = vsel %vm2398, %v2397, %v1773
      %v2400 = vand.u32 %v2399, 65535
      %v2401 = vshra.s32 %v2399, 16
      %v2402 = vcvt.s32.f32 %v2400
      %v2403 = vcvt.s32.f32 %v2401
      %2404 = vmin.xlane.f32.xlu0 %v2403
      %v2405 = vpop.xlane.xlu0 %2404
      %vm2406 = vcmp.eq.f32.partialorder %v2403, %v2405
      %v2407 = vsel %vm2406, %v2402, inf
      %2408 = vmin.xlane.f32.xlu0 %v2407
      %v2409 = vpop.xlane.xlu0 %2408
      %v2410 = vcvt.f32.s32 %v2409
      %v2411 = vcvt.f32.s32 %v2405
      %v2412 = vshll.u32 %v2411, 16
      %v2413 = vadd.s32 %v2412, %v2410
      %vm2414 = vcmp.eq.s32.totalorder %v1514, %v1793
      %vm2415 = vcmp.eq.s32.totalorder %v1515, %v1793
      %vm2416 = vcmp.eq.s32.totalorder %v1516, %v1793
      %vm2417 = vcmp.eq.s32.totalorder %v1517, %v1793
      %vm2418 = vcmp.eq.s32.totalorder %v1514, %v1813
      %vm2419 = vcmp.eq.s32.totalorder %v1515, %v1813
      %vm2420 = vcmp.eq.s32.totalorder %v1516, %v1813
      %vm2421 = vcmp.eq.s32.totalorder %v1517, %v1813
      %vm2422 = vcmp.eq.s32.totalorder %v1514, %v1833
      %vm2423 = vcmp.eq.s32.totalorder %v1515, %v1833
      %vm2424 = vcmp.eq.s32.totalorder %v1516, %v1833
      %vm2425 = vcmp.eq.s32.totalorder %v1517, %v1833
      %vm2426 = vcmp.eq.s32.totalorder %v1514, %v1853
      %vm2427 = vcmp.eq.s32.totalorder %v1515, %v1853
      %vm2428 = vcmp.eq.s32.totalorder %v1516, %v1853
      %vm2429 = vcmp.eq.s32.totalorder %v1517, %v1853
      %vm2430 = vcmp.eq.s32.totalorder %v1514, %v1873
      %vm2431 = vcmp.eq.s32.totalorder %v1515, %v1873
      %vm2432 = vcmp.eq.s32.totalorder %v1516, %v1873
      %vm2433 = vcmp.eq.s32.totalorder %v1517, %v1873
      %vm2434 = vcmp.eq.s32.totalorder %v1514, %v1893
      %vm2435 = vcmp.eq.s32.totalorder %v1515, %v1893
      %vm2436 = vcmp.eq.s32.totalorder %v1516, %v1893
      %vm2437 = vcmp.eq.s32.totalorder %v1517, %v1893
      %vm2438 = vcmp.eq.s32.totalorder %v1514, %v1913
      %vm2439 = vcmp.eq.s32.totalorder %v1515, %v1913
      %vm2440 = vcmp.eq.s32.totalorder %v1516, %v1913
      %vm2441 = vcmp.eq.s32.totalorder %v1517, %v1913
      %vm2442 = vcmp.eq.s32.totalorder %v1514, %v1933
      %vm2443 = vcmp.eq.s32.totalorder %v1515, %v1933
      %vm2444 = vcmp.eq.s32.totalorder %v1516, %v1933
      %vm2445 = vcmp.eq.s32.totalorder %v1517, %v1933
      %vm2446 = vcmp.eq.s32.totalorder %v1514, %v1953
      %vm2447 = vcmp.eq.s32.totalorder %v1515, %v1953
      %vm2448 = vcmp.eq.s32.totalorder %v1516, %v1953
      %vm2449 = vcmp.eq.s32.totalorder %v1517, %v1953
      %vm2450 = vcmp.eq.s32.totalorder %v1514, %v1973
      %vm2451 = vcmp.eq.s32.totalorder %v1515, %v1973
      %vm2452 = vcmp.eq.s32.totalorder %v1516, %v1973
      %vm2453 = vcmp.eq.s32.totalorder %v1517, %v1973
      %vm2454 = vcmp.eq.s32.totalorder %v1514, %v1993
      %vm2455 = vcmp.eq.s32.totalorder %v1515, %v1993
      %vm2456 = vcmp.eq.s32.totalorder %v1516, %v1993
      %vm2457 = vcmp.eq.s32.totalorder %v1517, %v1993
      %vm2458 = vcmp.eq.s32.totalorder %v1514, %v2013
      %vm2459 = vcmp.eq.s32.totalorder %v1515, %v2013
      %vm2460 = vcmp.eq.s32.totalorder %v1516, %v2013
      %vm2461 = vcmp.eq.s32.totalorder %v1517, %v2013
      %vm2462 = vcmp.eq.s32.totalorder %v1514, %v2033
      %vm2463 = vcmp.eq.s32.totalorder %v1515, %v2033
      %vm2464 = vcmp.eq.s32.totalorder %v1516, %v2033
      %vm2465 = vcmp.eq.s32.totalorder %v1517, %v2033
      %vm2466 = vcmp.eq.s32.totalorder %v1514, %v2053
      %vm2467 = vcmp.eq.s32.totalorder %v1515, %v2053
      %vm2468 = vcmp.eq.s32.totalorder %v1516, %v2053
      %vm2469 = vcmp.eq.s32.totalorder %v1517, %v2053
      %vm2470 = vcmp.eq.s32.totalorder %v1514, %v2073
      %vm2471 = vcmp.eq.s32.totalorder %v1515, %v2073
      %vm2472 = vcmp.eq.s32.totalorder %v1516, %v2073
      %vm2473 = vcmp.eq.s32.totalorder %v1517, %v2073
      %vm2474 = vcmp.eq.s32.totalorder %v1514, %v2093
      %vm2475 = vcmp.eq.s32.totalorder %v1515, %v2093
      %vm2476 = vcmp.eq.s32.totalorder %v1516, %v2093
      %vm2477 = vcmp.eq.s32.totalorder %v1517, %v2093
      %vm2478 = vcmp.eq.s32.totalorder %v1514, %v2113
      %vm2479 = vcmp.eq.s32.totalorder %v1515, %v2113
      %vm2480 = vcmp.eq.s32.totalorder %v1516, %v2113
      %vm2481 = vcmp.eq.s32.totalorder %v1517, %v2113
      %vm2482 = vcmp.eq.s32.totalorder %v1514, %v2133
      %vm2483 = vcmp.eq.s32.totalorder %v1515, %v2133
      %vm2484 = vcmp.eq.s32.totalorder %v1516, %v2133
      %vm2485 = vcmp.eq.s32.totalorder %v1517, %v2133
      %vm2486 = vcmp.eq.s32.totalorder %v1514, %v2153
      %vm2487 = vcmp.eq.s32.totalorder %v1515, %v2153
      %vm2488 = vcmp.eq.s32.totalorder %v1516, %v2153
      %vm2489 = vcmp.eq.s32.totalorder %v1517, %v2153
      %vm2490 = vcmp.eq.s32.totalorder %v1514, %v2173
      %vm2491 = vcmp.eq.s32.totalorder %v1515, %v2173
      %vm2492 = vcmp.eq.s32.totalorder %v1516, %v2173
      %vm2493 = vcmp.eq.s32.totalorder %v1517, %v2173
      %vm2494 = vcmp.eq.s32.totalorder %v1514, %v2193
      %vm2495 = vcmp.eq.s32.totalorder %v1515, %v2193
      %vm2496 = vcmp.eq.s32.totalorder %v1516, %v2193
      %vm2497 = vcmp.eq.s32.totalorder %v1517, %v2193
      %vm2498 = vcmp.eq.s32.totalorder %v1514, %v2213
      %vm2499 = vcmp.eq.s32.totalorder %v1515, %v2213
      %vm2500 = vcmp.eq.s32.totalorder %v1516, %v2213
      %vm2501 = vcmp.eq.s32.totalorder %v1517, %v2213
      %vm2502 = vcmp.eq.s32.totalorder %v1514, %v2233
      %vm2503 = vcmp.eq.s32.totalorder %v1515, %v2233
      %vm2504 = vcmp.eq.s32.totalorder %v1516, %v2233
      %vm2505 = vcmp.eq.s32.totalorder %v1517, %v2233
      %vm2506 = vcmp.eq.s32.totalorder %v1514, %v2253
      %vm2507 = vcmp.eq.s32.totalorder %v1515, %v2253
      %vm2508 = vcmp.eq.s32.totalorder %v1516, %v2253
      %vm2509 = vcmp.eq.s32.totalorder %v1517, %v2253
      %vm2510 = vcmp.eq.s32.totalorder %v1514, %v2273
      %vm2511 = vcmp.eq.s32.totalorder %v1515, %v2273
      %vm2512 = vcmp.eq.s32.totalorder %v1516, %v2273
      %vm2513 = vcmp.eq.s32.totalorder %v1517, %v2273
      %vm2514 = vcmp.eq.s32.totalorder %v1514, %v2293
      %vm2515 = vcmp.eq.s32.totalorder %v1515, %v2293
      %vm2516 = vcmp.eq.s32.totalorder %v1516, %v2293
      %vm2517 = vcmp.eq.s32.totalorder %v1517, %v2293
      %vm2518 = vcmp.eq.s32.totalorder %v1514, %v2313
      %vm2519 = vcmp.eq.s32.totalorder %v1515, %v2313
      %vm2520 = vcmp.eq.s32.totalorder %v1516, %v2313
      %vm2521 = vcmp.eq.s32.totalorder %v1517, %v2313
      %vm2522 = vcmp.eq.s32.totalorder %v1514, %v2333
      %vm2523 = vcmp.eq.s32.totalorder %v1515, %v2333
      %vm2524 = vcmp.eq.s32.totalorder %v1516, %v2333
      %vm2525 = vcmp.eq.s32.totalorder %v1517, %v2333
      %vm2526 = vcmp.eq.s32.totalorder %v1514, %v2353
      %vm2527 = vcmp.eq.s32.totalorder %v1515, %v2353
      %vm2528 = vcmp.eq.s32.totalorder %v1516, %v2353
      %vm2529 = vcmp.eq.s32.totalorder %v1517, %v2353
      %vm2530 = vcmp.eq.s32.totalorder %v1514, %v2373
      %vm2531 = vcmp.eq.s32.totalorder %v1515, %v2373
      %vm2532 = vcmp.eq.s32.totalorder %v1516, %v2373
      %vm2533 = vcmp.eq.s32.totalorder %v1517, %v2373
      %vm2534 = vcmp.eq.s32.totalorder %v1514, %v2393
      %vm2535 = vcmp.eq.s32.totalorder %v1515, %v2393
      %vm2536 = vcmp.eq.s32.totalorder %v1516, %v2393
      %vm2537 = vcmp.eq.s32.totalorder %v1517, %v2393
      %vm2538 = vcmp.eq.s32.totalorder %v1514, %v2413
      %vm2539 = vcmp.eq.s32.totalorder %v1515, %v2413
      %vm2540 = vcmp.eq.s32.totalorder %v1516, %v2413
      %vm2541 = vcmp.eq.s32.totalorder %v1517, %v2413
      %v2542 = vsel %vm2414, 1, 0
      %v2543 = vsel %vm2415, 1, 0
      %v2544 = vsel %vm2416, 1, 0
      %v2545 = vsel %vm2417, 1, 0
      %v2546 = vsel %vm2418, 1, 0
      %v2547 = vsel %vm2419, 1, 0
      %v2548 = vsel %vm2420, 1, 0
      %v2549 = vsel %vm2421, 1, 0
      %v2550 = vsel %vm2422, 1, 0
      %v2551 = vsel %vm2423, 1, 0
      %v2552 = vsel %vm2424, 1, 0
      %v2553 = vsel %vm2425, 1, 0
      %v2554 = vsel %vm2426, 1, 0
      %v2555 = vsel %vm2427, 1, 0
      %v2556 = vsel %vm2428, 1, 0
      %v2557 = vsel %vm2429, 1, 0
      %v2558 = vsel %vm2430, 1, 0
      %v2559 = vsel %vm2431, 1, 0
      %v2560 = vsel %vm2432, 1, 0
      %v2561 = vsel %vm2433, 1, 0
      %v2562 = vsel %vm2434, 1, 0
      %v2563 = vsel %vm2435, 1, 0
      %v2564 = vsel %vm2436, 1, 0
      %v2565 = vsel %vm2437, 1, 0
      %v2566 = vsel %vm2438, 1, 0
      %v2567 = vsel %vm2439, 1, 0
      %v2568 = vsel %vm2440, 1, 0
      %v2569 = vsel %vm2441, 1, 0
      %v2570 = vsel %vm2442, 1, 0
      %v2571 = vsel %vm2443, 1, 0
      %v2572 = vsel %vm2444, 1, 0
      %v2573 = vsel %vm2445, 1, 0
      %v2574 = vsel %vm2446, 1, 0
      %v2575 = vsel %vm2447, 1, 0
      %v2576 = vsel %vm2448, 1, 0
      %v2577 = vsel %vm2449, 1, 0
      %v2578 = vsel %vm2450, 1, 0
      %v2579 = vsel %vm2451, 1, 0
      %v2580 = vsel %vm2452, 1, 0
      %v2581 = vsel %vm2453, 1, 0
      %v2582 = vsel %vm2454, 1, 0
      %v2583 = vsel %vm2455, 1, 0
      %v2584 = vsel %vm2456, 1, 0
      %v2585 = vsel %vm2457, 1, 0
      %v2586 = vsel %vm2458, 1, 0
      %v2587 = vsel %vm2459, 1, 0
      %v2588 = vsel %vm2460, 1, 0
      %v2589 = vsel %vm2461, 1, 0
      %v2590 = vsel %vm2462, 1, 0
      %v2591 = vsel %vm2463, 1, 0
      %v2592 = vsel %vm2464, 1, 0
      %v2593 = vsel %vm2465, 1, 0
      %v2594 = vsel %vm2466, 1, 0
      %v2595 = vsel %vm2467, 1, 0
      %v2596 = vsel %vm2468, 1, 0
      %v2597 = vsel %vm2469, 1, 0
      %v2598 = vsel %vm2470, 1, 0
      %v2599 = vsel %vm2471, 1, 0
      %v2600 = vsel %vm2472, 1, 0
      %v2601 = vsel %vm2473, 1, 0
      %v2602 = vsel %vm2474, 1, 0
      %v2603 = vsel %vm2475, 1, 0
      %v2604 = vsel %vm2476, 1, 0
      %v2605 = vsel %vm2477, 1, 0
      %v2606 = vsel %vm2478, 1, 0
      %v2607 = vsel %vm2479, 1, 0
      %v2608 = vsel %vm2480, 1, 0
      %v2609 = vsel %vm2481, 1, 0
      %v2610 = vsel %vm2482, 1, 0
      %v2611 = vsel %vm2483, 1, 0
      %v2612 = vsel %vm2484, 1, 0
      %v2613 = vsel %vm2485, 1, 0
      %v2614 = vsel %vm2486, 1, 0
      %v2615 = vsel %vm2487, 1, 0
      %v2616 = vsel %vm2488, 1, 0
      %v2617 = vsel %vm2489, 1, 0
      %v2618 = vsel %vm2490, 1, 0
      %v2619 = vsel %vm2491, 1, 0
      %v2620 = vsel %vm2492, 1, 0
      %v2621 = vsel %vm2493, 1, 0
      %v2622 = vsel %vm2494, 1, 0
      %v2623 = vsel %vm2495, 1, 0
      %v2624 = vsel %vm2496, 1, 0
      %v2625 = vsel %vm2497, 1, 0
      %v2626 = vsel %vm2498, 1, 0
      %v2627 = vsel %vm2499, 1, 0
      %v2628 = vsel %vm2500, 1, 0
      %v2629 = vsel %vm2501, 1, 0
      %v2630 = vsel %vm2502, 1, 0
      %v2631 = vsel %vm2503, 1, 0
      %v2632 = vsel %vm2504, 1, 0
      %v2633 = vsel %vm2505, 1, 0
      %v2634 = vsel %vm2506, 1, 0
      %v2635 = vsel %vm2507, 1, 0
      %v2636 = vsel %vm2508, 1, 0
      %v2637 = vsel %vm2509, 1, 0
      %v2638 = vsel %vm2510, 1, 0
      %v2639 = vsel %vm2511, 1, 0
      %v2640 = vsel %vm2512, 1, 0
      %v2641 = vsel %vm2513, 1, 0
      %v2642 = vsel %vm2514, 1, 0
      %v2643 = vsel %vm2515, 1, 0
      %v2644 = vsel %vm2516, 1, 0
      %v2645 = vsel %vm2517, 1, 0
      %v2646 = vsel %vm2518, 1, 0
      %v2647 = vsel %vm2519, 1, 0
      %v2648 = vsel %vm2520, 1, 0
      %v2649 = vsel %vm2521, 1, 0
      %v2650 = vsel %vm2522, 1, 0
      %v2651 = vsel %vm2523, 1, 0
      %v2652 = vsel %vm2524, 1, 0
      %v2653 = vsel %vm2525, 1, 0
      %v2654 = vsel %vm2526, 1, 0
      %v2655 = vsel %vm2527, 1, 0
      %v2656 = vsel %vm2528, 1, 0
      %v2657 = vsel %vm2529, 1, 0
      %v2658 = vsel %vm2530, 1, 0
      %v2659 = vsel %vm2531, 1, 0
      %v2660 = vsel %vm2532, 1, 0
      %v2661 = vsel %vm2533, 1, 0
      %v2662 = vsel %vm2534, 1, 0
      %v2663 = vsel %vm2535, 1, 0
      %v2664 = vsel %vm2536, 1, 0
      %v2665 = vsel %vm2537, 1, 0
      %v2666 = vsel %vm2538, 1, 0
      %v2667 = vsel %vm2539, 1, 0
      %v2668 = vsel %vm2540, 1, 0
      %v2669 = vsel %vm2541, 1, 0
      %v2670 = vcvt.s32.f32 %v2542
      %v2671 = vcvt.s32.f32 %v2543
      %v2672 = vcvt.s32.f32 %v2544
      %v2673 = vcvt.s32.f32 %v2545
      %v2674 = vcvt.s32.f32 %v2546
      %v2675 = vcvt.s32.f32 %v2547
      %v2676 = vcvt.s32.f32 %v2548
      %v2677 = vcvt.s32.f32 %v2549
      %v2678 = vcvt.s32.f32 %v2550
      %v2679 = vcvt.s32.f32 %v2551
      %v2680 = vcvt.s32.f32 %v2552
      %v2681 = vcvt.s32.f32 %v2553
      %v2682 = vcvt.s32.f32 %v2554
      %v2683 = vcvt.s32.f32 %v2555
      %v2684 = vcvt.s32.f32 %v2556
      %v2685 = vcvt.s32.f32 %v2557
      %v2686 = vcvt.s32.f32 %v2558
      %v2687 = vcvt.s32.f32 %v2559
      %v2688 = vcvt.s32.f32 %v2560
      %v2689 = vcvt.s32.f32 %v2561
      %v2690 = vcvt.s32.f32 %v2562
      %v2691 = vcvt.s32.f32 %v2563
      %v2692 = vcvt.s32.f32 %v2564
      %v2693 = vcvt.s32.f32 %v2565
      %v2694 = vcvt.s32.f32 %v2566
      %v2695 = vcvt.s32.f32 %v2567
      %v2696 = vcvt.s32.f32 %v2568
      %v2697 = vcvt.s32.f32 %v2569
      %v2698 = vcvt.s32.f32 %v2570
      %v2699 = vcvt.s32.f32 %v2571
      %v2700 = vcvt.s32.f32 %v2572
      %v2701 = vcvt.s32.f32 %v2573
      %v2702 = vcvt.s32.f32 %v2574
      %v2703 = vcvt.s32.f32 %v2575
      %v2704 = vcvt.s32.f32 %v2576
      %v2705 = vcvt.s32.f32 %v2577
      %v2706 = vcvt.s32.f32 %v2578
      %v2707 = vcvt.s32.f32 %v2579
      %v2708 = vcvt.s32.f32 %v2580
      %v2709 = vcvt.s32.f32 %v2581
      %v2710 = vcvt.s32.f32 %v2582
      %v2711 = vcvt.s32.f32 %v2583
      %v2712 = vcvt.s32.f32 %v2584
      %v2713 = vcvt.s32.f32 %v2585
      %v2714 = vcvt.s32.f32 %v2586
      %v2715 = vcvt.s32.f32 %v2587
      %v2716 = vcvt.s32.f32 %v2588
      %v2717 = vcvt.s32.f32 %v2589
      %v2718 = vcvt.s32.f32 %v2590
      %v2719 = vcvt.s32.f32 %v2591
      %v2720 = vcvt.s32.f32 %v2592
      %v2721 = vcvt.s32.f32 %v2593
      %v2722 = vcvt.s32.f32 %v2594
      %v2723 = vcvt.s32.f32 %v2595
      %v2724 = vcvt.s32.f32 %v2596
      %v2725 = vcvt.s32.f32 %v2597
      %v2726 = vcvt.s32.f32 %v2598
      %v2727 = vcvt.s32.f32 %v2599
      %v2728 = vcvt.s32.f32 %v2600
      %v2729 = vcvt.s32.f32 %v2601
      %v2730 = vcvt.s32.f32 %v2602
      %v2731 = vcvt.s32.f32 %v2603
      %v2732 = vcvt.s32.f32 %v2604
      %v2733 = vcvt.s32.f32 %v2605
      %v2734 = vcvt.s32.f32 %v2606
      %v2735 = vcvt.s32.f32 %v2607
      %v2736 = vcvt.s32.f32 %v2608
      %v2737 = vcvt.s32.f32 %v2609
      %v2738 = vcvt.s32.f32 %v2610
      %v2739 = vcvt.s32.f32 %v2611
      %v2740 = vcvt.s32.f32 %v2612
      %v2741 = vcvt.s32.f32 %v2613
      %v2742 = vcvt.s32.f32 %v2614
      %v2743 = vcvt.s32.f32 %v2615
      %v2744 = vcvt.s32.f32 %v2616
      %v2745 = vcvt.s32.f32 %v2617
      %v2746 = vcvt.s32.f32 %v2618
      %v2747 = vcvt.s32.f32 %v2619
      %v2748 = vcvt.s32.f32 %v2620
      %v2749 = vcvt.s32.f32 %v2621
      %v2750 = vcvt.s32.f32 %v2622
      %v2751 = vcvt.s32.f32 %v2623
      %v2752 = vcvt.s32.f32 %v2624
      %v2753 = vcvt.s32.f32 %v2625
      %v2754 = vcvt.s32.f32 %v2626
      %v2755 = vcvt.s32.f32 %v2627
      %v2756 = vcvt.s32.f32 %v2628
      %v2757 = vcvt.s32.f32 %v2629
      %v2758 = vcvt.s32.f32 %v2630
      %v2759 = vcvt.s32.f32 %v2631
      %v2760 = vcvt.s32.f32 %v2632
      %v2761 = vcvt.s32.f32 %v2633
      %v2762 = vcvt.s32.f32 %v2634
      %v2763 = vcvt.s32.f32 %v2635
      %v2764 = vcvt.s32.f32 %v2636
      %v2765 = vcvt.s32.f32 %v2637
      %v2766 = vcvt.s32.f32 %v2638
      %v2767 = vcvt.s32.f32 %v2639
      %v2768 = vcvt.s32.f32 %v2640
      %v2769 = vcvt.s32.f32 %v2641
      %v2770 = vcvt.s32.f32 %v2642
      %v2771 = vcvt.s32.f32 %v2643
      %v2772 = vcvt.s32.f32 %v2644
      %v2773 = vcvt.s32.f32 %v2645
      %v2774 = vcvt.s32.f32 %v2646
      %v2775 = vcvt.s32.f32 %v2647
      %v2776 = vcvt.s32.f32 %v2648
      %v2777 = vcvt.s32.f32 %v2649
      %v2778 = vcvt.s32.f32 %v2650
      %v2779 = vcvt.s32.f32 %v2651
      %v2780 = vcvt.s32.f32 %v2652
      %v2781 = vcvt.s32.f32 %v2653
      %v2782 = vcvt.s32.f32 %v2654
      %v2783 = vcvt.s32.f32 %v2655
      %v2784 = vcvt.s32.f32 %v2656
      %v2785 = vcvt.s32.f32 %v2657
      %v2786 = vcvt.s32.f32 %v2658
      %v2787 = vcvt.s32.f32 %v2659
      %v2788 = vcvt.s32.f32 %v2660
      %v2789 = vcvt.s32.f32 %v2661
      %v2790 = vcvt.s32.f32 %v2662
      %v2791 = vcvt.s32.f32 %v2663
      %v2792 = vcvt.s32.f32 %v2664
      %v2793 = vcvt.s32.f32 %v2665
      %v2794 = vcvt.s32.f32 %v2666
      %v2795 = vcvt.s32.f32 %v2667
      %v2796 = vcvt.s32.f32 %v2668
      %v2797 = vcvt.s32.f32 %v2669
      %2798 = vmatprep.subr.mxu0 0.0
      %2799 = vmatpush1.msra.mxu0 %v336
      %2800 = vmatprep.subr.mxu0 0.0
      %2801 = vmatpush1.msra.mxu0 %v337
      %2802 = vmatprep.subr.mxu0 0.0
      %2803 = vmatpush1.msra.mxu0 %v338
      %2804 = vmatprep.subr.mxu0 0.0
      %2805 = vmatpush1.msra.mxu0 %v339
      %2806 = vmatprep.subr.mxu0 0.0
      %2807 = vmatpush1.msra.mxu0 %v340
      %2808 = vmatprep.subr.mxu0 0.0
      %2809 = vmatpush1.msra.mxu0 %v341
      %2810 = vmatprep.subr.mxu0 0.0
      %2811 = vmatpush1.msra.mxu0 %v342
      %2812 = vmatprep.subr.mxu0 0.0
      %2813 = vmatpush1.msra.mxu0 %v343
      %2814 = vmatprep.subr.mxu0 0.0
      %2815 = vmatpush1.msra.mxu0 %v344
      %2816 = vmatprep.subr.mxu0 0.0
      %2817 = vmatpush1.msra.mxu0 %v345
      %2818 = vmatprep.subr.mxu0 0.0
      %2819 = vmatpush1.msra.mxu0 %v346
      %2820 = vmatprep.subr.mxu0 0.0
      %2821 = vmatpush1.msra.mxu0 %v347
      %2822 = vmatprep.subr.mxu0 0.0
      %2823 = vmatpush1.msra.mxu0 %v348
      %2824 = vmatprep.subr.mxu0 0.0
      %2825 = vmatpush1.msra.mxu0 %v349
      %2826 = vmatprep.subr.mxu0 0.0
      %2827 = vmatpush1.msra.mxu0 %v350
      %2828 = vmatprep.subr.mxu0 0.0
      %2829 = vmatpush1.msra.mxu0 %v351
      %2830 = vmatprep.subr.mxu0 0.0
      %2831 = vmatpush1.msra.mxu0 %v352
      %2832 = vmatprep.subr.mxu0 0.0
      %2833 = vmatpush1.msra.mxu0 %v353
      %2834 = vmatprep.subr.mxu0 0.0
      %2835 = vmatpush1.msra.mxu0 %v354
      %2836 = vmatprep.subr.mxu0 0.0
      %2837 = vmatpush1.msra.mxu0 %v355
      %2838 = vmatprep.subr.mxu0 0.0
      %2839 = vmatpush1.msra.mxu0 %v356
      %2840 = vmatprep.subr.mxu0 0.0
      %2841 = vmatpush1.msra.mxu0 %v357
      %2842 = vmatprep.subr.mxu0 0.0
      %2843 = vmatpush1.msra.mxu0 %v358
      %2844 = vmatprep.subr.mxu0 0.0
      %2845 = vmatpush1.msra.mxu0 %v359
      %2846 = vmatprep.subr.mxu0 0.0
      %2847 = vmatpush1.msra.mxu0 %v360
      %2848 = vmatprep.subr.mxu0 0.0
      %2849 = vmatpush1.msra.mxu0 %v361
      %2850 = vmatprep.subr.mxu0 0.0
      %2851 = vmatpush1.msra.mxu0 %v362
      %2852 = vmatprep.subr.mxu0 0.0
      %2853 = vmatpush1.msra.mxu0 %v363
      %2854 = vmatprep.subr.mxu0 0.0
      %2855 = vmatpush1.msra.mxu0 %v364
      %2856 = vmatprep.subr.mxu0 0.0
      %2857 = vmatpush1.msra.mxu0 %v365
      %2858 = vmatprep.subr.mxu0 0.0
      %2859 = vmatpush1.msra.mxu0 %v366
      %2860 = vmatprep.subr.mxu0 0.0
      %2861 = vmatpush1.msra.mxu0 %v367
      %2862 = vmatprep.mubr.f32.mxu0 %v2671
      %2863 = vmatmul.mubr.f32.gmra.mrb[0].mxu0 %v2670
      %v2864 = vpop.f32.mrb[0].mxu0
      %v2865 = vadd.f32 0.0, %v2864
      %v2866 = vpop.f32.mrb[0].mxu0
      %2867 = vmatprep.mubr.f32.mxu0 %v2675
      %2868 = vmatmul.mubr.f32.gmra.mrb[0].mxu0 %v2674
      %v2869 = vpop.f32.mrb[0].mxu0
      %v2870 = vadd.f32 0.0, %v2869
      %v2871 = vpop.f32.mrb[0].mxu0
      %2872 = vmatprep.mubr.f32.mxu0 %v2679
      %2873 = vmatmul.mubr.f32.gmra.mrb[0].mxu0 %v2678
      %v2874 = vpop.f32.mrb[0].mxu0
      %v2875 = vadd.f32 0.0, %v2874
      %v2876 = vpop.f32.mrb[0].mxu0
      %2877 = vmatprep.mubr.f32.mxu0 %v2683
      %2878 = vmatmul.mubr.f32.gmra.mrb[0].mxu0 %v2682
      %v2879 = vpop.f32.mrb[0].mxu0
      %v2880 = vadd.f32 0.0, %v2879
      %v2881 = vpop.f32.mrb[0].mxu0
      %2882 = vmatprep.mubr.f32.mxu0 %v2687
      %2883 = vmatmul.mubr.f32.gmra.mrb[0].mxu0 %v2686
      %v2884 = vpop.f32.mrb[0].mxu0
      %v2885 = vadd.f32 0.0, %v2884
      %v2886 = vpop.f32.mrb[0].mxu0
      %2887 = vmatprep.mubr.f32.mxu0 %v2691
      %2888 = vmatmul.mubr.f32.gmra.mrb[0].mxu0 %v2690
      %v2889 = vpop.f32.mrb[0].mxu0
      %v2890 = vadd.f32 0.0, %v2889
      %v2891 = vpop.f32.mrb[0].mxu0
      %2892 = vmatprep.mubr.f32.mxu0 %v2695
      %2893 = vmatmul.mubr.f32.gmra.mrb[0].mxu0 %v2694
      %v2894 = vpop.f32.mrb[0].mxu0
      %v2895 = vadd.f32 0.0, %v2894
      %v2896 = vpop.f32.mrb[0].mxu0
      %2897 = vmatprep.mubr.f32.mxu0 %v2699
      %2898 = vmatmul.mubr.f32.gmra.mrb[0].mxu0 %v2698
      %v2899 = vpop.f32.mrb[0].mxu0
      %v2900 = vadd.f32 0.0, %v2899
      %v2901 = vpop.f32.mrb[0].mxu0
      %2902 = vmatprep.mubr.f32.mxu0 %v2703
      %2903 = vmatmul.mubr.f32.gmra.mrb[0].mxu0 %v2702
      %v2904 = vpop.f32.mrb[0].mxu0
      %v2905 = vadd.f32 0.0, %v2904
      %v2906 = vpop.f32.mrb[0].mxu0
      %2907 = vmatprep.mubr.f32.mxu0 %v2707
      %2908 = vmatmul.mubr.f32.gmra.mrb[0].mxu0 %v2706
      %v2909 = vpop.f32.mrb[0].mxu0
      %v2910 = vadd.f32 0.0, %v2909
      %v2911 = vpop.f32.mrb[0].mxu0
      %2912 = vmatprep.mubr.f32.mxu0 %v2711
      %2913 = vmatmul.mubr.f32.gmra.mrb[0].mxu0 %v2710
      %v2914 = vpop.f32.mrb[0].mxu0
      %v2915 = vadd.f32 0.0, %v2914
      %v2916 = vpop.f32.mrb[0].mxu0
      %2917 = vmatprep.mubr.f32.mxu0 %v2715
      %2918 = vmatmul.mubr.f32.gmra.mrb[0].mxu0 %v2714
      %v2919 = vpop.f32.mrb[0].mxu0
      %v2920 = vadd.f32 0.0, %v2919
      %v2921 = vpop.f32.mrb[0].mxu0
      %2922 = vmatprep.mubr.f32.mxu0 %v2719
      %2923 = vmatmul.mubr.f32.gmra.mrb[0].mxu0 %v2718
      %v2924 = vpop.f32.mrb[0].mxu0
      %v2925 = vadd.f32 0.0, %v2924
      %v2926 = vpop.f32.mrb[0].mxu0
      %2927 = vmatprep.mubr.f32.mxu0 %v2723
      %2928 = vmatmul.mubr.f32.gmra.mrb[0].mxu0 %v2722
      %v2929 = vpop.f32.mrb[0].mxu0
      %v2930 = vadd.f32 0.0, %v2929
      %v2931 = vpop.f32.mrb[0].mxu0
      %2932 = vmatprep.mubr.f32.mxu0 %v2727
      %2933 = vmatmul.mubr.f32.gmra.mrb[0].mxu0 %v2726
      %v2934 = vpop.f32.mrb[0].mxu0
      %v2935 = vadd.f32 0.0, %v2934
      %v2936 = vpop.f32.mrb[0].mxu0
      %2937 = vmatprep.mubr.f32.mxu0 %v2731
      %2938 = vmatmul.mubr.f32.gmra.mrb[0].mxu0 %v2730
      %v2939 = vpop.f32.mrb[0].mxu0
      %v2940 = vadd.f32 0.0, %v2939
      %v2941 = vpop.f32.mrb[0].mxu0
      %2942 = vmatprep.mubr.f32.mxu0 %v2735
      %2943 = vmatmul.mubr.f32.gmra.mrb[0].mxu0 %v2734
      %v2944 = vpop.f32.mrb[0].mxu0
      %v2945 = vadd.f32 0.0, %v2944
      %v2946 = vpop.f32.mrb[0].mxu0
      %2947 = vmatprep.mubr.f32.mxu0 %v2739
      %2948 = vmatmul.mubr.f32.gmra.mrb[0].mxu0 %v2738
      %v2949 = vpop.f32.mrb[0].mxu0
      %v2950 = vadd.f32 0.0, %v2949
      %v2951 = vpop.f32.mrb[0].mxu0
      %2952 = vmatprep.mubr.f32.mxu0 %v2743
      %2953 = vmatmul.mubr.f32.gmra.mrb[0].mxu0 %v2742
      %v2954 = vpop.f32.mrb[0].mxu0
      %v2955 = vadd.f32 0.0, %v2954
      %v2956 = vpop.f32.mrb[0].mxu0
      %2957 = vmatprep.mubr.f32.mxu0 %v2747
      %2958 = vmatmul.mubr.f32.gmra.mrb[0].mxu0 %v2746
      %v2959 = vpop.f32.mrb[0].mxu0
      %v2960 = vadd.f32 0.0, %v2959
      %v2961 = vpop.f32.mrb[0].mxu0
      %2962 = vmatprep.mubr.f32.mxu0 %v2751
      %2963 = vmatmul.mubr.f32.gmra.mrb[0].mxu0 %v2750
      %v2964 = vpop.f32.mrb[0].mxu0
      %v2965 = vadd.f32 0.0, %v2964
      %v2966 = vpop.f32.mrb[0].mxu0
      %2967 = vmatprep.mubr.f32.mxu0 %v2755
      %2968 = vmatmul.mubr.f32.gmra.mrb[0].mxu0 %v2754
      %v2969 = vpop.f32.mrb[0].mxu0
      %v2970 = vadd.f32 0.0, %v2969
      %v2971 = vpop.f32.mrb[0].mxu0
      %2972 = vmatprep.mubr.f32.mxu0 %v2759
      %2973 = vmatmul.mubr.f32.gmra.mrb[0].mxu0 %v2758
      %v2974 = vpop.f32.mrb[0].mxu0
      %v2975 = vadd.f32 0.0, %v2974
      %v2976 = vpop.f32.mrb[0].mxu0
      %2977 = vmatprep.mubr.f32.mxu0 %v2763
      %2978 = vmatmul.mubr.f32.gmra.mrb[0].mxu0 %v2762
      %v2979 = vpop.f32.mrb[0].mxu0
      %v2980 = vadd.f32 0.0, %v2979
      %v2981 = vpop.f32.mrb[0].mxu0
      %2982 = vmatprep.mubr.f32.mxu0 %v2767
      %2983 = vmatmul.mubr.f32.gmra.mrb[0].mxu0 %v2766
      %v2984 = vpop.f32.mrb[0].mxu0
      %v2985 = vadd.f32 0.0, %v2984
      %v2986 = vpop.f32.mrb[0].mxu0
      %2987 = vmatprep.mubr.f32.mxu0 %v2771
      %2988 = vmatmul.mubr.f32.gmra.mrb[0].mxu0 %v2770
      %v2989 = vpop.f32.mrb[0].mxu0
      %v2990 = vadd.f32 0.0, %v2989
      %v2991 = vpop.f32.mrb[0].mxu0
      %2992 = vmatprep.mubr.f32.mxu0 %v2775
      %2993 = vmatmul.mubr.f32.gmra.mrb[0].mxu0 %v2774
      %v2994 = vpop.f32.mrb[0].mxu0
      %v2995 = vadd.f32 0.0, %v2994
      %v2996 = vpop.f32.mrb[0].mxu0
      %2997 = vmatprep.mubr.f32.mxu0 %v2779
      %2998 = vmatmul.mubr.f32.gmra.mrb[0].mxu0 %v2778
      %v2999 = vpop.f32.mrb[0].mxu0
      %v3000 = vadd.f32 0.0, %v2999
      %v3001 = vpop.f32.mrb[0].mxu0
      %3002 = vmatprep.mubr.f32.mxu0 %v2783
      %3003 = vmatmul.mubr.f32.gmra.mrb[0].mxu0 %v2782
      %v3004 = vpop.f32.mrb[0].mxu0
      %v3005 = vadd.f32 0.0, %v3004
      %v3006 = vpop.f32.mrb[0].mxu0
      %3007 = vmatprep.mubr.f32.mxu0 %v2787
      %3008 = vmatmul.mubr.f32.gmra.mrb[0].mxu0 %v2786
      %v3009 = vpop.f32.mrb[0].mxu0
      %v3010 = vadd.f32 0.0, %v3009
      %v3011 = vpop.f32.mrb[0].mxu0
      %3012 = vmatprep.mubr.f32.mxu0 %v2791
      %3013 = vmatmul.mubr.f32.gmra.mrb[0].mxu0 %v2790
      %v3014 = vpop.f32.mrb[0].mxu0
      %v3015 = vadd.f32 0.0, %v3014
      %v3016 = vpop.f32.mrb[0].mxu0
      %3017 = vmatprep.mubr.f32.mxu0 %v2795
      %3018 = vmatmul.mubr.f32.gmra.mrb[0].mxu0 %v2794
      %v3019 = vpop.f32.mrb[0].mxu0
      %v3020 = vadd.f32 0.0, %v3019
      %v3021 = vpop.f32.mrb[0].mxu0
      %3022 = vdwg.mxu0
      %3023 = vmatprep.subr.mxu0 0.0
      %3024 = vmatpush1.msra.mxu0 %v368
      %3025 = vmatprep.subr.mxu0 0.0
      %3026 = vmatpush1.msra.mxu0 %v369
      %3027 = vmatprep.subr.mxu0 0.0
      %3028 = vmatpush1.msra.mxu0 %v370
      %3029 = vmatprep.subr.mxu0 0.0
      %3030 = vmatpush1.msra.mxu0 %v371
      %3031 = vmatprep.subr.mxu0 0.0
      %3032 = vmatpush1.msra.mxu0 %v372
      %3033 = vmatprep.subr.mxu0 0.0
      %3034 = vmatpush1.msra.mxu0 %v373
      %3035 = vmatprep.subr.mxu0 0.0
      %3036 = vmatpush1.msra.mxu0 %v374
      %3037 = vmatprep.subr.mxu0 0.0
      %3038 = vmatpush1.msra.mxu0 %v375
      %3039 = vmatprep.subr.mxu0 0.0
      %3040 = vmatpush1.msra.mxu0 %v376
      %3041 = vmatprep.subr.mxu0 0.0
      %3042 = vmatpush1.msra.mxu0 %v377
      %3043 = vmatprep.subr.mxu0 0.0
      %3044 = vmatpush1.msra.mxu0 %v378
      %3045 = vmatprep.subr.mxu0 0.0
      %3046 = vmatpush1.msra.mxu0 %v379
      %3047 = vmatprep.subr.mxu0 0.0
      %3048 = vmatpush1.msra.mxu0 %v380
      %3049 = vmatprep.subr.mxu0 0.0
      %3050 = vmatpush1.msra.mxu0 %v381
      %3051 = vmatprep.subr.mxu0 0.0
      %3052 = vmatpush1.msra.mxu0 %v382
      %3053 = vmatprep.subr.mxu0 0.0
      %3054 = vmatpush1.msra.mxu0 %v383
      %3055 = vmatprep.subr.mxu0 0.0
      %3056 = vmatpush1.msra.mxu0 %v384
      %3057 = vmatprep.subr.mxu0 0.0
      %3058 = vmatpush1.msra.mxu0 %v385
      %3059 = vmatprep.subr.mxu0 0.0
      %3060 = vmatpush1.msra.mxu0 %v386
      %3061 = vmatprep.subr.mxu0 0.0
      %3062 = vmatpush1.msra.mxu0 %v387
      %3063 = vmatprep.subr.mxu0 0.0
      %3064 = vmatpush1.msra.mxu0 %v388
      %3065 = vmatprep.subr.mxu0 0.0
      %3066 = vmatpush1.msra.mxu0 %v389
      %3067 = vmatprep.subr.mxu0 0.0
      %3068 = vmatpush1.msra.mxu0 %v390
      %3069 = vmatprep.subr.mxu0 0.0
      %3070 = vmatpush1.msra.mxu0 %v391
      %3071 = vmatprep.subr.mxu0 0.0
      %3072 = vmatpush1.msra.mxu0 %v392
      %3073 = vmatprep.subr.mxu0 0.0
      %3074 = vmatpush1.msra.mxu0 %v393
      %3075 = vmatprep.subr.mxu0 0.0
      %3076 = vmatpush1.msra.mxu0 %v394
      %3077 = vmatprep.subr.mxu0 0.0
      %3078 = vmatpush1.msra.mxu0 %v395
      %3079 = vmatprep.subr.mxu0 0.0
      %3080 = vmatpush1.msra.mxu0 %v396
      %3081 = vmatprep.subr.mxu0 0.0
      %3082 = vmatpush1.msra.mxu0 %v397
      %3083 = vmatprep.subr.mxu0 0.0
      %3084 = vmatpush1.msra.mxu0 %v398
      %3085 = vmatprep.subr.mxu0 0.0
      %3086 = vmatpush1.msra.mxu0 %v399
      %3087 = vmatprep.mubr.f32.mxu0 %v2673
      %3088 = vmatmul.mubr.f32.gmra.mrb[0].mxu0 %v2672
      %v3089 = vpop.f32.mrb[0].mxu0
      %v3090 = vadd.f32 %v2865, %v3089
      %v3091 = vpop.f32.mrb[0].mxu0
      %3092 = vmatprep.mubr.f32.mxu0 %v2677
      %3093 = vmatmul.mubr.f32.gmra.mrb[0].mxu0 %v2676
      %v3094 = vpop.f32.mrb[0].mxu0
      %v3095 = vadd.f32 %v2870, %v3094
      %v3096 = vpop.f32.mrb[0].mxu0
      %3097 = vmatprep.mubr.f32.mxu0 %v2681
      %3098 = vmatmul.mubr.f32.gmra.mrb[0].mxu0 %v2680
      %v3099 = vpop.f32.mrb[0].mxu0
      %v3100 = vadd.f32 %v2875, %v3099
      %v3101 = vpop.f32.mrb[0].mxu0
      %3102 = vmatprep.mubr.f32.mxu0 %v2685
      %3103 = vmatmul.mubr.f32.gmra.mrb[0].mxu0 %v2684
      %v3104 = vpop.f32.mrb[0].mxu0
      %v3105 = vadd.f32 %v2880, %v3104
      %v3106 = vpop.f32.mrb[0].mxu0
      %3107 = vmatprep.mubr.f32.mxu0 %v2689
      %3108 = vmatmul.mubr.f32.gmra.mrb[0].mxu0 %v2688
      %v3109 = vpop.f32.mrb[0].mxu0
      %v3110 = vadd.f32 %v2885, %v3109
      %v3111 = vpop.f32.mrb[0].mxu0
      %3112 = vmatprep.mubr.f32.mxu0 %v2693
      %3113 = vmatmul.mubr.f32.gmra.mrb[0].mxu0 %v2692
      %v3114 = vpop.f32.mrb[0].mxu0
      %v3115 = vadd.f32 %v2890, %v3114
      %v3116 = vpop.f32.mrb[0].mxu0
      %3117 = vmatprep.mubr.f32.mxu0 %v2697
      %3118 = vmatmul.mubr.f32.gmra.mrb[0].mxu0 %v2696
      %v3119 = vpop.f32.mrb[0].mxu0
      %v3120 = vadd.f32 %v2895, %v3119
      %v3121 = vpop.f32.mrb[0].mxu0
      %3122 = vmatprep.mubr.f32.mxu0 %v2701
      %3123 = vmatmul.mubr.f32.gmra.mrb[0].mxu0 %v2700
      %v3124 = vpop.f32.mrb[0].mxu0
      %v3125 = vadd.f32 %v2900, %v3124
      %v3126 = vpop.f32.mrb[0].mxu0
      %3127 = vmatprep.mubr.f32.mxu0 %v2705
      %3128 = vmatmul.mubr.f32.gmra.mrb[0].mxu0 %v2704
      %v3129 = vpop.f32.mrb[0].mxu0
      %v3130 = vadd.f32 %v2905, %v3129
      %v3131 = vpop.f32.mrb[0].mxu0
      %3132 = vmatprep.mubr.f32.mxu0 %v2709
      %3133 = vmatmul.mubr.f32.gmra.mrb[0].mxu0 %v2708
      %v3134 = vpop.f32.mrb[0].mxu0
      %v3135 = vadd.f32 %v2910, %v3134
      %v3136 = vpop.f32.mrb[0].mxu0
      %3137 = vmatprep.mubr.f32.mxu0 %v2713
      %3138 = vmatmul.mubr.f32.gmra.mrb[0].mxu0 %v2712
      %v3139 = vpop.f32.mrb[0].mxu0
      %v3140 = vadd.f32 %v2915, %v3139
      %v3141 = vpop.f32.mrb[0].mxu0
      %3142 = vmatprep.mubr.f32.mxu0 %v2717
      %3143 = vmatmul.mubr.f32.gmra.mrb[0].mxu0 %v2716
      %v3144 = vpop.f32.mrb[0].mxu0
      %v3145 = vadd.f32 %v2920, %v3144
      %v3146 = vpop.f32.mrb[0].mxu0
      %3147 = vmatprep.mubr.f32.mxu0 %v2721
      %3148 = vmatmul.mubr.f32.gmra.mrb[0].mxu0 %v2720
      %v3149 = vpop.f32.mrb[0].mxu0
      %v3150 = vadd.f32 %v2925, %v3149
      %v3151 = vpop.f32.mrb[0].mxu0
      %3152 = vmatprep.mubr.f32.mxu0 %v2725
      %3153 = vmatmul.mubr.f32.gmra.mrb[0].mxu0 %v2724
      %v3154 = vpop.f32.mrb[0].mxu0
      %v3155 = vadd.f32 %v2930, %v3154
      %v3156 = vpop.f32.mrb[0].mxu0
      %3157 = vmatprep.mubr.f32.mxu0 %v2729
      %3158 = vmatmul.mubr.f32.gmra.mrb[0].mxu0 %v2728
      %v3159 = vpop.f32.mrb[0].mxu0
      %v3160 = vadd.f32 %v2935, %v3159
      %v3161 = vpop.f32.mrb[0].mxu0
      %3162 = vmatprep.mubr.f32.mxu0 %v2733
      %3163 = vmatmul.mubr.f32.gmra.mrb[0].mxu0 %v2732
      %v3164 = vpop.f32.mrb[0].mxu0
      %v3165 = vadd.f32 %v2940, %v3164
      %v3166 = vpop.f32.mrb[0].mxu0
      %3167 = vmatprep.mubr.f32.mxu0 %v2737
      %3168 = vmatmul.mubr.f32.gmra.mrb[0].mxu0 %v2736
      %v3169 = vpop.f32.mrb[0].mxu0
      %v3170 = vadd.f32 %v2945, %v3169
      %v3171 = vpop.f32.mrb[0].mxu0
      %3172 = vmatprep.mubr.f32.mxu0 %v2741
      %3173 = vmatmul.mubr.f32.gmra.mrb[0].mxu0 %v2740
      %v3174 = vpop.f32.mrb[0].mxu0
      %v3175 = vadd.f32 %v2950, %v3174
      %v3176 = vpop.f32.mrb[0].mxu0
      %3177 = vmatprep.mubr.f32.mxu0 %v2745
      %3178 = vmatmul.mubr.f32.gmra.mrb[0].mxu0 %v2744
      %v3179 = vpop.f32.mrb[0].mxu0
      %v3180 = vadd.f32 %v2955, %v3179
      %v3181 = vpop.f32.mrb[0].mxu0
      %3182 = vmatprep.mubr.f32.mxu0 %v2749
      %3183 = vmatmul.mubr.f32.gmra.mrb[0].mxu0 %v2748
      %v3184 = vpop.f32.mrb[0].mxu0
      %v3185 = vadd.f32 %v2960, %v3184
      %v3186 = vpop.f32.mrb[0].mxu0
      %3187 = vmatprep.mubr.f32.mxu0 %v2753
      %3188 = vmatmul.mubr.f32.gmra.mrb[0].mxu0 %v2752
      %v3189 = vpop.f32.mrb[0].mxu0
      %v3190 = vadd.f32 %v2965, %v3189
      %v3191 = vpop.f32.mrb[0].mxu0
      %3192 = vmatprep.mubr.f32.mxu0 %v2757
      %3193 = vmatmul.mubr.f32.gmra.mrb[0].mxu0 %v2756
      %v3194 = vpop.f32.mrb[0].mxu0
      %v3195 = vadd.f32 %v2970, %v3194
      %v3196 = vpop.f32.mrb[0].mxu0
      %3197 = vmatprep.mubr.f32.mxu0 %v2761
      %3198 = vmatmul.mubr.f32.gmra.mrb[0].mxu0 %v2760
      %v3199 = vpop.f32.mrb[0].mxu0
      %v3200 = vadd.f32 %v2975, %v3199
      %v3201 = vpop.f32.mrb[0].mxu0
      %3202 = vmatprep.mubr.f32.mxu0 %v2765
      %3203 = vmatmul.mubr.f32.gmra.mrb[0].mxu0 %v2764
      %v3204 = vpop.f32.mrb[0].mxu0
      %v3205 = vadd.f32 %v2980, %v3204
      %v3206 = vpop.f32.mrb[0].mxu0
      %3207 = vmatprep.mubr.f32.mxu0 %v2769
      %3208 = vmatmul.mubr.f32.gmra.mrb[0].mxu0 %v2768
      %v3209 = vpop.f32.mrb[0].mxu0
      %v3210 = vadd.f32 %v2985, %v3209
      %v3211 = vpop.f32.mrb[0].mxu0
      %3212 = vmatprep.mubr.f32.mxu0 %v2773
      %3213 = vmatmul.mubr.f32.gmra.mrb[0].mxu0 %v2772
      %v3214 = vpop.f32.mrb[0].mxu0
      %v3215 = vadd.f32 %v2990, %v3214
      %v3216 = vpop.f32.mrb[0].mxu0
      %3217 = vmatprep.mubr.f32.mxu0 %v2777
      %3218 = vmatmul.mubr.f32.gmra.mrb[0].mxu0 %v2776
      %v3219 = vpop.f32.mrb[0].mxu0
      %v3220 = vadd.f32 %v2995, %v3219
      %v3221 = vpop.f32.mrb[0].mxu0
      %3222 = vmatprep.mubr.f32.mxu0 %v2781
      %3223 = vmatmul.mubr.f32.gmra.mrb[0].mxu0 %v2780
      %v3224 = vpop.f32.mrb[0].mxu0
      %v3225 = vadd.f32 %v3000, %v3224
      %v3226 = vpop.f32.mrb[0].mxu0
      %3227 = vmatprep.mubr.f32.mxu0 %v2785
      %3228 = vmatmul.mubr.f32.gmra.mrb[0].mxu0 %v2784
      %v3229 = vpop.f32.mrb[0].mxu0
      %v3230 = vadd.f32 %v3005, %v3229
      %v3231 = vpop.f32.mrb[0].mxu0
      %3232 = vmatprep.mubr.f32.mxu0 %v2789
      %3233 = vmatmul.mubr.f32.gmra.mrb[0].mxu0 %v2788
      %v3234 = vpop.f32.mrb[0].mxu0
      %v3235 = vadd.f32 %v3010, %v3234
      %v3236 = vpop.f32.mrb[0].mxu0
      %3237 = vmatprep.mubr.f32.mxu0 %v2793
      %3238 = vmatmul.mubr.f32.gmra.mrb[0].mxu0 %v2792
      %v3239 = vpop.f32.mrb[0].mxu0
      %v3240 = vadd.f32 %v3015, %v3239
      %v3241 = vpop.f32.mrb[0].mxu0
      %3242 = vmatprep.mubr.f32.mxu0 %v2797
      %3243 = vmatmul.mubr.f32.gmra.mrb[0].mxu0 %v2796
      %v3244 = vpop.f32.mrb[0].mxu0
      %v3245 = vadd.f32 %v3020, %v3244
      %v3246 = vpop.f32.mrb[0].mxu0
      %3247 = vdwg.mxu0
      %3248 = vxpose.xlu0.b32.start [1/16] %v3090, 128
      %3249 = vxpose.xlu0.b32.cont [2/16] %v3095, 128
      %3250 = vxpose.xlu0.b32.cont [3/16] %v3100, 128
      %3251 = vxpose.xlu0.b32.cont [4/16] %v3105, 128
      %3252 = vxpose.xlu0.b32.cont [5/16] %v3110, 128
      %3253 = vxpose.xlu0.b32.cont [6/16] %v3115, 128
      %3254 = vxpose.xlu0.b32.cont [7/16] %v3120, 128
      %3255 = vxpose.xlu0.b32.cont [8/16] %v3125, 128
      %3256 = vxpose.xlu0.b32.cont [9/16] %v3130, 128
      %3257 = vxpose.xlu0.b32.cont [10/16] %v3135, 128
      %3258 = vxpose.xlu0.b32.cont [11/16] %v3140, 128
      %3259 = vxpose.xlu0.b32.cont [12/16] %v3145, 128
      %3260 = vxpose.xlu0.b32.cont [13/16] %v3150, 128
      %3261 = vxpose.xlu0.b32.cont [14/16] %v3155, 128
      %3262 = vxpose.xlu0.b32.cont [15/16] %v3160, 128
      %3263 = vxpose.xlu0.b32.end [16/16] %v3165, 128
      %v3264 = vpop.trf.xlu0
      %v3265 = vpop.trf.xlu0
      %v3266 = vpop.trf.xlu0
      %v3267 = vpop.trf.xlu0
      %v3268 = vpop.trf.xlu0
      %v3269 = vpop.trf.xlu0
      %v3270 = vpop.trf.xlu0
      %v3271 = vpop.trf.xlu0
      %v3272 = vpop.trf.xlu0
      %v3273 = vpop.trf.xlu0
      %v3274 = vpop.trf.xlu0
      %v3275 = vpop.trf.xlu0
      %v3276 = vpop.trf.xlu0
      %v3277 = vpop.trf.xlu0
      %v3278 = vpop.trf.xlu0
      %v3279 = vpop.trf.xlu0
      %3280 = vxpose.xlu0.b32.start [1/16] %v3170, 128
      %3281 = vxpose.xlu0.b32.cont [2/16] %v3175, 128
      %3282 = vxpose.xlu0.b32.cont [3/16] %v3180, 128
      %3283 = vxpose.xlu0.b32.cont [4/16] %v3185, 128
      %3284 = vxpose.xlu0.b32.cont [5/16] %v3190, 128
      %3285 = vxpose.xlu0.b32.cont [6/16] %v3195, 128
      %3286 = vxpose.xlu0.b32.cont [7/16] %v3200, 128
      %3287 = vxpose.xlu0.b32.cont [8/16] %v3205, 128
      %3288 = vxpose.xlu0.b32.cont [9/16] %v3210, 128
      %3289 = vxpose.xlu0.b32.cont [10/16] %v3215, 128
      %3290 = vxpose.xlu0.b32.cont [11/16] %v3220, 128
      %3291 = vxpose.xlu0.b32.cont [12/16] %v3225, 128
      %3292 = vxpose.xlu0.b32.cont [13/16] %v3230, 128
      %3293 = vxpose.xlu0.b32.cont [14/16] %v3235, 128
      %3294 = vxpose.xlu0.b32.cont [15/16] %v3240, 128
      %3295 = vxpose.xlu0.b32.end [16/16] %v3245, 128
      %v3296 = vpop.trf.xlu0
      %v3297 = vpop.trf.xlu0
      %v3298 = vpop.trf.xlu0
      %v3299 = vpop.trf.xlu0
      %v3300 = vpop.trf.xlu0
      %v3301 = vpop.trf.xlu0
      %v3302 = vpop.trf.xlu0
      %v3303 = vpop.trf.xlu0
      %v3304 = vpop.trf.xlu0
      %v3305 = vpop.trf.xlu0
      %v3306 = vpop.trf.xlu0
      %v3307 = vpop.trf.xlu0
      %v3308 = vpop.trf.xlu0
      %v3309 = vpop.trf.xlu0
      %v3310 = vpop.trf.xlu0
      %v3311 = vpop.trf.xlu0
      %3312 = vst [vmem:[%s247] sm:$0xff] %v3264
      %3313 = vst [vmem:[%s247 + $0x8] sm:$0xff] %v3296
      %3314 = vst [vmem:[%s247 + $0x10] sm:$0xff] %v3265
      %3315 = vst [vmem:[%s247 + $0x18] sm:$0xff] %v3297
      %3316 = vst [vmem:[%s247 + $0x20] sm:$0xff] %v3266
      %3317 = vst [vmem:[%s247 + $0x28] sm:$0xff] %v3298
      %3318 = vst [vmem:[%s247 + $0x30] sm:$0xff] %v3267
      %3319 = vst [vmem:[%s247 + $0x38] sm:$0xff] %v3299
      %3320 = vst [vmem:[%s247 + $0x40] sm:$0xff] %v3268
      %3321 = vst [vmem:[%s247 + $0x48] sm:$0xff] %v3300
      %3322 = vst [vmem:[%s247 + $0x50] sm:$0xff] %v3269
      %3323 = vst [vmem:[%s247 + $0x58] sm:$0xff] %v3301
      %3324 = vst [vmem:[%s247 + $0x60] sm:$0xff] %v3270
      %3325 = vst [vmem:[%s247 + $0x68] sm:$0xff] %v3302
      %3326 = vst [vmem:[%s247 + $0x70] sm:$0xff] %v3271
      %3327 = vst [vmem:[%s247 + $0x78] sm:$0xff] %v3303
      %v3328 = vsub.f32 %v3090, %v288
      %v3329 = vsub.f32 %v3095, %v289
      %v3330 = vsub.f32 %v3100, %v290
      %v3331 = vsub.f32 %v3105, %v291
      %v3332 = vsub.f32 %v3110, %v292
      %v3333 = vsub.f32 %v3115, %v293
      %v3334 = vsub.f32 %v3120, %v294
      %v3335 = vsub.f32 %v3125, %v295
      %v3336 = vsub.f32 %v3130, %v296
      %v3337 = vsub.f32 %v3135, %v297
      %v3338 = vsub.f32 %v3140, %v298
      %v3339 = vsub.f32 %v3145, %v299
      %v3340 = vsub.f32 %v3150, %v300
      %v3341 = vsub.f32 %v3155, %v301
      %v3342 = vsub.f32 %v3160, %v302
      %v3343 = vsub.f32 %v3165, %v303
      %v3344 = vsub.f32 %v3170, %v320
      %v3345 = vsub.f32 %v3175, %v321
      %v3346 = vsub.f32 %v3180, %v322
      %v3347 = vsub.f32 %v3185, %v323
      %v3348 = vsub.f32 %v3190, %v324
      %v3349 = vsub.f32 %v3195, %v325
      %v3350 = vsub.f32 %v3200, %v326
      %v3351 = vsub.f32 %v3205, %v327
      %v3352 = vsub.f32 %v3210, %v328
      %v3353 = vsub.f32 %v3215, %v329
      %v3354 = vsub.f32 %v3220, %v330
      %v3355 = vsub.f32 %v3225, %v331
      %v3356 = vsub.f32 %v3230, %v332
      %v3357 = vsub.f32 %v3235, %v333
      %v3358 = vsub.f32 %v3240, %v334
      %v3359 = vsub.f32 %v3245, %v335
      %v3360 = vmul.f32 %v3328, %v3328
      %v3361 = vmul.f32 %v3329, %v3329
      %v3362 = vmul.f32 %v3330, %v3330
      %v3363 = vmul.f32 %v3331, %v3331
      %v3364 = vmul.f32 %v3332, %v3332
      %v3365 = vmul.f32 %v3333, %v3333
      %v3366 = vmul.f32 %v3334, %v3334
      %v3367 = vmul.f32 %v3335, %v3335
      %v3368 = vmul.f32 %v3336, %v3336
      %v3369 = vmul.f32 %v3337, %v3337
      %v3370 = vmul.f32 %v3338, %v3338
      %v3371 = vmul.f32 %v3339, %v3339
      %v3372 = vmul.f32 %v3340, %v3340
      %v3373 = vmul.f32 %v3341, %v3341
      %v3374 = vmul.f32 %v3342, %v3342
      %v3375 = vmul.f32 %v3343, %v3343
      %v3376 = vmul.f32 %v3344, %v3344
      %v3377 = vmul.f32 %v3345, %v3345
      %v3378 = vmul.f32 %v3346, %v3346
      %v3379 = vmul.f32 %v3347, %v3347
      %v3380 = vmul.f32 %v3348, %v3348
      %v3381 = vmul.f32 %v3349, %v3349
      %v3382 = vmul.f32 %v3350, %v3350
      %v3383 = vmul.f32 %v3351, %v3351
      %v3384 = vmul.f32 %v3352, %v3352
      %v3385 = vmul.f32 %v3353, %v3353
      %v3386 = vmul.f32 %v3354, %v3354
      %v3387 = vmul.f32 %v3355, %v3355
      %v3388 = vmul.f32 %v3356, %v3356
      %v3389 = vmul.f32 %v3357, %v3357
      %v3390 = vmul.f32 %v3358, %v3358
      %v3391 = vmul.f32 %v3359, %v3359
      %v3392 = vsel %vm400, %v3360, 0.0
      %v3393 = vsel %vm400, %v3361, 0.0
      %v3394 = vadd.f32 %v3392, %v3393
      %v3395 = vsel %vm400, %v3362, 0.0
      %v3396 = vadd.f32 %v3394, %v3395
      %v3397 = vsel %vm400, %v3363, 0.0
      %v3398 = vadd.f32 %v3396, %v3397
      %v3399 = vsel %vm400, %v3364, 0.0
      %v3400 = vadd.f32 %v3398, %v3399
      %v3401 = vsel %vm400, %v3365, 0.0
      %v3402 = vadd.f32 %v3400, %v3401
      %v3403 = vsel %vm400, %v3366, 0.0
      %v3404 = vadd.f32 %v3402, %v3403
      %v3405 = vsel %vm400, %v3367, 0.0
      %v3406 = vadd.f32 %v3404, %v3405
      %v3407 = vsel %vm400, %v3368, 0.0
      %v3408 = vadd.f32 %v3406, %v3407
      %v3409 = vsel %vm400, %v3369, 0.0
      %v3410 = vadd.f32 %v3408, %v3409
      %v3411 = vsel %vm400, %v3370, 0.0
      %v3412 = vadd.f32 %v3410, %v3411
      %v3413 = vsel %vm400, %v3371, 0.0
      %v3414 = vadd.f32 %v3412, %v3413
      %v3415 = vsel %vm400, %v3372, 0.0
      %v3416 = vadd.f32 %v3414, %v3415
      %v3417 = vsel %vm400, %v3373, 0.0
      %v3418 = vadd.f32 %v3416, %v3417
      %v3419 = vsel %vm400, %v3374, 0.0
      %v3420 = vadd.f32 %v3418, %v3419
      %v3421 = vsel %vm400, %v3375, 0.0
      %v3422 = vadd.f32 %v3420, %v3421
      %v3423 = vsel %vm400, %v3376, 0.0
      %v3424 = vadd.f32 %v3422, %v3423
      %v3425 = vsel %vm400, %v3377, 0.0
      %v3426 = vadd.f32 %v3424, %v3425
      %v3427 = vsel %vm400, %v3378, 0.0
      %v3428 = vadd.f32 %v3426, %v3427
      %v3429 = vsel %vm400, %v3379, 0.0
      %v3430 = vadd.f32 %v3428, %v3429
      %v3431 = vsel %vm400, %v3380, 0.0
      %v3432 = vadd.f32 %v3430, %v3431
      %v3433 = vsel %vm400, %v3381, 0.0
      %v3434 = vadd.f32 %v3432, %v3433
      %v3435 = vsel %vm400, %v3382, 0.0
      %v3436 = vadd.f32 %v3434, %v3435
      %v3437 = vsel %vm400, %v3383, 0.0
      %v3438 = vadd.f32 %v3436, %v3437
      %v3439 = vsel %vm400, %v3384, 0.0
      %v3440 = vadd.f32 %v3438, %v3439
      %v3441 = vsel %vm400, %v3385, 0.0
      %v3442 = vadd.f32 %v3440, %v3441
      %v3443 = vsel %vm400, %v3386, 0.0
      %v3444 = vadd.f32 %v3442, %v3443
      %v3445 = vsel %vm400, %v3387, 0.0
      %v3446 = vadd.f32 %v3444, %v3445
      %v3447 = vsel %vm400, %v3388, 0.0
      %v3448 = vadd.f32 %v3446, %v3447
      %v3449 = vsel %vm400, %v3389, 0.0
      %v3450 = vadd.f32 %v3448, %v3449
      %v3451 = vsel %vm400, %v3390, 0.0
      %v3452 = vadd.f32 %v3450, %v3451
      %v3453 = vsel %vm400, %v3391, 0.0
      %v3454 = vadd.f32 %v3452, %v3453
      %v3455 = vrot.slane %v3454, 4
      %v3456 = vadd.f32 %v3454, %v3455
      %v3457 = vrot.slane %v3456, 2
      %v3458 = vadd.f32 %v3456, %v3457
      %v3459 = vrot.slane %v3458, 1
      %v3460 = vadd.f32 %v3458, %v3459
      %v3461 = vsel %vm400, %v3460, 0.0
      %3462 = vadd.xlane.f32.xlu0 %v3461
      %v3463 = vpop.xlane.xlu0 %3462
      %3464 = vst [vmem:[%s255] sm:$0xff] %v3463
      %s3465 = smul.u32 2, %s21
      %p3466 = scmp.lt.s32.totalorder %s20, 1
      %s3467 = scalar_select %p3466, %s20, 1
      %p3468 = scmp.lt.s32.totalorder %s3465, 1
      %s3469 = scalar_select %p3468, %s3465, 1
      %s3470 = smul.addr %s3467, 16
      %s3471 = sadd.s32 %s3469, %s3470
      %s3472 = smul.addr %s3471, 8
      %s3473 = scalar_lea.vmem %s3, %s3472
      %p3474 = scmp.lt.s32.totalorder %s20, 1
      %s3475 = scalar_select %p3474, %s20, 1
      %p3476 = scmp.lt.s32.totalorder %s21, 0
      %s3477 = scalar_select %p3476, %s21, 0
      %s3478 = sadd.s32 %s3477, %s3475
      %s3479 = smul.addr %s3478, 8
      %s3480 = scalar_lea.vmem %s4, %s3479
      // Predicated region
      $region33: #{vq_forward.1} parent=31 // pred_check
        %p3481 = pneg %p118
      $region34: #{vq_forward.1} parent=31 // pred_check_branch
        %3483 = sbr.rel (%p3481) target = $region36
      $region35: #{vq_forward.1} parent=31 // pred_region
        %s3484 = smul.u32 2, %s21
      $region36: #{vq_forward.1} parent=31 // pred_fallthru
        _
      // Predicated region
      $region37: #{vq_forward.1} parent=31 // pred_check
        %p3485 = pneg %p146
      $region38: #{vq_forward.1} parent=31 // pred_check_branch
        %3487 = sbr.rel (%p3485) target = $region40
      $region39: #{vq_forward.1} parent=31 // pred_region
        _
      $region40: #{vq_forward.1} parent=31 // pred_fallthru
        _
    $region32: #{vq_forward.1} parent=5 // pred_fallthru
      _
    %p3488 = scmp.le.s32.totalorder 2, %s11
    // Predicated region
    $region41: #{vq_forward.1} parent=5 // pred_check
      %p3489 = pneg %p3488
    $region42: #{vq_forward.1} parent=5 // pred_check_branch
      %3491 = sbr.rel (%p3489) target = $region44
    $region43: #{vq_forward.1} parent=5 // pred_region
      %s3492 = ssub.s32 %s11, 2
      // Predicated region
      $region45: #{vq_forward.1} parent=43 // pred_check
        %p3493 = pneg %p124
      $region46: #{vq_forward.1} parent=43 // pred_check_branch
        %3495 = sbr.rel (%p3493) target = $region48
      $region47: #{vq_forward.1} parent=43 // pred_region
        %s3496 = smul.u32 2, %s23
        %p3497 = scmp.lt.s32.totalorder %s22, 1
        %s3498 = scalar_select %p3497, %s22, 1
        %p3499 = scmp.lt.s32.totalorder %s3496, 1
        %s3500 = scalar_select %p3499, %s3496, 1
        %s3501 = smul.addr %s3498, 16
        %s3502 = sadd.s32 %s3500, %s3501
        %s3503 = smul.addr %s3502, 8
        %s3504 = scalar_lea.vmem %s3, %s3503
      $region48: #{vq_forward.1} parent=43 // pred_fallthru
        _
      // Predicated region
      $region49: #{vq_forward.1} parent=43 // pred_check
        %p3505 = pneg %p152
      $region50: #{vq_forward.1} parent=43 // pred_check_branch
        %3507 = sbr.rel (%p3505) target = $region52
      $region51: #{vq_forward.1} parent=43 // pred_region
        %p3508 = scmp.lt.s32.totalorder %s22, 1
        %s3509 = scalar_select %p3508, %s22, 1
        %p3510 = scmp.lt.s32.totalorder %s23, 0
        %s3511 = scalar_select %p3510, %s23, 0
        %s3512 = sadd.s32 %s3511, %s3509
        %s3513 = smul.addr %s3512, 8
        %s3514 = scalar_lea.vmem %s4, %s3513
      $region52: #{vq_forward.1} parent=43 // pred_fallthru
        _
    $region44: #{vq_forward.1} parent=5 // pred_fallthru
      _
  $region6: #{vq_forward.1} parent=0 // loop_footer
    %s15 = sadd.s32 1, %s11
  $region7: #{vq_forward.1} parent=0 // loop_footer_branch
    %10 = sbr.rel target = $region3
  $region8: #{vq_forward.1} parent=0 // loop_exit
    _

</llo_original>
